<compile_context>
chip_gen: v5e
topology: v5e:2x2
jax: 0.10.0
libtpu: 0.0.40
codegen_flags: <defaults>
</compile_context>

<pallas_src>
import functools
import math

import jax
import jax.numpy as jnp
from jax import lax
from jax.experimental import pallas as pl
from jax.experimental.pallas import tpu as pltpu

NEG_INF = -1e9
LN_EPS = 1e-5


def _round_up(x, m):
    return (x + m - 1) // m * m


def _pick_tile(dim, candidates):
    for t in candidates:
        if dim >= t and dim % t == 0:
            return t
    return dim  # fall back to full extent (always a legal block)


def _clamp_vmem(nbytes):
    # leave headroom, stay under v7x's 64 MiB physical VMEM
    return int(min(max(nbytes + (8 << 20), 16 << 20), 64 << 20))


# ----------------------------- fused encoder layer ----------------------------

def _layernorm(h, gamma, beta, *, d_real, d_pad, eps):
    """Two-pass LayerNorm over the (zero-padded) last axis; stats divide by d_real."""
    inv_d = 1.0 / d_real
    mean = jnp.sum(h, axis=-1, keepdims=True) * inv_d
    diff = h - mean
    if d_pad > d_real:  # keep padded columns out of the variance (they hold 0, not h)
        cols = lax.broadcasted_iota(jnp.int32, h.shape, h.ndim - 1)
        diff = jnp.where(cols < d_real, diff, 0.0)
    var = jnp.sum(diff * diff, axis=-1, keepdims=True) * inv_d
    return diff * lax.rsqrt(var + eps) * gamma + beta


def _encoder_layer_kernel(x_ref, mask_ref, kpb_ref,
                          in_w_ref, in_b_ref, out_w_ref, out_b_ref,
                          ln1_g_ref, ln1_b_ref,
                          lin1_w_ref, lin1_b_ref, lin2_w_ref, lin2_b_ref,
                          ln2_g_ref, ln2_b_ref,
                          o_ref, attn_ref,
                          *, num_heads, dh, d_real, d_pad, f_pad):
    """One full post-LN TransformerEncoderLayer for one batch element, all in VMEM."""
    x2d = x_ref[0]                                            # (S, d_pad) bf16

    # ---- QKV projection (scale 1/sqrt(dh) already folded into Wq/bq) ----
    qkv = jnp.dot(x2d, in_w_ref[...], preferred_element_type=jnp.float32)
    qkv = (qkv + in_b_ref[...]).astype(jnp.bfloat16)          # (S, 3*d_pad)

    # ---- attention; additive mask built in-kernel, per-head lane-dense stores ----
    bias = mask_ref[...] + kpb_ref[0]                         # (S,S) + (1,S) -> (S,S) f32
    if d_pad > d_real:                                        # keep padded lanes exactly zero
        attn_ref[:, d_real:] = jnp.zeros_like(attn_ref[:, d_real:])
    for h in range(num_heads):                                # static unroll over heads
        lo = h * dh
        q = qkv[:, lo:lo + dh]
        k = qkv[:, d_pad + lo:d_pad + lo + dh]
        v = qkv[:, 2 * d_pad + lo:2 * d_pad + lo + dh]
        s = lax.dot_general(q, k, (((1,), (1,)), ((), ())),
                            preferred_element_type=jnp.float32)          # (S,S)
        s = s + bias
        s = s - jnp.max(s, axis=-1, keepdims=True)
        p = jnp.exp(s)
        p = p / jnp.sum(p, axis=-1, keepdims=True)
        o_h = lax.dot_general(p.astype(v.dtype), v, (((1,), (0,)), ((), ())),
                              preferred_element_type=jnp.float32)        # (S,dh)
        attn_ref[:, lo:lo + dh] = o_h.astype(attn_ref.dtype)

    # ---- out_proj + residual + LayerNorm1 ----
    h1 = jnp.dot(attn_ref[...], out_w_ref[...], preferred_element_type=jnp.float32)
    h1 = h1 + out_b_ref[...] + x2d.astype(jnp.float32)
    h1 = _layernorm(h1, ln1_g_ref[...], ln1_b_ref[...],
                    d_real=d_real, d_pad=d_pad, eps=LN_EPS)              # (S, d_pad) f32

    # ---- FFN: Linear -> ReLU -> Linear + residual + LayerNorm2 ----
    ff = jnp.dot(h1.astype(jnp.bfloat16), lin1_w_ref[...],
                 preferred_element_type=jnp.float32) + lin1_b_ref[...]
    ff = jnp.maximum(ff, 0.0).astype(jnp.bfloat16)                       # (S, f_pad)
    h2 = jnp.dot(ff, lin2_w_ref[...], preferred_element_type=jnp.float32)
    h2 = h2 + lin2_b_ref[...] + h1
    h2 = _layernorm(h2, ln2_g_ref[...], ln2_b_ref[...],
                    d_real=d_real, d_pad=d_pad, eps=LN_EPS)

    o_ref[0] = h2.astype(o_ref.dtype)


def encoder_layer(x, p, src_mask, kpb, *, num_heads, d_model):
    B, S, d_pad = x.shape
    f_pad = p["lin1_w"].shape[1]
    dh = d_model // num_heads

    # rough VMEM budget: 2x (double-buffer) weights + in-kernel intermediates + scratch
    weight_bytes = 2 * (d_pad * 3 * d_pad + d_pad * d_pad + 2 * d_pad * f_pad)
    interm_bytes = 4 * S * (3 * d_pad + f_pad + 4 * d_pad + 2 * S) + 2 * S * d_pad
    vmem_limit = _clamp_vmem(2 * weight_bytes + interm_bytes)
    # TODO(synk): if 2*weight_bytes + interm_bytes exceeds ~56 MiB (long S / big model), switch
    # to the unfused tiled path with a flash-style streamed softmax instead of this fused layer.

    kernel = functools.partial(_encoder_layer_kernel, num_heads=num_heads, dh=dh,
                               d_real=d_model, d_pad=d_pad, f_pad=f_pad)
    return pl.pallas_call(
        kernel,
        out_shape=jax.ShapeDtypeStruct((B, S, d_pad), x.dtype),
        grid=(B,),
        in_specs=[
            pl.BlockSpec((1, S, d_pad), lambda b: (b, 0, 0)),        # x
            pl.BlockSpec((S, S), lambda b: (0, 0)),                  # src_mask (additive)
            pl.BlockSpec((1, 1, S), lambda b: (b, 0, 0)),            # key-padding bias
            pl.BlockSpec((d_pad, 3 * d_pad), lambda b: (0, 0)),      # in_proj_w  (K,N)
            pl.BlockSpec((1, 3 * d_pad), lambda b: (0, 0)),          # in_proj_b
            pl.BlockSpec((d_pad, d_pad), lambda b: (0, 0)),          # out_proj_w (K,N)
            pl.BlockSpec((1, d_pad), lambda b: (0, 0)),              # out_proj_b
            pl.BlockSpec((1, d_pad), lambda b: (0, 0)),              # ln1_g
            pl.BlockSpec((1, d_pad), lambda b: (0, 0)),              # ln1_b
            pl.BlockSpec((d_pad, f_pad), lambda b: (0, 0)),          # lin1_w (K,N)
            pl.BlockSpec((1, f_pad), lambda b: (0, 0)),              # lin1_b
            pl.BlockSpec((f_pad, d_pad), lambda b: (0, 0)),          # lin2_w (K,N)
            pl.BlockSpec((1, d_pad), lambda b: (0, 0)),              # lin2_b
            pl.BlockSpec((1, d_pad), lambda b: (0, 0)),              # ln2_g
            pl.BlockSpec((1, d_pad), lambda b: (0, 0)),              # ln2_b
        ],
        out_specs=pl.BlockSpec((1, S, d_pad), lambda b: (b, 0, 0)),
        scratch_shapes=[pltpu.VMEM((S, d_pad), jnp.bfloat16)],       # attention output buffer
        compiler_params=pltpu.CompilerParams(
            dimension_semantics=("parallel",),
            vmem_limit_bytes=vmem_limit),
    )(x, src_mask, kpb,
      p["in_proj_w"], p["in_proj_b"], p["out_proj_w"], p["out_proj_b"],
      p["ln1_g"], p["ln1_b"], p["lin1_w"], p["lin1_b"],
      p["lin2_w"], p["lin2_b"], p["ln2_g"], p["ln2_b"])


# ----------------------------- tiled output linear ----------------------------

def _matmul_kernel(x_ref, w_ref, b_ref, o_ref, acc_ref, *, relu):
    """Tiled y = x @ w + b (w pre-transposed to (K,N)); bf16 operands, f32 accumulation."""
    @pl.when(pl.program_id(2) == 0)
    def _init():
        acc_ref[...] = jnp.zeros_like(acc_ref)

    acc_ref[...] += jnp.dot(x_ref[...], w_ref[...], preferred_element_type=jnp.float32)

    @pl.when(pl.program_id(2) == pl.num_programs(2) - 1)
    def _done():
        y = acc_ref[...] + b_ref[...]
        if relu:
            y = jnp.maximum(y, 0.0)
        o_ref[...] = y.astype(o_ref.dtype)


def linear(x, w, b, *, relu=False, out_dtype=jnp.bfloat16):
    """x:(M,K) @ w:(K,N) + b:(1,N); all dims pre-padded to lane-dense multiples."""
    M, K = x.shape
    _, N = w.shape
    tm = _pick_tile(M, (512, 256, 128, 64, 32, 16, 8))
    tn = _pick_tile(N, (1024, 512, 256, 128))
    tk = _pick_tile(K, (512, 256, 128))
    out_sz = jnp.dtype(out_dtype).itemsize
    vmem = 2 * (tm * tk * 2 + tk * tn * 2 + tm * tn * out_sz + tn * 4) + tm * tn * 4
    return pl.pallas_call(
        functools.partial(_matmul_kernel, relu=relu),
        out_shape=jax.ShapeDtypeStruct((M, N), out_dtype),
        grid=(M // tm, N // tn, K // tk),
        in_specs=[
            pl.BlockSpec((tm, tk), lambda i, j, k: (i, k)),
            pl.BlockSpec((tk, tn), lambda i, j, k: (k, j)),
            pl.BlockSpec((1, tn), lambda i, j, k: (0, j)),
        ],
        out_specs=pl.BlockSpec((tm, tn), lambda i, j, k: (i, j)),
        scratch_shapes=[pltpu.VMEM((tm, tn), jnp.float32)],
        compiler_params=pltpu.CompilerParams(
            dimension_semantics=("parallel", "parallel", "arbitrary"),
            vmem_limit_bytes=_clamp_vmem(vmem)),
    )(x, w, b)


# --------------------------- model (JAX glue) ---------------------------------

def transformer_encoder_model(x, src_mask, src_key_mask, params,
                              *, num_heads, d_model, vocab_size):
    B, S, D = x.shape
    d_pad = _round_up(d_model, 128)
    # pad feature dim once, cast activations to bf16 once; padded lanes stay exactly zero
    x = jnp.pad(x, ((0, 0), (0, 0), (0, d_pad - D))).astype(jnp.bfloat16)
    # mask prep hoisted out of the layer loop; only (S,S) + (B,1,S) floats — never (B,S,S)
    kpb = jnp.where(src_key_mask, NEG_INF, 0.0).astype(jnp.float32).reshape(B, 1, S)
    src_mask = jnp.maximum(src_mask.astype(jnp.float32), NEG_INF)   # finite even if user gave -inf

    for p in params["layers"]:
        x = encoder_layer(x, p, src_mask, kpb, num_heads=num_heads, d_model=d_model)

    logits = linear(x.reshape(B * S, d_pad), params["out_w"], params["out_b"],
                    out_dtype=jnp.float32)                           # (B*S, vocab_pad)
    return logits.reshape(B, S, -1)[..., :vocab_size]


# ------------------------- params: init + TPU layout --------------------------

def init_params(key, vocab_size, d_model, hidden_size, num_layers):
    """Raw parameters in PyTorch layout/shapes ((out_features, in_features) weights)."""
    def nxt():
        nonlocal key
        key, sub = jax.random.split(key)
        return sub

    layers = []
    for _ in range(num_layers):
        layers.append({
            "in_proj_w": jax.random.normal(nxt(), (3 * d_model, d_model), jnp.float32) * 0.05,
            "in_proj_b": jnp.zeros((3 * d_model,), jnp.float32),
            "out_proj_w": jax.random.normal(nxt(), (d_model, d_model), jnp.float32) * 0.05,
            "out_proj_b": jnp.zeros((d_model,), jnp.float32),
            "lin1_w": jax.random.normal(nxt(), (hidden_size, d_model), jnp.float32) * 0.05,
            "lin1_b": jnp.zeros((hidden_size,), jnp.float32),
            "lin2_w": jax.random.normal(nxt(), (d_model, hidden_size), jnp.float32) * 0.05,
            "lin2_b": jnp.zeros((d_model,), jnp.float32),
            "ln1_g": jnp.ones((d_model,), jnp.float32),
            "ln1_b": jnp.zeros((d_model,), jnp.float32),
            "ln2_g": jnp.ones((d_model,), jnp.float32),
            "ln2_b": jnp.zeros((d_model,), jnp.float32),
        })
    return {
        "layers": layers,
        "out_w": jax.random.normal(nxt(), (vocab_size, d_model), jnp.float32) * 0.05,
        "out_b": jnp.zeros((vocab_size,), jnp.float32),
    }


def _pad2(w, n_to, k_to):
    n, k = w.shape
    return jnp.pad(w, ((0, n_to - n), (0, k_to - k)))


def _pad1(v, n_to):
    return jnp.pad(v, ((0, n_to - v.shape[0]),))


def prepare_params(raw, d_model, hidden_size, vocab_size, num_heads):
    """Done ONCE outside jit: zero-pad to 128 multiples, transpose weights to (K,N),
    fold 1/sqrt(dh) into Wq/bq, cast matmul weights to bf16, biases/LN params to f32 (1,N)."""
    d_pad = _round_up(d_model, 128)
    f_pad = _round_up(hidden_size, 128)
    v_pad = _round_up(vocab_size, 128)
    scale = 1.0 / math.sqrt(d_model // num_heads)

    layers = []
    for p in raw["layers"]:
        wq, wk, wv = jnp.split(p["in_proj_w"], 3, axis=0)
        bq, bk, bv = jnp.split(p["in_proj_b"], 3, axis=0)
        wq = wq * scale                                   # fold softmax scale into Q projection
        bq = bq * scale
        in_w = jnp.concatenate([_pad2(wq, d_pad, d_pad), _pad2(wk, d_pad, d_pad),
                                _pad2(wv, d_pad, d_pad)], axis=0).T          # (d_pad, 3*d_pad)
        in_b = jnp.concatenate([_pad1(bq, d_pad), _pad1(bk, d_pad), _pad1(bv, d_pad)])
        layers.append({
            "in_proj_w": in_w.astype(jnp.bfloat16),
            "in_proj_b": in_b.reshape(1, -1).astype(jnp.float32),
            "out_proj_w": _pad2(p["out_proj_w"], d_pad, d_pad).T.astype(jnp.bfloat16),
            "out_proj_b": _pad1(p["out_proj_b"], d_pad).reshape(1, -1).astype(jnp.float32),
            "lin1_w": _pad2(p["lin1_w"], f_pad, d_pad).T.astype(jnp.bfloat16),
            "lin1_b": _pad1(p["lin1_b"], f_pad).reshape(1, -1).astype(jnp.float32),
            "lin2_w": _pad2(p["lin2_w"], d_pad, f_pad).T.astype(jnp.bfloat16),
            "lin2_b": _pad1(p["lin2_b"], d_pad).reshape(1, -1).astype(jnp.float32),
            # gamma/beta zero-padded so padded lanes stay exactly zero after LayerNorm
            "ln1_g": _pad1(p["ln1_g"], d_pad).reshape(1, -1).astype(jnp.float32),
            "ln1_b": _pad1(p["ln1_b"], d_pad).reshape(1, -1).astype(jnp.float32),
            "ln2_g": _pad1(p["ln2_g"], d_pad).reshape(1, -1).astype(jnp.float32),
            "ln2_b": _pad1(p["ln2_b"], d_pad).reshape(1, -1).astype(jnp.float32),
        })
    return {
        "layers": layers,
        "out_w": _pad2(raw["out_w"], v_pad, d_pad).T.astype(jnp.bfloat16),    # (d_pad, v_pad)
        "out_b": _pad1(raw["out_b"], v_pad).reshape(1, -1).astype(jnp.float32),
    }


if __name__ == "__main__":
    # small, TPU-friendly shapes consistent with the module (head_dim = 128 is lane-dense)
    vocab_size, d_model, hidden_size, num_heads, num_layers = 50, 256, 512, 2, 2
    B, S = 2, 8

    root = jax.random.PRNGKey(0)
    k_x, k_p = jax.random.split(root)
    x = jax.random.normal(k_x, (B, S, d_model), jnp.float32)
    src_mask = jnp.zeros((S, S), jnp.float32)                          # additive float attn mask
    src_key_mask = jnp.zeros((B, S), jnp.bool_).at[1, -2:].set(True)   # True = padding

    raw_params = init_params(k_p, vocab_size, d_model, hidden_size, num_layers)
    params = prepare_params(raw_params, d_model, hidden_size, vocab_size, num_heads)

    fwd = jax.jit(functools.partial(transformer_encoder_model,
                                    num_heads=num_heads, d_model=d_model,
                                    vocab_size=vocab_size))
    out = fwd(x, src_mask, src_key_mask, params)
    jax.block_until_ready(out)

    assert out.shape == (B, S, vocab_size) and out.dtype == jnp.float32
    assert bool(jnp.all(jnp.isfinite(out)))
    print("KERNEL_OK")
</pallas_src>

<mosaic_0001>
module attributes {stable_mosaic.version = 11 : i64} {
  func.func @_encoder_layer_kernel(%arg0: i32, %arg1: memref<1x8x256xbf16, #tpu.memory_space<vmem>>, %arg2: memref<8x8xf32, #tpu.memory_space<vmem>>, %arg3: memref<1x1x8xf32, #tpu.memory_space<vmem>>, %arg4: memref<256x768xbf16, #tpu.memory_space<vmem>>, %arg5: memref<1x768xf32, #tpu.memory_space<vmem>>, %arg6: memref<256x256xbf16, #tpu.memory_space<vmem>>, %arg7: memref<1x256xf32, #tpu.memory_space<vmem>>, %arg8: memref<1x256xf32, #tpu.memory_space<vmem>>, %arg9: memref<1x256xf32, #tpu.memory_space<vmem>>, %arg10: memref<256x512xbf16, #tpu.memory_space<vmem>>, %arg11: memref<1x512xf32, #tpu.memory_space<vmem>>, %arg12: memref<512x256xbf16, #tpu.memory_space<vmem>>, %arg13: memref<1x256xf32, #tpu.memory_space<vmem>>, %arg14: memref<1x256xf32, #tpu.memory_space<vmem>>, %arg15: memref<1x256xf32, #tpu.memory_space<vmem>>, %arg16: memref<1x8x256xbf16, #tpu.memory_space<vmem>>, %arg17: memref<8x256xbf16, #tpu.memory_space<vmem>>) attributes {dimension_semantics = [#tpu.dimension_semantics<parallel>], iteration_bounds = array<i64: 2>, scalar_prefetch = 0 : i64, scratch_operands = 1 : i64, tpu.core_type = #tpu.core_type<tc>, window_params = [{transform_indices = @transform_0, window_bounds = array<i64: 1, 8, 256>}, {pipeline_mode = #tpu.pipeline_mode<synchronous>, transform_indices = @transform_1, window_bounds = array<i64: 8, 8>}, {transform_indices = @transform_2, window_bounds = array<i64: 1, 1, 8>}, {pipeline_mode = #tpu.pipeline_mode<synchronous>, transform_indices = @transform_3, window_bounds = array<i64: 256, 768>}, {pipeline_mode = #tpu.pipeline_mode<synchronous>, transform_indices = @transform_4, window_bounds = array<i64: 1, 768>}, {pipeline_mode = #tpu.pipeline_mode<synchronous>, transform_indices = @transform_5, window_bounds = array<i64: 256, 256>}, {pipeline_mode = #tpu.pipeline_mode<synchronous>, transform_indices = @transform_6, window_bounds = array<i64: 1, 256>}, {pipeline_mode = #tpu.pipeline_mode<synchronous>, transform_indices = @transform_7, window_bounds = array<i64: 1, 256>}, {pipeline_mode = #tpu.pipeline_mode<synchronous>, transform_indices = @transform_8, window_bounds = array<i64: 1, 256>}, {pipeline_mode = #tpu.pipeline_mode<synchronous>, transform_indices = @transform_9, window_bounds = array<i64: 256, 512>}, {pipeline_mode = #tpu.pipeline_mode<synchronous>, transform_indices = @transform_10, window_bounds = array<i64: 1, 512>}, {pipeline_mode = #tpu.pipeline_mode<synchronous>, transform_indices = @transform_11, window_bounds = array<i64: 512, 256>}, {pipeline_mode = #tpu.pipeline_mode<synchronous>, transform_indices = @transform_12, window_bounds = array<i64: 1, 256>}, {pipeline_mode = #tpu.pipeline_mode<synchronous>, transform_indices = @transform_13, window_bounds = array<i64: 1, 256>}, {pipeline_mode = #tpu.pipeline_mode<synchronous>, transform_indices = @transform_14, window_bounds = array<i64: 1, 256>}, {transform_indices = @transform_15, window_bounds = array<i64: 1, 8, 256>}]} {
    %c0 = arith.constant 0 : index
    %c0_0 = arith.constant 0 : index
    %c0_1 = arith.constant 0 : index
    %0 = vector.load %arg1[%c0, %c0_0, %c0_1] : memref<1x8x256xbf16, #tpu.memory_space<vmem>>, vector<1x8x256xbf16>
    %1 = vector.shape_cast %0 : vector<1x8x256xbf16> to vector<8x256xbf16>
    %c0_2 = arith.constant 0 : index
    %c0_3 = arith.constant 0 : index
    %2 = vector.load %arg4[%c0_2, %c0_3] : memref<256x768xbf16, #tpu.memory_space<vmem>>, vector<256x768xbf16>
    %cst = arith.constant dense<0.000000e+00> : vector<8x768xf32>
    %3 = tpu.matmul %1, %2, %cst {dimension_numbers = #tpu.dot_dimension_numbers<[1], [0], [0], [1], [0, 0, 1, 1], [], []>} : vector<8x256xbf16>, vector<256x768xbf16>, vector<8x768xf32> -> vector<8x768xf32>
    %c0_4 = arith.constant 0 : index
    %c0_5 = arith.constant 0 : index
    %4 = vector.load %arg5[%c0_4, %c0_5] : memref<1x768xf32, #tpu.memory_space<vmem>>, vector<1x768xf32>
    %5 = vector.broadcast %4 : vector<1x768xf32> to vector<8x768xf32>
    %6 = arith.addf %3, %5 : vector<8x768xf32>
    %7 = arith.truncf %6 : vector<8x768xf32> to vector<8x768xbf16>
    %c0_6 = arith.constant 0 : index
    %c0_7 = arith.constant 0 : index
    %8 = vector.load %arg2[%c0_6, %c0_7] : memref<8x8xf32, #tpu.memory_space<vmem>>, vector<8x8xf32>
    %c0_8 = arith.constant 0 : index
    %c0_9 = arith.constant 0 : index
    %c0_10 = arith.constant 0 : index
    %9 = vector.load %arg3[%c0_8, %c0_9, %c0_10] : memref<1x1x8xf32, #tpu.memory_space<vmem>>, vector<1x1x8xf32>
    %10 = vector.shape_cast %9 : vector<1x1x8xf32> to vector<1x8xf32>
    %11 = vector.broadcast %10 : vector<1x8xf32> to vector<8x8xf32>
    %12 = arith.addf %8, %11 : vector<8x8xf32>
    %13 = vector.extract_strided_slice %7 {offsets = [0, 0], sizes = [8, 128], strides = [1, 1]} : vector<8x768xbf16> to vector<8x128xbf16>
    %14 = vector.extract_strided_slice %7 {offsets = [0, 256], sizes = [8, 128], strides = [1, 1]} : vector<8x768xbf16> to vector<8x128xbf16>
    %15 = vector.extract_strided_slice %7 {offsets = [0, 512], sizes = [8, 128], strides = [1, 1]} : vector<8x768xbf16> to vector<8x128xbf16>
    %cst_11 = arith.constant dense<0.000000e+00> : vector<8x8xf32>
    %16 = tpu.matmul %13, %14, %cst_11 {dimension_numbers = #tpu.dot_dimension_numbers<[1], [1], [0], [0], [0, 0, 1, 0], [], []>} : vector<8x128xbf16>, vector<8x128xbf16>, vector<8x8xf32> -> vector<8x8xf32>
    %17 = arith.addf %16, %12 : vector<8x8xf32>
    %cst_12 = arith.constant dense<0xFF800000> : vector<8xf32>
    %18 = vector.multi_reduction <maximumf>, %17, %cst_12 [1] : vector<8x8xf32> to vector<8xf32>
    %19 = vector.shape_cast %18 : vector<8xf32> to vector<8x1xf32>
    %20 = vector.broadcast %19 : vector<8x1xf32> to vector<8x8xf32>
    %21 = arith.subf %17, %20 : vector<8x8xf32>
    %22 = math.exp %21 : vector<8x8xf32>
    %cst_13 = arith.constant dense<0.000000e+00> : vector<8xf32>
    %23 = vector.multi_reduction <add>, %22, %cst_13 [1] : vector<8x8xf32> to vector<8xf32>
    %24 = vector.shape_cast %23 : vector<8xf32> to vector<8x1xf32>
    %25 = vector.broadcast %24 : vector<8x1xf32> to vector<8x8xf32>
    %26 = arith.divf %22, %25 : vector<8x8xf32>
    %27 = arith.truncf %26 : vector<8x8xf32> to vector<8x8xbf16>
    %cst_14 = arith.constant dense<0.000000e+00> : vector<8x128xf32>
    %28 = tpu.matmul %27, %15, %cst_14 {dimension_numbers = #tpu.dot_dimension_numbers<[1], [0], [0], [1], [0, 0, 1, 1], [], []>} : vector<8x8xbf16>, vector<8x128xbf16>, vector<8x128xf32> -> vector<8x128xf32>
    %29 = arith.truncf %28 : vector<8x128xf32> to vector<8x128xbf16>
    %c0_15 = arith.constant 0 : index
    %c0_16 = arith.constant 0 : index
    %30 = vector.load %arg17[%c0_15, %c0_16] : memref<8x256xbf16, #tpu.memory_space<vmem>>, vector<8x128xbf16>
    tpu.vector_store %arg17[%c0_15, %c0_16], %29 {strides = array<i32>} : memref<8x256xbf16, #tpu.memory_space<vmem>>, vector<8x128xbf16>,
    %31 = vector.extract_strided_slice %7 {offsets = [0, 128], sizes = [8, 128], strides = [1, 1]} : vector<8x768xbf16> to vector<8x128xbf16>
    %32 = vector.extract_strided_slice %7 {offsets = [0, 384], sizes = [8, 128], strides = [1, 1]} : vector<8x768xbf16> to vector<8x128xbf16>
    %33 = vector.extract_strided_slice %7 {offsets = [0, 640], sizes = [8, 128], strides = [1, 1]} : vector<8x768xbf16> to vector<8x128xbf16>
    %cst_17 = arith.constant dense<0.000000e+00> : vector<8x8xf32>
    %34 = tpu.matmul %31, %32, %cst_17 {dimension_numbers = #tpu.dot_dimension_numbers<[1], [1], [0], [0], [0, 0, 1, 0], [], []>} : vector<8x128xbf16>, vector<8x128xbf16>, vector<8x8xf32> -> vector<8x8xf32>
    %35 = arith.addf %34, %12 : vector<8x8xf32>
    %cst_18 = arith.constant dense<0xFF800000> : vector<8xf32>
    %36 = vector.multi_reduction <maximumf>, %35, %cst_18 [1] : vector<8x8xf32> to vector<8xf32>
    %37 = vector.shape_cast %36 : vector<8xf32> to vector<8x1xf32>
    %38 = vector.broadcast %37 : vector<8x1xf32> to vector<8x8xf32>
    %39 = arith.subf %35, %38 : vector<8x8xf32>
    %40 = math.exp %39 : vector<8x8xf32>
    %cst_19 = arith.constant dense<0.000000e+00> : vector<8xf32>
    %41 = vector.multi_reduction <add>, %40, %cst_19 [1] : vector<8x8xf32> to vector<8xf32>
    %42 = vector.shape_cast %41 : vector<8xf32> to vector<8x1xf32>
    %43 = vector.broadcast %42 : vector<8x1xf32> to vector<8x8xf32>
    %44 = arith.divf %40, %43 : vector<8x8xf32>
    %45 = arith.truncf %44 : vector<8x8xf32> to vector<8x8xbf16>
    %cst_20 = arith.constant dense<0.000000e+00> : vector<8x128xf32>
    %46 = tpu.matmul %45, %33, %cst_20 {dimension_numbers = #tpu.dot_dimension_numbers<[1], [0], [0], [1], [0, 0, 1, 1], [], []>} : vector<8x8xbf16>, vector<8x128xbf16>, vector<8x128xf32> -> vector<8x128xf32>
    %47 = arith.truncf %46 : vector<8x128xf32> to vector<8x128xbf16>
    %c0_21 = arith.constant 0 : index
    %c128 = arith.constant 128 : index
    %48 = vector.load %arg17[%c0_21, %c128] : memref<8x256xbf16, #tpu.memory_space<vmem>>, vector<8x128xbf16>
    tpu.vector_store %arg17[%c0_21, %c128], %47 {strides = array<i32>} : memref<8x256xbf16, #tpu.memory_space<vmem>>, vector<8x128xbf16>,
    %c0_22 = arith.constant 0 : index
    %c0_23 = arith.constant 0 : index
    %49 = vector.load %arg17[%c0_22, %c0_23] : memref<8x256xbf16, #tpu.memory_space<vmem>>, vector<8x256xbf16>
    %c0_24 = arith.constant 0 : index
    %c0_25 = arith.constant 0 : index
    %50 = vector.load %arg6[%c0_24, %c0_25] : memref<256x256xbf16, #tpu.memory_space<vmem>>, vector<256x256xbf16>
    %cst_26 = arith.constant dense<0.000000e+00> : vector<8x256xf32>
    %51 = tpu.matmul %49, %50, %cst_26 {dimension_numbers = #tpu.dot_dimension_numbers<[1], [0], [0], [1], [0, 0, 1, 1], [], []>} : vector<8x256xbf16>, vector<256x256xbf16>, vector<8x256xf32> -> vector<8x256xf32>
    %c0_27 = arith.constant 0 : index
    %c0_28 = arith.constant 0 : index
    %52 = vector.load %arg7[%c0_27, %c0_28] : memref<1x256xf32, #tpu.memory_space<vmem>>, vector<1x256xf32>
    %53 = vector.broadcast %52 : vector<1x256xf32> to vector<8x256xf32>
    %54 = arith.addf %51, %53 : vector<8x256xf32>
    %55 = arith.extf %1 : vector<8x256xbf16> to vector<8x256xf32>
    %56 = arith.addf %54, %55 : vector<8x256xf32>
    %c0_29 = arith.constant 0 : index
    %c0_30 = arith.constant 0 : index
    %57 = vector.load %arg8[%c0_29, %c0_30] : memref<1x256xf32, #tpu.memory_space<vmem>>, vector<1x256xf32>
    %c0_31 = arith.constant 0 : index
    %c0_32 = arith.constant 0 : index
    %58 = vector.load %arg9[%c0_31, %c0_32] : memref<1x256xf32, #tpu.memory_space<vmem>>, vector<1x256xf32>
    %cst_33 = arith.constant dense<0.000000e+00> : vector<8xf32>
    %59 = vector.multi_reduction <add>, %56, %cst_33 [1] : vector<8x256xf32> to vector<8xf32>
    %60 = vector.shape_cast %59 : vector<8xf32> to vector<8x1xf32>
    %cst_34 = arith.constant 3.906250e-03 : f32
    %61 = vector.broadcast %cst_34 : f32 to vector<8x1xf32>
    %62 = arith.mulf %60, %61 : vector<8x1xf32>
    %63 = vector.broadcast %62 : vector<8x1xf32> to vector<8x256xf32>
    %64 = arith.subf %56, %63 : vector<8x256xf32>
    %65 = arith.mulf %64, %64 : vector<8x256xf32>
    %cst_35 = arith.constant dense<0.000000e+00> : vector<8xf32>
    %66 = vector.multi_reduction <add>, %65, %cst_35 [1] : vector<8x256xf32> to vector<8xf32>
    %67 = vector.shape_cast %66 : vector<8xf32> to vector<8x1xf32>
    %cst_36 = arith.constant 3.906250e-03 : f32
    %68 = vector.broadcast %cst_36 : f32 to vector<8x1xf32>
    %69 = arith.mulf %67, %68 : vector<8x1xf32>
    %cst_37 = arith.constant 9.99999974E-6 : f32
    %70 = vector.broadcast %cst_37 : f32 to vector<8x1xf32>
    %71 = arith.addf %69, %70 : vector<8x1xf32>
    %72 = math.rsqrt %71 : vector<8x1xf32>
    %73 = vector.broadcast %72 : vector<8x1xf32> to vector<8x256xf32>
    %74 = arith.mulf %64, %73 : vector<8x256xf32>
    %75 = vector.broadcast %57 : vector<1x256xf32> to vector<8x256xf32>
    %76 = arith.mulf %74, %75 : vector<8x256xf32>
    %77 = vector.broadcast %58 : vector<1x256xf32> to vector<8x256xf32>
    %78 = arith.addf %76, %77 : vector<8x256xf32>
    %79 = arith.truncf %78 : vector<8x256xf32> to vector<8x256xbf16>
    %c0_38 = arith.constant 0 : index
    %c0_39 = arith.constant 0 : index
    %80 = vector.load %arg10[%c0_38, %c0_39] : memref<256x512xbf16, #tpu.memory_space<vmem>>, vector<256x512xbf16>
    %cst_40 = arith.constant dense<0.000000e+00> : vector<8x512xf32>
    %81 = tpu.matmul %79, %80, %cst_40 {dimension_numbers = #tpu.dot_dimension_numbers<[1], [0], [0], [1], [0, 0, 1, 1], [], []>} : vector<8x256xbf16>, vector<256x512xbf16>, vector<8x512xf32> -> vector<8x512xf32>
    %c0_41 = arith.constant 0 : index
    %c0_42 = arith.constant 0 : index
    %82 = vector.load %arg11[%c0_41, %c0_42] : memref<1x512xf32, #tpu.memory_space<vmem>>, vector<1x512xf32>
    %83 = vector.broadcast %82 : vector<1x512xf32> to vector<8x512xf32>
    %84 = arith.addf %81, %83 : vector<8x512xf32>
    %cst_43 = arith.constant 0.000000e+00 : f32
    %85 = vector.broadcast %cst_43 : f32 to vector<8x512xf32>
    %86 = arith.maximumf %84, %85 : vector<8x512xf32>
    %87 = arith.truncf %86 : vector<8x512xf32> to vector<8x512xbf16>
    %c0_44 = arith.constant 0 : index
    %c0_45 = arith.constant 0 : index
    %88 = vector.load %arg12[%c0_44, %c0_45] : memref<512x256xbf16, #tpu.memory_space<vmem>>, vector<512x256xbf16>
    %cst_46 = arith.constant dense<0.000000e+00> : vector<8x256xf32>
    %89 = tpu.matmul %87, %88, %cst_46 {dimension_numbers = #tpu.dot_dimension_numbers<[1], [0], [0], [1], [0, 0, 1, 1], [], []>} : vector<8x512xbf16>, vector<512x256xbf16>, vector<8x256xf32> -> vector<8x256xf32>
    %c0_47 = arith.constant 0 : index
    %c0_48 = arith.constant 0 : index
    %90 = vector.load %arg13[%c0_47, %c0_48] : memref<1x256xf32, #tpu.memory_space<vmem>>, vector<1x256xf32>
    %91 = vector.broadcast %90 : vector<1x256xf32> to vector<8x256xf32>
    %92 = arith.addf %89, %91 : vector<8x256xf32>
    %93 = arith.addf %92, %78 : vector<8x256xf32>
    %c0_49 = arith.constant 0 : index
    %c0_50 = arith.constant 0 : index
    %94 = vector.load %arg14[%c0_49, %c0_50] : memref<1x256xf32, #tpu.memory_space<vmem>>, vector<1x256xf32>
    %c0_51 = arith.constant 0 : index
    %c0_52 = arith.constant 0 : index
    %95 = vector.load %arg15[%c0_51, %c0_52] : memref<1x256xf32, #tpu.memory_space<vmem>>, vector<1x256xf32>
    %cst_53 = arith.constant dense<0.000000e+00> : vector<8xf32>
    %96 = vector.multi_reduction <add>, %93, %cst_53 [1] : vector<8x256xf32> to vector<8xf32>
    %97 = vector.shape_cast %96 : vector<8xf32> to vector<8x1xf32>
    %cst_54 = arith.constant 3.906250e-03 : f32
    %98 = vector.broadcast %cst_54 : f32 to vector<8x1xf32>
    %99 = arith.mulf %97, %98 : vector<8x1xf32>
    %100 = vector.broadcast %99 : vector<8x1xf32> to vector<8x256xf32>
    %101 = arith.subf %93, %100 : vector<8x256xf32>
    %102 = arith.mulf %101, %101 : vector<8x256xf32>
    %cst_55 = arith.constant dense<0.000000e+00> : vector<8xf32>
    %103 = vector.multi_reduction <add>, %102, %cst_55 [1] : vector<8x256xf32> to vector<8xf32>
    %104 = vector.shape_cast %103 : vector<8xf32> to vector<8x1xf32>
    %cst_56 = arith.constant 3.906250e-03 : f32
    %105 = vector.broadcast %cst_56 : f32 to vector<8x1xf32>
    %106 = arith.mulf %104, %105 : vector<8x1xf32>
    %cst_57 = arith.constant 9.99999974E-6 : f32
    %107 = vector.broadcast %cst_57 : f32 to vector<8x1xf32>
    %108 = arith.addf %106, %107 : vector<8x1xf32>
    %109 = math.rsqrt %108 : vector<8x1xf32>
    %110 = vector.broadcast %109 : vector<8x1xf32> to vector<8x256xf32>
    %111 = arith.mulf %101, %110 : vector<8x256xf32>
    %112 = vector.broadcast %94 : vector<1x256xf32> to vector<8x256xf32>
    %113 = arith.mulf %111, %112 : vector<8x256xf32>
    %114 = vector.broadcast %95 : vector<1x256xf32> to vector<8x256xf32>
    %115 = arith.addf %113, %114 : vector<8x256xf32>
    %116 = arith.truncf %115 : vector<8x256xf32> to vector<8x256xbf16>
    %c0_58 = arith.constant 0 : index
    %c0_59 = arith.constant 0 : index
    %c0_60 = arith.constant 0 : index
    %117 = vector.load %arg16[%c0_58, %c0_59, %c0_60] : memref<1x8x256xbf16, #tpu.memory_space<vmem>>, vector<1x8x256xbf16>
    %118 = vector.shape_cast %117 : vector<1x8x256xbf16> to vector<8x256xbf16>
    %119 = vector.shape_cast %116 : vector<8x256xbf16> to vector<1x8x256xbf16>
    tpu.vector_store %arg16[%c0_58, %c0_59, %c0_60], %119 {strides = array<i32>} : memref<1x8x256xbf16, #tpu.memory_space<vmem>>, vector<1x8x256xbf16>,
    return
  }
  func.func @transform_0(%arg0: i32) -> (i32, i32, i32) {
    %c0_i32 = arith.constant 0 : i32
    %c0_i32_0 = arith.constant 0 : i32
    %c0_i32_1 = arith.constant 0 : i32
    return %arg0, %c0_i32, %c0_i32_0 : i32, i32, i32
  }
  func.func @transform_1(%arg0: i32) -> (i32, i32) {
    %c0_i32 = arith.constant 0 : i32
    %c0_i32_0 = arith.constant 0 : i32
    %c0_i32_1 = arith.constant 0 : i32
    return %c0_i32, %c0_i32_0 : i32, i32
  }
  func.func @transform_2(%arg0: i32) -> (i32, i32, i32) {
    %c0_i32 = arith.constant 0 : i32
    %c0_i32_0 = arith.constant 0 : i32
    %c0_i32_1 = arith.constant 0 : i32
    return %arg0, %c0_i32, %c0_i32_0 : i32, i32, i32
  }
  func.func @transform_3(%arg0: i32) -> (i32, i32) {
    %c0_i32 = arith.constant 0 : i32
    %c0_i32_0 = arith.constant 0 : i32
    %c0_i32_1 = arith.constant 0 : i32
    return %c0_i32, %c0_i32_0 : i32, i32
  }
  func.func @transform_4(%arg0: i32) -> (i32, i32) {
    %c0_i32 = arith.constant 0 : i32
    %c0_i32_0 = arith.constant 0 : i32
    %c0_i32_1 = arith.constant 0 : i32
    return %c0_i32, %c0_i32_0 : i32, i32
  }
  func.func @transform_5(%arg0: i32) -> (i32, i32) {
    %c0_i32 = arith.constant 0 : i32
    %c0_i32_0 = arith.constant 0 : i32
    %c0_i32_1 = arith.constant 0 : i32
    return %c0_i32, %c0_i32_0 : i32, i32
  }
  func.func @transform_6(%arg0: i32) -> (i32, i32) {
    %c0_i32 = arith.constant 0 : i32
    %c0_i32_0 = arith.constant 0 : i32
    %c0_i32_1 = arith.constant 0 : i32
    return %c0_i32, %c0_i32_0 : i32, i32
  }
  func.func @transform_7(%arg0: i32) -> (i32, i32) {
    %c0_i32 = arith.constant 0 : i32
    %c0_i32_0 = arith.constant 0 : i32
    %c0_i32_1 = arith.constant 0 : i32
    return %c0_i32, %c0_i32_0 : i32, i32
  }
  func.func @transform_8(%arg0: i32) -> (i32, i32) {
    %c0_i32 = arith.constant 0 : i32
    %c0_i32_0 = arith.constant 0 : i32
    %c0_i32_1 = arith.constant 0 : i32
    return %c0_i32, %c0_i32_0 : i32, i32
  }
  func.func @transform_9(%arg0: i32) -> (i32, i32) {
    %c0_i32 = arith.constant 0 : i32
    %c0_i32_0 = arith.constant 0 : i32
    %c0_i32_1 = arith.constant 0 : i32
    return %c0_i32, %c0_i32_0 : i32, i32
  }
  func.func @transform_10(%arg0: i32) -> (i32, i32) {
    %c0_i32 = arith.constant 0 : i32
    %c0_i32_0 = arith.constant 0 : i32
    %c0_i32_1 = arith.constant 0 : i32
    return %c0_i32, %c0_i32_0 : i32, i32
  }
  func.func @transform_11(%arg0: i32) -> (i32, i32) {
    %c0_i32 = arith.constant 0 : i32
    %c0_i32_0 = arith.constant 0 : i32
    %c0_i32_1 = arith.constant 0 : i32
    return %c0_i32, %c0_i32_0 : i32, i32
  }
  func.func @transform_12(%arg0: i32) -> (i32, i32) {
    %c0_i32 = arith.constant 0 : i32
    %c0_i32_0 = arith.constant 0 : i32
    %c0_i32_1 = arith.constant 0 : i32
    return %c0_i32, %c0_i32_0 : i32, i32
  }
  func.func @transform_13(%arg0: i32) -> (i32, i32) {
    %c0_i32 = arith.constant 0 : i32
    %c0_i32_0 = arith.constant 0 : i32
    %c0_i32_1 = arith.constant 0 : i32
    return %c0_i32, %c0_i32_0 : i32, i32
  }
  func.func @transform_14(%arg0: i32) -> (i32, i32) {
    %c0_i32 = arith.constant 0 : i32
    %c0_i32_0 = arith.constant 0 : i32
    %c0_i32_1 = arith.constant 0 : i32
    return %c0_i32, %c0_i32_0 : i32, i32
  }
  func.func @transform_15(%arg0: i32) -> (i32, i32, i32) {
    %c0_i32 = arith.constant 0 : i32
    %c0_i32_0 = arith.constant 0 : i32
    %c0_i32_1 = arith.constant 0 : i32
    return %arg0, %c0_i32, %c0_i32_0 : i32, i32, i32
  }
}

module attributes {stable_mosaic.version = 11 : i64} {
  func.func @_matmul_kernel(%arg0: i32, %arg1: i32, %arg2: i32, %arg3: memref<16x256xbf16, #tpu.memory_space<vmem>>, %arg4: memref<256x128xbf16, #tpu.memory_space<vmem>>, %arg5: memref<1x128xf32, #tpu.memory_space<vmem>>, %arg6: memref<16x128xf32, #tpu.memory_space<vmem>>, %arg7: memref<16x128xf32, #tpu.memory_space<vmem>>) attributes {dimension_semantics = [#tpu.dimension_semantics<parallel>, #tpu.dimension_semantics<parallel>, #tpu.dimension_semantics<arbitrary>], iteration_bounds = array<i64: 1, 1, 1>, scalar_prefetch = 0 : i64, scratch_operands = 1 : i64, tpu.core_type = #tpu.core_type<tc>, window_params = [{transform_indices = @transform_0, window_bounds = array<i64: 16, 256>}, {transform_indices = @transform_1, window_bounds = array<i64: 256, 128>}, {transform_indices = @transform_2, window_bounds = array<i64: 1, 128>}, {transform_indices = @transform_3, window_bounds = array<i64: 16, 128>}]} {
    %c0_i32 = arith.constant 0 : i32
    %0 = arith.cmpi eq, %arg2, %c0_i32 : i32
    %1 = arith.extui %0 : i1 to i32
    %c0_i32_0 = arith.constant 0 : i32
    %2 = arith.cmpi ne, %1, %c0_i32_0 : i32
    scf.if %2 {
      %cst_10 = arith.constant 0.000000e+00 : f32
      %12 = vector.broadcast %cst_10 : f32 to vector<16x128xf32>
      %c0_11 = arith.constant 0 : index
      %c0_12 = arith.constant 0 : index
      %13 = vector.load %arg7[%c0_11, %c0_12] : memref<16x128xf32, #tpu.memory_space<vmem>>, vector<16x128xf32>
      tpu.vector_store %arg7[%c0_11, %c0_12], %12 {strides = array<i32>} : memref<16x128xf32, #tpu.memory_space<vmem>>, vector<16x128xf32>,
    } else {
    }
    %c0 = arith.constant 0 : index
    %c0_1 = arith.constant 0 : index
    %3 = vector.load %arg7[%c0, %c0_1] : memref<16x128xf32, #tpu.memory_space<vmem>>, vector<16x128xf32>
    %c0_2 = arith.constant 0 : index
    %c0_3 = arith.constant 0 : index
    %4 = vector.load %arg3[%c0_2, %c0_3] : memref<16x256xbf16, #tpu.memory_space<vmem>>, vector<16x256xbf16>
    %c0_4 = arith.constant 0 : index
    %c0_5 = arith.constant 0 : index
    %5 = vector.load %arg4[%c0_4, %c0_5] : memref<256x128xbf16, #tpu.memory_space<vmem>>, vector<256x128xbf16>
    %cst = arith.constant dense<0.000000e+00> : vector<16x128xf32>
    %6 = tpu.matmul %4, %5, %cst {dimension_numbers = #tpu.dot_dimension_numbers<[1], [0], [0], [1], [0, 0, 1, 1], [], []>} : vector<16x256xbf16>, vector<256x128xbf16>, vector<16x128xf32> -> vector<16x128xf32>
    %7 = arith.addf %3, %6 : vector<16x128xf32>
    %c0_6 = arith.constant 0 : index
    %c0_7 = arith.constant 0 : index
    %8 = vector.load %arg7[%c0_6, %c0_7] : memref<16x128xf32, #tpu.memory_space<vmem>>, vector<16x128xf32>
    tpu.vector_store %arg7[%c0_6, %c0_7], %7 {strides = array<i32>} : memref<16x128xf32, #tpu.memory_space<vmem>>, vector<16x128xf32>,
    %c0_i32_8 = arith.constant 0 : i32
    %9 = arith.cmpi eq, %arg2, %c0_i32_8 : i32
    %10 = arith.extui %9 : i1 to i32
    %c0_i32_9 = arith.constant 0 : i32
    %11 = arith.cmpi ne, %10, %c0_i32_9 : i32
    scf.if %11 {
      %c0_10 = arith.constant 0 : index
      %c0_11 = arith.constant 0 : index
      %12 = vector.load %arg7[%c0_10, %c0_11] : memref<16x128xf32, #tpu.memory_space<vmem>>, vector<16x128xf32>
      %c0_12 = arith.constant 0 : index
      %c0_13 = arith.constant 0 : index
      %13 = vector.load %arg5[%c0_12, %c0_13] : memref<1x128xf32, #tpu.memory_space<vmem>>, vector<1x128xf32>
      %14 = vector.broadcast %13 : vector<1x128xf32> to vector<16x128xf32>
      %15 = arith.addf %12, %14 : vector<16x128xf32>
      %c0_14 = arith.constant 0 : index
      %c0_15 = arith.constant 0 : index
      %16 = vector.load %arg6[%c0_14, %c0_15] : memref<16x128xf32, #tpu.memory_space<vmem>>, vector<16x128xf32>
      tpu.vector_store %arg6[%c0_14, %c0_15], %15 {strides = array<i32>} : memref<16x128xf32, #tpu.memory_space<vmem>>, vector<16x128xf32>,
    } else {
    }
    return
  }
  func.func @transform_0(%arg0: i32, %arg1: i32, %arg2: i32) -> (i32, i32) {
    %c0_i32 = arith.constant 0 : i32
    return %arg0, %arg2 : i32, i32
  }
  func.func @transform_1(%arg0: i32, %arg1: i32, %arg2: i32) -> (i32, i32) {
    %c0_i32 = arith.constant 0 : i32
    return %arg2, %arg1 : i32, i32
  }
  func.func @transform_2(%arg0: i32, %arg1: i32, %arg2: i32) -> (i32, i32) {
    %c0_i32 = arith.constant 0 : i32
    %c0_i32_0 = arith.constant 0 : i32
    return %c0_i32, %arg1 : i32, i32
  }
  func.func @transform_3(%arg0: i32, %arg1: i32, %arg2: i32) -> (i32, i32) {
    %c0_i32 = arith.constant 0 : i32
    return %arg0, %arg1 : i32, i32
  }
}

</mosaic_0001>

<llo_original>
// kernel: transformer_encoder_model.5
$region0: #{transformer_encoder_model.5}
  #allocation0 [shape = 'u32[]', space=smem, size = 0x4, offset = 0x4, fixed_abs, tag = 'smem constant byte address 0x4 - core index']
  #allocation1 [shape = 'u32[72,128]{1,0:T(1,128)}', space=vmem, size = 0x9000, scoped, tag = 'internal scratch']
  #allocation2 [shape = 'f32[16,128]{1,0:T(8,128)}', space=vmem, size = 0x2000, scoped, tag = 'scratch operand']
  %s0 = inlined_call_operand.vmem [shape: bf16[16,256], index: 0, kind: input, shape index: {}]
  %s1 = inlined_call_operand.hbm [shape: bf16[256,128], index: 1, kind: input, shape index: {}]
  %s2 = inlined_call_operand.vmem [shape: f32[1,128], index: 2, kind: input, shape index: {}]
  %s3 = inlined_call_operand.hbm [shape: f32[16,128], index: 3, kind: output, shape index: {}]
  %s4 = sld [smem:[#allocation0]]
  $region34: #{transformer_encoder_model.5} parent=0
    _
  %s6 = ssub.s32 1, %s4
  %s7 = scalar_select 0, %s6, %s4
  $region1: #{transformer_encoder_model.5} parent=0
    #allocation3 [shape = 'u8[65536]{0}', space=vmem, size = 0x10000, scoped, tag = 'input window, operand 1, single buffered']
    #allocation4 [shape = 's32[1]{0}', space=sflag, size = 0x4, scoped, tag = 'scoped memory for transformer_encoder_model.5']
    #allocation5 [shape = 's32[1]{0}', space=sflag, size = 0x4, scoped, tag = 'scoped memory for transformer_encoder_model.5']
    #allocation6 [shape = 'u8[8192]{0}', space=vmem, size = 0x2000, scoped, tag = 'output window, operand 0, single buffered']
    %8 = vsyncpa [#allocation4], 0
    %9 = vsyncpa [#allocation5], 0
    // Predicated region
    $region2: #{transformer_encoder_model.5} parent=1 // pred_check
      _
    $region3: #{transformer_encoder_model.5} parent=1 // pred_check_branch
      %11 = sbr.rel (0) target = $region5
    $region4: #{transformer_encoder_model.5} parent=1 // pred_region
      _
    $region5: #{transformer_encoder_model.5} parent=1 // pred_fallthru
      _
    // Predicated region
    $region6: #{transformer_encoder_model.5} parent=1 // pred_check
      _
    $region7: #{transformer_encoder_model.5} parent=1 // pred_check_branch
      %13 = sbr.rel (0) target = $region9
    $region8: #{transformer_encoder_model.5} parent=1 // pred_region
      %15 = vsyncadd [#allocation4], 0
      %s16 = sshll.u32 %s1, 4
      %s17 = int_to_ptr.hbm [resolvable:$true] %s16
      %s18 = sshll.u32 [#allocation3], 4
      %s19 = int_to_ptr.vmem [resolvable:$true] %s18
      %24 = dma.hbm_to_vmem [thread:$0]  %s17, 2048, %s19, [#allocation4], 64, 64, 4
    $region9: #{transformer_encoder_model.5} parent=1 // pred_fallthru
      _
    // Predicated region
    $region10: #{transformer_encoder_model.5} parent=1 // pred_check
      _
    $region11: #{transformer_encoder_model.5} parent=1 // pred_check_branch
      %26 = sbr.rel (0) target = $region13
    $region12: #{transformer_encoder_model.5} parent=1 // pred_region
      _
    $region13: #{transformer_encoder_model.5} parent=1 // pred_fallthru
      _
    // Predicated region
    $region14: #{transformer_encoder_model.5} parent=1 // pred_check
      _
    $region15: #{transformer_encoder_model.5} parent=1 // pred_check_branch
      %28 = sbr.rel (0) target = $region17
    $region16: #{transformer_encoder_model.5} parent=1 // pred_region
      %30 = dma.done [#allocation4], 2048
    $region17: #{transformer_encoder_model.5} parent=1 // pred_fallthru
      _
    %p31 = scmp.eq.s32.totalorder 0, 0
    // Predicated region
    $region18: #{transformer_encoder_model.5} parent=1 // pred_check
      %p32 = pneg %p31
    $region19: #{transformer_encoder_model.5} parent=1 // pred_check_branch
      %34 = sbr.rel (%p32) target = $region21
    $region20: #{transformer_encoder_model.5} parent=1 // pred_region
      %35 = vst [vmem:[#allocation2] sm:$0xff] 0.0
      %36 = vst [vmem:[#allocation2 + $0x8] sm:$0xff] 0.0
    $region21: #{transformer_encoder_model.5} parent=1 // pred_fallthru
      _
    %v37 = vld [vmem:[#allocation2] sm:$0xff]
    %v38 = vld [vmem:[#allocation2 + $0x8] sm:$0xff]
    %v39 = vld [vmem:[%s0] sm:$0xff]
    %v40 = vld [vmem:[%s0 + $0x8] sm:$0xff]
    %v41 = vld [vmem:[#allocation3] sm:$0xf]
    %v42 = vld [vmem:[#allocation3 + $0x4] sm:$0xf]
    %v43 = vld [vmem:[#allocation3 + $0x8] sm:$0xf]
    %v44 = vld [vmem:[#allocation3 + $0xc] sm:$0xf]
    %v45 = vld [vmem:[#allocation3 + $0x10] sm:$0xf]
    %v46 = vld [vmem:[#allocation3 + $0x14] sm:$0xf]
    %v47 = vld [vmem:[#allocation3 + $0x18] sm:$0xf]
    %v48 = vld [vmem:[#allocation3 + $0x1c] sm:$0xf]
    %v49 = vld [vmem:[#allocation3 + $0x20] sm:$0xf]
    %v50 = vld [vmem:[#allocation3 + $0x24] sm:$0xf]
    %v51 = vld [vmem:[#allocation3 + $0x28] sm:$0xf]
    %v52 = vld [vmem:[#allocation3 + $0x2c] sm:$0xf]
    %v53 = vld [vmem:[#allocation3 + $0x30] sm:$0xf]
    %v54 = vld [vmem:[#allocation3 + $0x34] sm:$0xf]
    %v55 = vld [vmem:[#allocation3 + $0x38] sm:$0xf]
    %v56 = vld [vmem:[#allocation3 + $0x3c] sm:$0xf]
    %v57 = vld [vmem:[#allocation3 + $0x40] sm:$0xf]
    %v58 = vld [vmem:[#allocation3 + $0x44] sm:$0xf]
    %v59 = vld [vmem:[#allocation3 + $0x48] sm:$0xf]
    %v60 = vld [vmem:[#allocation3 + $0x4c] sm:$0xf]
    %v61 = vld [vmem:[#allocation3 + $0x50] sm:$0xf]
    %v62 = vld [vmem:[#allocation3 + $0x54] sm:$0xf]
    %v63 = vld [vmem:[#allocation3 + $0x58] sm:$0xf]
    %v64 = vld [vmem:[#allocation3 + $0x5c] sm:$0xf]
    %v65 = vld [vmem:[#allocation3 + $0x60] sm:$0xf]
    %v66 = vld [vmem:[#allocation3 + $0x64] sm:$0xf]
    %v67 = vld [vmem:[#allocation3 + $0x68] sm:$0xf]
    %v68 = vld [vmem:[#allocation3 + $0x6c] sm:$0xf]
    %v69 = vld [vmem:[#allocation3 + $0x70] sm:$0xf]
    %v70 = vld [vmem:[#allocation3 + $0x74] sm:$0xf]
    %v71 = vld [vmem:[#allocation3 + $0x78] sm:$0xf]
    %v72 = vld [vmem:[#allocation3 + $0x7c] sm:$0xf]
    %v75 = vunpack.c.l.b16 %v39
    %v76 = vunpack.c.h.b16 %v39
    %v77 = vunpack.c.l.b16 %v40
    %v78 = vunpack.c.h.b16 %v40
    %v79 = vpack.c.b16 %v77, %v75
    %v80 = vpack.c.b16 %v78, %v76
    %v115 = vunpack.c.l.b16 %v41
    %v116 = vunpack.c.l.b16 %v42
    %v117 = vunpack.c.l.b16 %v43
    %v118 = vunpack.c.l.b16 %v44
    %v119 = vunpack.c.l.b16 %v45
    %v120 = vunpack.c.l.b16 %v46
    %v121 = vunpack.c.l.b16 %v47
    %v122 = vunpack.c.l.b16 %v48
    %v123 = vunpack.c.l.b16 %v49
    %v124 = vunpack.c.l.b16 %v50
    %v125 = vunpack.c.l.b16 %v51
    %v126 = vunpack.c.l.b16 %v52
    %v127 = vunpack.c.l.b16 %v53
    %v128 = vunpack.c.l.b16 %v54
    %v129 = vunpack.c.l.b16 %v55
    %v130 = vunpack.c.l.b16 %v56
    %v131 = vunpack.c.l.b16 %v57
    %v132 = vunpack.c.l.b16 %v58
    %v133 = vunpack.c.l.b16 %v59
    %v134 = vunpack.c.l.b16 %v60
    %v135 = vunpack.c.l.b16 %v61
    %v136 = vunpack.c.l.b16 %v62
    %v137 = vunpack.c.l.b16 %v63
    %v138 = vunpack.c.l.b16 %v64
    %v139 = vunpack.c.l.b16 %v65
    %v140 = vunpack.c.l.b16 %v66
    %v141 = vunpack.c.l.b16 %v67
    %v142 = vunpack.c.l.b16 %v68
    %v143 = vunpack.c.l.b16 %v69
    %v144 = vunpack.c.l.b16 %v70
    %v145 = vunpack.c.l.b16 %v71
    %v146 = vunpack.c.l.b16 %v72
    %v147 = vpack.c.b16 %v116, %v115
    %v148 = vpack.c.b16 %v118, %v117
    %v149 = vpack.c.b16 %v120, %v119
    %v150 = vpack.c.b16 %v122, %v121
    %v151 = vpack.c.b16 %v124, %v123
    %v152 = vpack.c.b16 %v126, %v125
    %v153 = vpack.c.b16 %v128, %v127
    %v154 = vpack.c.b16 %v130, %v129
    %v155 = vpack.c.b16 %v132, %v131
    %v156 = vpack.c.b16 %v134, %v133
    %v157 = vpack.c.b16 %v136, %v135
    %v158 = vpack.c.b16 %v138, %v137
    %v159 = vpack.c.b16 %v140, %v139
    %v160 = vpack.c.b16 %v142, %v141
    %v161 = vpack.c.b16 %v144, %v143
    %v162 = vpack.c.b16 %v146, %v145
    %179 = vmatpush.bf16.msra.mxu0 %v154
    %180 = vmatpush.bf16.msra.mxu0 %v153
    %181 = vmatpush.bf16.msra.mxu0 %v152
    %182 = vmatpush.bf16.msra.mxu0 %v151
    %183 = vmatpush.bf16.msra.mxu0 %v150
    %184 = vmatpush.bf16.msra.mxu0 %v149
    %185 = vmatpush.bf16.msra.mxu0 %v148
    %186 = vmatpush.bf16.msra.mxu0 %v147
    %187 = vmatmul.bf16.gmra.mxu0 %v79
    %v188 = vpop.f32.mrf.mxu0
    %v189 = vadd.f32 0.0, %v188
    %v190 = vpop.f32.mrf.mxu0
    %v191 = vadd.f32 0.0, %v190
    %192 = vdwg.mxu0
    %193 = vmatpush.bf16.msra.mxu0 %v162
    %194 = vmatpush.bf16.msra.mxu0 %v161
    %195 = vmatpush.bf16.msra.mxu0 %v160
    %196 = vmatpush.bf16.msra.mxu0 %v159
    %197 = vmatpush.bf16.msra.mxu0 %v158
    %198 = vmatpush.bf16.msra.mxu0 %v157
    %199 = vmatpush.bf16.msra.mxu0 %v156
    %200 = vmatpush.bf16.msra.mxu0 %v155
    %201 = vmatmul.bf16.gmra.mxu0 %v80
    %v202 = vpop.f32.mrf.mxu0
    %v203 = vadd.f32 %v189, %v202
    %v204 = vpop.f32.mrf.mxu0
    %v205 = vadd.f32 %v191, %v204
    %206 = vdwg.mxu0
    %v207 = vadd.f32 %v37, %v203
    %v208 = vadd.f32 %v38, %v205
    %209 = vst [vmem:[#allocation2] sm:$0xff] %v207
    %210 = vst [vmem:[#allocation2 + $0x8] sm:$0xff] %v208
    // Predicated region
    $region22: #{transformer_encoder_model.5} parent=1 // pred_check
      %p211 = pneg %p31
    $region23: #{transformer_encoder_model.5} parent=1 // pred_check_branch
      %213 = sbr.rel (%p211) target = $region25
    $region24: #{transformer_encoder_model.5} parent=1 // pred_region
      %v214 = vld [vmem:[#allocation2] sm:$0xff]
      %v215 = vld [vmem:[#allocation2 + $0x8] sm:$0xff]
      %v216 = vld [vmem:[%s2] sm:$0x1]
      %v218 = vperm.slane %v216, 0
      %v220 = vadd.f32 %v214, %v218
      %v221 = vadd.f32 %v215, %v218
      %222 = vst [vmem:[#allocation6] sm:$0xff] %v220
      %223 = vst [vmem:[#allocation6 + $0x8] sm:$0xff] %v221
    $region25: #{transformer_encoder_model.5} parent=1 // pred_fallthru
      _
    // Predicated region
    $region26: #{transformer_encoder_model.5} parent=1 // pred_check
      _
    $region27: #{transformer_encoder_model.5} parent=1 // pred_check_branch
      %225 = sbr.rel (0) target = $region29
    $region28: #{transformer_encoder_model.5} parent=1 // pred_region
      %227 = vsyncadd [#allocation5], 0
      %s228 = sshll.u32 [#allocation6], 4
      %s229 = int_to_ptr.vmem [resolvable:$true] %s228
      %s230 = sshll.u32 %s3, 4
      %s231 = int_to_ptr.hbm [resolvable:$true] %s230
      %236 = dma.vmem_to_hbm [thread:$0]  %s229, 256, %s231, [#allocation5], 128, 128, 8
    $region29: #{transformer_encoder_model.5} parent=1 // pred_fallthru
      _
    // Predicated region
    $region30: #{transformer_encoder_model.5} parent=1 // pred_check
      _
    $region31: #{transformer_encoder_model.5} parent=1 // pred_check_branch
      %238 = sbr.rel (0) target = $region33
    $region32: #{transformer_encoder_model.5} parent=1 // pred_region
      %240 = dma.done [#allocation5], 256
    $region33: #{transformer_encoder_model.5} parent=1 // pred_fallthru
      _
    %241 = vsyncpa [#allocation4], 1
    %242 = vsyncpa [#allocation5], 1

// kernel: transformer_encoder_model.3
$region0: #{transformer_encoder_model.3}
  #allocation0 [shape = 'u32[]', space=smem, size = 0x4, offset = 0x4, fixed_abs, tag = 'smem constant byte address 0x4 - core index']
  #allocation1 [shape = 'u32[72,128]{1,0:T(1,128)}', space=vmem, size = 0x9000, scoped, tag = 'internal scratch']
  #allocation2 [shape = 'bf16[8,256]{1,0:T(8,128)(2,1)}', space=vmem, size = 0x1000, scoped, tag = 'scratch operand']
  %s0 = inlined_call_operand.vmem [shape: bf16[2,8,256], index: 0, kind: input, shape index: {}]
  %s1 = inlined_call_operand.vmem [shape: f32[8,8], index: 1, kind: input, shape index: {}]
  %s2 = inlined_call_operand.vmem [shape: f32[2,1,8], index: 2, kind: input, shape index: {}]
  %s3 = inlined_call_operand.hbm [shape: bf16[256,768], index: 3, kind: input, shape index: {}]
  %s4 = inlined_call_operand.vmem [shape: f32[1,768], index: 4, kind: input, shape index: {}]
  %s5 = inlined_call_operand.hbm [shape: bf16[256,256], index: 5, kind: input, shape index: {}]
  %s6 = inlined_call_operand.vmem [shape: f32[1,256], index: 6, kind: input, shape index: {}]
  %s7 = inlined_call_operand.vmem [shape: f32[1,256], index: 7, kind: input, shape index: {}]
  %s8 = inlined_call_operand.vmem [shape: f32[1,256], index: 8, kind: input, shape index: {}]
  %s9 = inlined_call_operand.hbm [shape: bf16[256,512], index: 9, kind: input, shape index: {}]
  %s10 = inlined_call_operand.vmem [shape: f32[1,512], index: 10, kind: input, shape index: {}]
  %s11 = inlined_call_operand.hbm [shape: bf16[512,256], index: 11, kind: input, shape index: {}]
  %s12 = inlined_call_operand.vmem [shape: f32[1,256], index: 12, kind: input, shape index: {}]
  %s13 = inlined_call_operand.vmem [shape: f32[1,256], index: 13, kind: input, shape index: {}]
  %s14 = inlined_call_operand.vmem [shape: f32[1,256], index: 14, kind: input, shape index: {}]
  %s15 = inlined_call_operand.vmem [shape: bf16[2,8,256], index: 15, kind: output, shape index: {}]
  %s16 = sld [smem:[#allocation0]]
  $region109: #{transformer_encoder_model.3} parent=0
    _
  %s18 = ssub.s32 1, %s16
  %s19 = scalar_select 0, %s18, %s16
  $region1: #{transformer_encoder_model.3} parent=0
    #allocation3 [shape = 'u8[393216]{0}', space=vmem, size = 0x60000, scoped, tag = 'input window, operand 3, single buffered']
    #allocation4 [shape = 's32[2]{0}', space=sflag, size = 0x8, scoped, tag = 'scoped memory for transformer_encoder_model.3']
    #allocation5 [shape = 'u8[131072]{0}', space=vmem, size = 0x20000, scoped, tag = 'input window, operand 5, single buffered']
    #allocation6 [shape = 's32[1]{0}', space=sflag, size = 0x4, scoped, tag = 'scoped memory for transformer_encoder_model.3']
    #allocation7 [shape = 'u8[262144]{0}', space=vmem, size = 0x40000, scoped, tag = 'input window, operand 9, single buffered']
    #allocation8 [shape = 'u8[262144]{0}', space=vmem, size = 0x40000, scoped, tag = 'input window, operand 11, single buffered']
    #allocation9 [shape = 's32[1]{0}', space=sflag, size = 0x4, scoped, tag = 'scoped memory for transformer_encoder_model.3']
    %20 = vsyncpa [#allocation4], 0
    %21 = vsyncpa [#allocation6], 0
    %22 = vsyncpa [#allocation9], 0
    loop: start=0, step=1, limit=4
    $region2: #{transformer_encoder_model.3} parent=1 // loop_pre_header
      _
    $region3: #{transformer_encoder_model.3} parent=1 // loop_header
      %s24 = sphi 0, %s28
      %p25 = scmp.ge.s32.totalorder %s24, 4
      %s34 = sphi 0, %s36
      %s37 = sphi 0, %s34
      %s38 = sphi 0, %s37
      %s54 = sphi 0, %s38
      %s58 = sphi 0, %s58
      %s60 = sphi 0, %s58
      %s61 = sphi 0, %s60
      %s75 = sphi 0, %s61
      %s81 = sphi 0, %s83
      %s84 = sphi 0, %s81
      %s85 = sphi 0, %s84
      %s101 = sphi 0, %s85
      %s105 = sphi 0, %s105
      %s107 = sphi 0, %s105
      %s108 = sphi 0, %s107
      %s122 = sphi 0, %s108
      %s126 = sphi 0, %s126
      %s128 = sphi 0, %s126
      %s129 = sphi 0, %s128
      %s143 = sphi 0, %s129
      %s147 = sphi 0, %s147
      %s149 = sphi 0, %s147
      %s150 = sphi 0, %s149
      %s164 = sphi 0, %s150
      %s168 = sphi 0, %s168
      %s170 = sphi 0, %s168
      %s171 = sphi 0, %s170
      %s185 = sphi 0, %s171
      %s189 = sphi 0, %s189
      %s191 = sphi 0, %s189
      %s192 = sphi 0, %s191
      %s206 = sphi 0, %s192
      %s210 = sphi 0, %s210
      %s212 = sphi 0, %s210
      %s213 = sphi 0, %s212
      %s227 = sphi 0, %s213
      %s231 = sphi 0, %s231
      %s233 = sphi 0, %s231
      %s234 = sphi 0, %s233
      %s248 = sphi 0, %s234
      %s252 = sphi 0, %s252
      %s254 = sphi 0, %s252
      %s255 = sphi 0, %s254
      %s269 = sphi 0, %s255
      %s273 = sphi 0, %s273
      %s275 = sphi 0, %s273
      %s276 = sphi 0, %s275
      %s290 = sphi 0, %s276
      %s294 = sphi 0, %s294
      %s296 = sphi 0, %s294
      %s297 = sphi 0, %s296
      %s311 = sphi 0, %s297
      %s315 = sphi 0, %s315
      %s317 = sphi 0, %s315
      %s318 = sphi 0, %s317
      %s332 = sphi 0, %s318
      %s336 = sphi 0, %s336
      %s338 = sphi 0, %s336
      %s339 = sphi 0, %s338
      %s353 = sphi 0, %s339
      %s359 = sphi 0, %s361
      %s362 = sphi 0, %s359
      %s363 = sphi 0, %s362
      %s379 = sphi 0, %s363
    $region4: #{transformer_encoder_model.3} parent=1 // loop_header_branch
      %27 = sbr.rel (%p25) target = $region8
    $region5: #{transformer_encoder_model.3} parent=1 // loop_body
      %s29 = ssub.s32 %s24, 1
      %s30 = ssub.s32 %s24, 2
      %s31 = sadd.s32 %s24, 1
      %s32 = ssub.s32 %s24, %s31
      %p33 = scmp.eq.s32.totalorder %s32, 0
      %s35 = sadd.s32 %s34, 1
      %s36 = scalar_select %p33, %s34, %s35
      %p39 = pneg %p33
      %p40 = scmp.eq.s32.totalorder %s24, 1
      %p41 = por %p39, %p40
      %p42 = scmp.ne.s32.totalorder %s34, %s37
      %p43 = scmp.eq.s32.totalorder %s24, 0
      %p44 = por %p42, %p43
      %p45 = scmp.ne.s32.totalorder %s34, %s37
      %p46 = scmp.eq.s32.totalorder %s29, 1
      %p47 = por %p45, %p46
      %p48 = scmp.ne.s32.totalorder %s37, %s38
      %p49 = scmp.eq.s32.totalorder %s29, 0
      %p50 = por %p48, %p49
      %p51 = scmp.ne.s32.totalorder %s37, %s38
      %p52 = scmp.eq.s32.totalorder %s30, 1
      %p53 = por %p51, %p52
      %p55 = scmp.ne.s32.totalorder %s38, %s54
      %p56 = scmp.eq.s32.totalorder %s30, 0
      %p57 = por %p55, %p56
      %s59 = sadd.s32 %s58, 1
      %p62 = scmp.eq.s32.totalorder %s24, 1
      %p63 = scmp.ne.s32.totalorder %s58, %s60
      %p64 = scmp.eq.s32.totalorder %s24, 0
      %p65 = por %p63, %p64
      %p66 = scmp.ne.s32.totalorder %s58, %s60
      %p67 = scmp.eq.s32.totalorder %s29, 1
      %p68 = por %p66, %p67
      %p69 = scmp.ne.s32.totalorder %s60, %s61
      %p70 = scmp.eq.s32.totalorder %s29, 0
      %p71 = por %p69, %p70
      %p72 = scmp.ne.s32.totalorder %s60, %s61
      %p73 = scmp.eq.s32.totalorder %s30, 1
      %p74 = por %p72, %p73
      %p76 = scmp.ne.s32.totalorder %s61, %s75
      %p77 = scmp.eq.s32.totalorder %s30, 0
      %p78 = por %p76, %p77
      %s79 = ssub.s32 %s24, %s31
      %p80 = scmp.eq.s32.totalorder %s79, 0
      %s82 = sadd.s32 %s81, 1
      %s83 = scalar_select %p80, %s81, %s82
      %p86 = pneg %p80
      %p87 = scmp.eq.s32.totalorder %s24, 1
      %p88 = por %p86, %p87
      %p89 = scmp.ne.s32.totalorder %s81, %s84
      %p90 = scmp.eq.s32.totalorder %s24, 0
      %p91 = por %p89, %p90
      %p92 = scmp.ne.s32.totalorder %s81, %s84
      %p93 = scmp.eq.s32.totalorder %s29, 1
      %p94 = por %p92, %p93
      %p95 = scmp.ne.s32.totalorder %s84, %s85
      %p96 = scmp.eq.s32.totalorder %s29, 0
      %p97 = por %p95, %p96
      %p98 = scmp.ne.s32.totalorder %s84, %s85
      %p99 = scmp.eq.s32.totalorder %s30, 1
      %p100 = por %p98, %p99
      %p102 = scmp.ne.s32.totalorder %s85, %s101
      %p103 = scmp.eq.s32.totalorder %s30, 0
      %p104 = por %p102, %p103
      %s106 = sadd.s32 %s105, 1
      %p109 = scmp.eq.s32.totalorder %s24, 1
      %p110 = scmp.ne.s32.totalorder %s105, %s107
      %p111 = scmp.eq.s32.totalorder %s24, 0
      %p112 = por %p110, %p111
      %p113 = scmp.ne.s32.totalorder %s105, %s107
      %p114 = scmp.eq.s32.totalorder %s29, 1
      %p115 = por %p113, %p114
      %p116 = scmp.ne.s32.totalorder %s107, %s108
      %p117 = scmp.eq.s32.totalorder %s29, 0
      %p118 = por %p116, %p117
      %p119 = scmp.ne.s32.totalorder %s107, %s108
      %p120 = scmp.eq.s32.totalorder %s30, 1
      %p121 = por %p119, %p120
      %p123 = scmp.ne.s32.totalorder %s108, %s122
      %p124 = scmp.eq.s32.totalorder %s30, 0
      %p125 = por %p123, %p124
      %s127 = sadd.s32 %s126, 1
      %p130 = scmp.eq.s32.totalorder %s24, 1
      %p131 = scmp.ne.s32.totalorder %s126, %s128
      %p132 = scmp.eq.s32.totalorder %s24, 0
      %p133 = por %p131, %p132
      %p134 = scmp.ne.s32.totalorder %s126, %s128
      %p135 = scmp.eq.s32.totalorder %s29, 1
      %p136 = por %p134, %p135
      %p137 = scmp.ne.s32.totalorder %s128, %s129
      %p138 = scmp.eq.s32.totalorder %s29, 0
      %p139 = por %p137, %p138
      %p140 = scmp.ne.s32.totalorder %s128, %s129
      %p141 = scmp.eq.s32.totalorder %s30, 1
      %p142 = por %p140, %p141
      %p144 = scmp.ne.s32.totalorder %s129, %s143
      %p145 = scmp.eq.s32.totalorder %s30, 0
      %p146 = por %p144, %p145
      %s148 = sadd.s32 %s147, 1
      %p151 = scmp.eq.s32.totalorder %s24, 1
      %p152 = scmp.ne.s32.totalorder %s147, %s149
      %p153 = scmp.eq.s32.totalorder %s24, 0
      %p154 = por %p152, %p153
      %p155 = scmp.ne.s32.totalorder %s147, %s149
      %p156 = scmp.eq.s32.totalorder %s29, 1
      %p157 = por %p155, %p156
      %p158 = scmp.ne.s32.totalorder %s149, %s150
      %p159 = scmp.eq.s32.totalorder %s29, 0
      %p160 = por %p158, %p159
      %p161 = scmp.ne.s32.totalorder %s149, %s150
      %p162 = scmp.eq.s32.totalorder %s30, 1
      %p163 = por %p161, %p162
      %p165 = scmp.ne.s32.totalorder %s150, %s164
      %p166 = scmp.eq.s32.totalorder %s30, 0
      %p167 = por %p165, %p166
      %s169 = sadd.s32 %s168, 1
      %p172 = scmp.eq.s32.totalorder %s24, 1
      %p173 = scmp.ne.s32.totalorder %s168, %s170
      %p174 = scmp.eq.s32.totalorder %s24, 0
      %p175 = por %p173, %p174
      %p176 = scmp.ne.s32.totalorder %s168, %s170
      %p177 = scmp.eq.s32.totalorder %s29, 1
      %p178 = por %p176, %p177
      %p179 = scmp.ne.s32.totalorder %s170, %s171
      %p180 = scmp.eq.s32.totalorder %s29, 0
      %p181 = por %p179, %p180
      %p182 = scmp.ne.s32.totalorder %s170, %s171
      %p183 = scmp.eq.s32.totalorder %s30, 1
      %p184 = por %p182, %p183
      %p186 = scmp.ne.s32.totalorder %s171, %s185
      %p187 = scmp.eq.s32.totalorder %s30, 0
      %p188 = por %p186, %p187
      %s190 = sadd.s32 %s189, 1
      %p193 = scmp.eq.s32.totalorder %s24, 1
      %p194 = scmp.ne.s32.totalorder %s189, %s191
      %p195 = scmp.eq.s32.totalorder %s24, 0
      %p196 = por %p194, %p195
      %p197 = scmp.ne.s32.totalorder %s189, %s191
      %p198 = scmp.eq.s32.totalorder %s29, 1
      %p199 = por %p197, %p198
      %p200 = scmp.ne.s32.totalorder %s191, %s192
      %p201 = scmp.eq.s32.totalorder %s29, 0
      %p202 = por %p200, %p201
      %p203 = scmp.ne.s32.totalorder %s191, %s192
      %p204 = scmp.eq.s32.totalorder %s30, 1
      %p205 = por %p203, %p204
      %p207 = scmp.ne.s32.totalorder %s192, %s206
      %p208 = scmp.eq.s32.totalorder %s30, 0
      %p209 = por %p207, %p208
      %s211 = sadd.s32 %s210, 1
      %p214 = scmp.eq.s32.totalorder %s24, 1
      %p215 = scmp.ne.s32.totalorder %s210, %s212
      %p216 = scmp.eq.s32.totalorder %s24, 0
      %p217 = por %p215, %p216
      %p218 = scmp.ne.s32.totalorder %s210, %s212
      %p219 = scmp.eq.s32.totalorder %s29, 1
      %p220 = por %p218, %p219
      %p221 = scmp.ne.s32.totalorder %s212, %s213
      %p222 = scmp.eq.s32.totalorder %s29, 0
      %p223 = por %p221, %p222
      %p224 = scmp.ne.s32.totalorder %s212, %s213
      %p225 = scmp.eq.s32.totalorder %s30, 1
      %p226 = por %p224, %p225
      %p228 = scmp.ne.s32.totalorder %s213, %s227
      %p229 = scmp.eq.s32.totalorder %s30, 0
      %p230 = por %p228, %p229
      %s232 = sadd.s32 %s231, 1
      %p235 = scmp.eq.s32.totalorder %s24, 1
      %p236 = scmp.ne.s32.totalorder %s231, %s233
      %p237 = scmp.eq.s32.totalorder %s24, 0
      %p238 = por %p236, %p237
      %p239 = scmp.ne.s32.totalorder %s231, %s233
      %p240 = scmp.eq.s32.totalorder %s29, 1
      %p241 = por %p239, %p240
      %p242 = scmp.ne.s32.totalorder %s233, %s234
      %p243 = scmp.eq.s32.totalorder %s29, 0
      %p244 = por %p242, %p243
      %p245 = scmp.ne.s32.totalorder %s233, %s234
      %p246 = scmp.eq.s32.totalorder %s30, 1
      %p247 = por %p245, %p246
      %p249 = scmp.ne.s32.totalorder %s234, %s248
      %p250 = scmp.eq.s32.totalorder %s30, 0
      %p251 = por %p249, %p250
      %s253 = sadd.s32 %s252, 1
      %p256 = scmp.eq.s32.totalorder %s24, 1
      %p257 = scmp.ne.s32.totalorder %s252, %s254
      %p258 = scmp.eq.s32.totalorder %s24, 0
      %p259 = por %p257, %p258
      %p260 = scmp.ne.s32.totalorder %s252, %s254
      %p261 = scmp.eq.s32.totalorder %s29, 1
      %p262 = por %p260, %p261
      %p263 = scmp.ne.s32.totalorder %s254, %s255
      %p264 = scmp.eq.s32.totalorder %s29, 0
      %p265 = por %p263, %p264
      %p266 = scmp.ne.s32.totalorder %s254, %s255
      %p267 = scmp.eq.s32.totalorder %s30, 1
      %p268 = por %p266, %p267
      %p270 = scmp.ne.s32.totalorder %s255, %s269
      %p271 = scmp.eq.s32.totalorder %s30, 0
      %p272 = por %p270, %p271
      %s274 = sadd.s32 %s273, 1
      %p277 = scmp.eq.s32.totalorder %s24, 1
      %p278 = scmp.ne.s32.totalorder %s273, %s275
      %p279 = scmp.eq.s32.totalorder %s24, 0
      %p280 = por %p278, %p279
      %p281 = scmp.ne.s32.totalorder %s273, %s275
      %p282 = scmp.eq.s32.totalorder %s29, 1
      %p283 = por %p281, %p282
      %p284 = scmp.ne.s32.totalorder %s275, %s276
      %p285 = scmp.eq.s32.totalorder %s29, 0
      %p286 = por %p284, %p285
      %p287 = scmp.ne.s32.totalorder %s275, %s276
      %p288 = scmp.eq.s32.totalorder %s30, 1
      %p289 = por %p287, %p288
      %p291 = scmp.ne.s32.totalorder %s276, %s290
      %p292 = scmp.eq.s32.totalorder %s30, 0
      %p293 = por %p291, %p292
      %s295 = sadd.s32 %s294, 1
      %p298 = scmp.eq.s32.totalorder %s24, 1
      %p299 = scmp.ne.s32.totalorder %s294, %s296
      %p300 = scmp.eq.s32.totalorder %s24, 0
      %p301 = por %p299, %p300
      %p302 = scmp.ne.s32.totalorder %s294, %s296
      %p303 = scmp.eq.s32.totalorder %s29, 1
      %p304 = por %p302, %p303
      %p305 = scmp.ne.s32.totalorder %s296, %s297
      %p306 = scmp.eq.s32.totalorder %s29, 0
      %p307 = por %p305, %p306
      %p308 = scmp.ne.s32.totalorder %s296, %s297
      %p309 = scmp.eq.s32.totalorder %s30, 1
      %p310 = por %p308, %p309
      %p312 = scmp.ne.s32.totalorder %s297, %s311
      %p313 = scmp.eq.s32.totalorder %s30, 0
      %p314 = por %p312, %p313
      %s316 = sadd.s32 %s315, 1
      %p319 = scmp.eq.s32.totalorder %s24, 1
      %p320 = scmp.ne.s32.totalorder %s315, %s317
      %p321 = scmp.eq.s32.totalorder %s24, 0
      %p322 = por %p320, %p321
      %p323 = scmp.ne.s32.totalorder %s315, %s317
      %p324 = scmp.eq.s32.totalorder %s29, 1
      %p325 = por %p323, %p324
      %p326 = scmp.ne.s32.totalorder %s317, %s318
      %p327 = scmp.eq.s32.totalorder %s29, 0
      %p328 = por %p326, %p327
      %p329 = scmp.ne.s32.totalorder %s317, %s318
      %p330 = scmp.eq.s32.totalorder %s30, 1
      %p331 = por %p329, %p330
      %p333 = scmp.ne.s32.totalorder %s318, %s332
      %p334 = scmp.eq.s32.totalorder %s30, 0
      %p335 = por %p333, %p334
      %s337 = sadd.s32 %s336, 1
      %p340 = scmp.eq.s32.totalorder %s24, 1
      %p341 = scmp.ne.s32.totalorder %s336, %s338
      %p342 = scmp.eq.s32.totalorder %s24, 0
      %p343 = por %p341, %p342
      %p344 = scmp.ne.s32.totalorder %s336, %s338
      %p345 = scmp.eq.s32.totalorder %s29, 1
      %p346 = por %p344, %p345
      %p347 = scmp.ne.s32.totalorder %s338, %s339
      %p348 = scmp.eq.s32.totalorder %s29, 0
      %p349 = por %p347, %p348
      %p350 = scmp.ne.s32.totalorder %s338, %s339
      %p351 = scmp.eq.s32.totalorder %s30, 1
      %p352 = por %p350, %p351
      %p354 = scmp.ne.s32.totalorder %s339, %s353
      %p355 = scmp.eq.s32.totalorder %s30, 0
      %p356 = por %p354, %p355
      %s357 = ssub.s32 %s24, %s31
      %p358 = scmp.eq.s32.totalorder %s357, 0
      %s360 = sadd.s32 %s359, 1
      %s361 = scalar_select %p358, %s359, %s360
      %p364 = pneg %p358
      %p365 = scmp.eq.s32.totalorder %s24, 1
      %p366 = por %p364, %p365
      %p367 = scmp.ne.s32.totalorder %s359, %s362
      %p368 = scmp.eq.s32.totalorder %s24, 0
      %p369 = por %p367, %p368
      %p370 = scmp.ne.s32.totalorder %s359, %s362
      %p371 = scmp.eq.s32.totalorder %s29, 1
      %p372 = por %p370, %p371
      %p373 = scmp.ne.s32.totalorder %s362, %s363
      %p374 = scmp.eq.s32.totalorder %s29, 0
      %p375 = por %p373, %p374
      %p376 = scmp.ne.s32.totalorder %s362, %s363
      %p377 = scmp.eq.s32.totalorder %s30, 1
      %p378 = por %p376, %p377
      %p380 = scmp.ne.s32.totalorder %s363, %s379
      %p381 = scmp.eq.s32.totalorder %s30, 0
      %p382 = por %p380, %p381
      %p383 = scmp.le.s32.totalorder 1, %s24
      %p384 = scmp.lt.s32.totalorder %s24, 3
      %p385 = pnand %p383, %p384
      %p386 = pneg %p385
      // Predicated region
      $region9: #{transformer_encoder_model.3} parent=5 // pred_check
        _
      $region10: #{transformer_encoder_model.3} parent=5 // pred_check_branch
        %388 = sbr.rel (%p385) target = $region12
      $region11: #{transformer_encoder_model.3} parent=5 // pred_region
        %s389 = ssub.s32 %s24, 1
        // Predicated region
        $region13: #{transformer_encoder_model.3} parent=11 // pred_check
          %p390 = pneg %p71
        $region14: #{transformer_encoder_model.3} parent=11 // pred_check_branch
          %392 = sbr.rel (%p390) target = $region16
        $region15: #{transformer_encoder_model.3} parent=11 // pred_region
          _
        $region16: #{transformer_encoder_model.3} parent=11 // pred_fallthru
          _
        // Predicated region
        $region17: #{transformer_encoder_model.3} parent=11 // pred_check
          %p393 = pneg %p118
        $region18: #{transformer_encoder_model.3} parent=11 // pred_check_branch
          %395 = sbr.rel (%p393) target = $region20
        $region19: #{transformer_encoder_model.3} parent=11 // pred_region
          %397 = vsyncadd [#allocation4], 0
          %s398 = sshll.u32 %s3, 4
          %s399 = int_to_ptr.hbm [resolvable:$true] %s398
          %s400 = sshll.u32 [#allocation3], 4
          %s401 = int_to_ptr.vmem [resolvable:$true] %s400
          %406 = dma.hbm_to_vmem [thread:$0]  %s399, 12288, %s401, [#allocation4], 384, 384, 24
        $region20: #{transformer_encoder_model.3} parent=11 // pred_fallthru
          _
        // Predicated region
        $region21: #{transformer_encoder_model.3} parent=11 // pred_check
          %p407 = pneg %p139
        $region22: #{transformer_encoder_model.3} parent=11 // pred_check_branch
          %409 = sbr.rel (%p407) target = $region24
        $region23: #{transformer_encoder_model.3} parent=11 // pred_region
          _
        $region24: #{transformer_encoder_model.3} parent=11 // pred_fallthru
          _
        // Predicated region
        $region25: #{transformer_encoder_model.3} parent=11 // pred_check
          %p410 = pneg %p160
        $region26: #{transformer_encoder_model.3} parent=11 // pred_check_branch
          %412 = sbr.rel (%p410) target = $region28
        $region27: #{transformer_encoder_model.3} parent=11 // pred_region
          %414 = vsyncadd [#allocation6], 0
          %s415 = sshll.u32 %s5, 4
          %s416 = int_to_ptr.hbm [resolvable:$true] %s415
          %s417 = sshll.u32 [#allocation5], 4
          %s418 = int_to_ptr.vmem [resolvable:$true] %s417
          %423 = dma.hbm_to_vmem [thread:$0]  %s416, 4096, %s418, [#allocation6], 128, 128, 8
        $region28: #{transformer_encoder_model.3} parent=11 // pred_fallthru
          _
        // Predicated region
        $region29: #{transformer_encoder_model.3} parent=11 // pred_check
          %p424 = pneg %p181
        $region30: #{transformer_encoder_model.3} parent=11 // pred_check_branch
          %426 = sbr.rel (%p424) target = $region32
        $region31: #{transformer_encoder_model.3} parent=11 // pred_region
          _
        $region32: #{transformer_encoder_model.3} parent=11 // pred_fallthru
          _
        // Predicated region
        $region33: #{transformer_encoder_model.3} parent=11 // pred_check
          %p427 = pneg %p202
        $region34: #{transformer_encoder_model.3} parent=11 // pred_check_branch
          %429 = sbr.rel (%p427) target = $region36
        $region35: #{transformer_encoder_model.3} parent=11 // pred_region
          _
        $region36: #{transformer_encoder_model.3} parent=11 // pred_fallthru
          _
        // Predicated region
        $region37: #{transformer_encoder_model.3} parent=11 // pred_check
          %p430 = pneg %p223
        $region38: #{transformer_encoder_model.3} parent=11 // pred_check_branch
          %432 = sbr.rel (%p430) target = $region40
        $region39: #{transformer_encoder_model.3} parent=11 // pred_region
          _
        $region40: #{transformer_encoder_model.3} parent=11 // pred_fallthru
          _
        // Predicated region
        $region41: #{transformer_encoder_model.3} parent=11 // pred_check
          %p433 = pneg %p244
        $region42: #{transformer_encoder_model.3} parent=11 // pred_check_branch
          %435 = sbr.rel (%p433) target = $region44
        $region43: #{transformer_encoder_model.3} parent=11 // pred_region
          %437 = vsyncadd [#allocation6], 0
          %s438 = sshll.u32 %s9, 4
          %s439 = int_to_ptr.hbm [resolvable:$true] %s438
          %s440 = sshll.u32 [#allocation7], 4
          %s441 = int_to_ptr.vmem [resolvable:$true] %s440
          %446 = dma.hbm_to_vmem [thread:$0]  %s439, 8192, %s441, [#allocation6], 256, 256, 16
        $region44: #{transformer_encoder_model.3} parent=11 // pred_fallthru
          _
        // Predicated region
        $region45: #{transformer_encoder_model.3} parent=11 // pred_check
          %p447 = pneg %p265
        $region46: #{transformer_encoder_model.3} parent=11 // pred_check_branch
          %449 = sbr.rel (%p447) target = $region48
        $region47: #{transformer_encoder_model.3} parent=11 // pred_region
          _
        $region48: #{transformer_encoder_model.3} parent=11 // pred_fallthru
          _
        // Predicated region
        $region49: #{transformer_encoder_model.3} parent=11 // pred_check
          %p450 = pneg %p286
        $region50: #{transformer_encoder_model.3} parent=11 // pred_check_branch
          %452 = sbr.rel (%p450) target = $region52
        $region51: #{transformer_encoder_model.3} parent=11 // pred_region
          %454 = vsyncadd [#allocation9], 0
          %s455 = sshll.u32 %s11, 4
          %s456 = int_to_ptr.hbm [resolvable:$true] %s455
          %s457 = sshll.u32 [#allocation8], 4
          %s458 = int_to_ptr.vmem [resolvable:$true] %s457
          %463 = dma.hbm_to_vmem [thread:$0]  %s456, 8192, %s458, [#allocation9], 128, 128, 8
        $region52: #{transformer_encoder_model.3} parent=11 // pred_fallthru
          _
        // Predicated region
        $region53: #{transformer_encoder_model.3} parent=11 // pred_check
          %p464 = pneg %p307
        $region54: #{transformer_encoder_model.3} parent=11 // pred_check_branch
          %466 = sbr.rel (%p464) target = $region56
        $region55: #{transformer_encoder_model.3} parent=11 // pred_region
          _
        $region56: #{transformer_encoder_model.3} parent=11 // pred_fallthru
          _
        // Predicated region
        $region57: #{transformer_encoder_model.3} parent=11 // pred_check
          %p467 = pneg %p328
        $region58: #{transformer_encoder_model.3} parent=11 // pred_check_branch
          %469 = sbr.rel (%p467) target = $region60
        $region59: #{transformer_encoder_model.3} parent=11 // pred_region
          _
        $region60: #{transformer_encoder_model.3} parent=11 // pred_fallthru
          _
        // Predicated region
        $region61: #{transformer_encoder_model.3} parent=11 // pred_check
          %p470 = pneg %p349
        $region62: #{transformer_encoder_model.3} parent=11 // pred_check_branch
          %472 = sbr.rel (%p470) target = $region64
        $region63: #{transformer_encoder_model.3} parent=11 // pred_region
          _
        $region64: #{transformer_encoder_model.3} parent=11 // pred_fallthru
          _
      $region12: #{transformer_encoder_model.3} parent=5 // pred_fallthru
        _
      %p473 = scmp.lt.s32.totalorder %s24, 2
      // Predicated region
      $region65: #{transformer_encoder_model.3} parent=5 // pred_check
        %p474 = pneg %p473
      $region66: #{transformer_encoder_model.3} parent=5 // pred_check_branch
        %476 = sbr.rel (%p474) target = $region68
      $region67: #{transformer_encoder_model.3} parent=5 // pred_region
        // Predicated region
        $region69: #{transformer_encoder_model.3} parent=67 // pred_check
          %p477 = pneg %p44
        $region70: #{transformer_encoder_model.3} parent=67 // pred_check_branch
          %479 = sbr.rel (%p477) target = $region72
        $region71: #{transformer_encoder_model.3} parent=67 // pred_region
          %p480 = scmp.lt.s32.totalorder %s24, 1
          %s481 = scalar_select %p480, %s24, 1
          %s482 = smul.addr %s481, 2
          %s483 = smul.addr %s482, 4
          %s484 = scalar_lea.vmem %s0, %s483
        $region72: #{transformer_encoder_model.3} parent=67 // pred_fallthru
          _
        // Predicated region
        $region73: #{transformer_encoder_model.3} parent=67 // pred_check
          %p485 = pneg %p91
        $region74: #{transformer_encoder_model.3} parent=67 // pred_check_branch
          %487 = sbr.rel (%p485) target = $region76
        $region75: #{transformer_encoder_model.3} parent=67 // pred_region
          %p488 = scmp.lt.s32.totalorder %s24, 1
          %s489 = scalar_select %p488, %s24, 1
          %s490 = scalar_lea.vmem %s2, %s489
        $region76: #{transformer_encoder_model.3} parent=67 // pred_fallthru
          _
      $region68: #{transformer_encoder_model.3} parent=5 // pred_fallthru
        _
      %p491 = scmp.le.s32.totalorder 1, %s24
      %p492 = scmp.lt.s32.totalorder %s24, 3
      %p493 = pnand %p491, %p492
      %p494 = pneg %p493
      // Predicated region
      $region77: #{transformer_encoder_model.3} parent=5 // pred_check
        _
      $region78: #{transformer_encoder_model.3} parent=5 // pred_check_branch
        %496 = sbr.rel (%p493) target = $region80
      $region79: #{transformer_encoder_model.3} parent=5 // pred_region
        %s497 = ssub.s32 %s24, 1
        // Predicated region
        $region81: #{transformer_encoder_model.3} parent=79 // pred_check
          %p498 = pneg %p118
        $region82: #{transformer_encoder_model.3} parent=79 // pred_check_branch
          %500 = sbr.rel (%p498) target = $region84
        $region83: #{transformer_encoder_model.3} parent=79 // pred_region
          %502 = dma.done [#allocation4], 12288
        $region84: #{transformer_encoder_model.3} parent=79 // pred_fallthru
          _
        // Predicated region
        $region85: #{transformer_encoder_model.3} parent=79 // pred_check
          %p503 = pneg %p160
        $region86: #{transformer_encoder_model.3} parent=79 // pred_check_branch
          %505 = sbr.rel (%p503) target = $region88
        $region87: #{transformer_encoder_model.3} parent=79 // pred_region
          %507 = dma.done [#allocation6], 4096
        $region88: #{transformer_encoder_model.3} parent=79 // pred_fallthru
          _
        // Predicated region
        $region89: #{transformer_encoder_model.3} parent=79 // pred_check
          %p508 = pneg %p244
        $region90: #{transformer_encoder_model.3} parent=79 // pred_check_branch
          %510 = sbr.rel (%p508) target = $region92
        $region91: #{transformer_encoder_model.3} parent=79 // pred_region
          %512 = dma.done [#allocation6], 8192
        $region92: #{transformer_encoder_model.3} parent=79 // pred_fallthru
          _
        // Predicated region
        $region93: #{transformer_encoder_model.3} parent=79 // pred_check
          %p513 = pneg %p286
        $region94: #{transformer_encoder_model.3} parent=79 // pred_check_branch
          %515 = sbr.rel (%p513) target = $region96
        $region95: #{transformer_encoder_model.3} parent=79 // pred_region
          %517 = dma.done [#allocation9], 8192
        $region96: #{transformer_encoder_model.3} parent=79 // pred_fallthru
          _
        %p518 = scmp.lt.s32.totalorder %s29, 1
        %s519 = scalar_select %p518, %s29, 1
        %s520 = smul.addr %s519, 2
        %s521 = smul.addr %s520, 4
        %s522 = scalar_lea.vmem %s0, %s521
        %p523 = pneg %p50
        %p524 = pneg %p47
        %p525 = pneg %p71
        %p526 = pneg %p68
        %p527 = scmp.lt.s32.totalorder %s29, 1
        %s528 = scalar_select %p527, %s29, 1
        %s529 = scalar_lea.vmem %s2, %s528
        %p530 = pneg %p97
        %p531 = pneg %p94
        %p532 = pneg %p118
        %p533 = pneg %p115
        %p534 = pneg %p139
        %p535 = pneg %p136
        %p536 = pneg %p160
        %p537 = pneg %p157
        %p538 = pneg %p181
        %p539 = pneg %p178
        %p540 = pneg %p202
        %p541 = pneg %p199
        %p542 = pneg %p223
        %p543 = pneg %p220
        %p544 = pneg %p244
        %p545 = pneg %p241
        %p546 = pneg %p265
        %p547 = pneg %p262
        %p548 = pneg %p286
        %p549 = pneg %p283
        %p550 = pneg %p307
        %p551 = pneg %p304
        %p552 = pneg %p328
        %p553 = pneg %p325
        %p554 = pneg %p349
        %p555 = pneg %p346
        %p556 = pneg %p375
        %p557 = pneg %p372
        %p558 = scmp.lt.s32.totalorder %s29, 1
        %s559 = scalar_select %p558, %s29, 1
        %s560 = smul.addr %s559, 2
        %s561 = smul.addr %s560, 4
        %s562 = scalar_lea.vmem %s15, %s561
        %p563 = scmp.lt.s32.totalorder %s29, 1
        %s564 = scalar_select %p563, %s29, 1
        %s565 = smul.addr %s564, 2
        %s566 = smul.addr %s565, 4
        %s567 = scalar_lea.vmem %s0, %s566
        %p568 = scmp.lt.s32.totalorder %s29, 1
        %s569 = scalar_select %p568, %s29, 1
        %s570 = scalar_lea.vmem %s2, %s569
        %p571 = scmp.lt.s32.totalorder %s29, 1
        %s572 = scalar_select %p571, %s29, 1
        %s573 = smul.addr %s572, 2
        %s574 = smul.addr %s573, 4
        %s575 = scalar_lea.vmem %s15, %s574
        %v577 = vld [vmem:[%s567] sm:$0xff]
        %v578 = vld [vmem:[#allocation3] sm:$0xff]
        %v579 = vld [vmem:[#allocation3 + $0x8] sm:$0xff]
        %v580 = vld [vmem:[#allocation3 + $0x10] sm:$0xff]
        %v581 = vld [vmem:[#allocation3 + $0x18] sm:$0xff]
        %v582 = vld [vmem:[#allocation3 + $0x20] sm:$0xff]
        %v583 = vld [vmem:[#allocation3 + $0x28] sm:$0xff]
        %v584 = vld [vmem:[#allocation3 + $0x30] sm:$0xff]
        %v585 = vld [vmem:[#allocation3 + $0x38] sm:$0xff]
        %v586 = vld [vmem:[#allocation3 + $0x40] sm:$0xff]
        %v587 = vld [vmem:[#allocation3 + $0x48] sm:$0xff]
        %v588 = vld [vmem:[#allocation3 + $0x50] sm:$0xff]
        %v589 = vld [vmem:[#allocation3 + $0x58] sm:$0xff]
        %v590 = vld [vmem:[#allocation3 + $0x60] sm:$0xff]
        %v591 = vld [vmem:[#allocation3 + $0x68] sm:$0xff]
        %v592 = vld [vmem:[#allocation3 + $0x70] sm:$0xff]
        %v593 = vld [vmem:[#allocation3 + $0x78] sm:$0xff]
        %v594 = vld [vmem:[#allocation3 + $0x80] sm:$0xff]
        %v595 = vld [vmem:[#allocation3 + $0x88] sm:$0xff]
        %v596 = vld [vmem:[#allocation3 + $0x90] sm:$0xff]
        %v597 = vld [vmem:[#allocation3 + $0x98] sm:$0xff]
        %v598 = vld [vmem:[#allocation3 + $0xa0] sm:$0xff]
        %v599 = vld [vmem:[#allocation3 + $0xa8] sm:$0xff]
        %v600 = vld [vmem:[#allocation3 + $0xb0] sm:$0xff]
        %v601 = vld [vmem:[#allocation3 + $0xb8] sm:$0xff]
        %v602 = vld [vmem:[#allocation3 + $0xc0] sm:$0xff]
        %v603 = vld [vmem:[#allocation3 + $0xc8] sm:$0xff]
        %v604 = vld [vmem:[#allocation3 + $0xd0] sm:$0xff]
        %v605 = vld [vmem:[#allocation3 + $0xd8] sm:$0xff]
        %v606 = vld [vmem:[#allocation3 + $0xe0] sm:$0xff]
        %v607 = vld [vmem:[#allocation3 + $0xe8] sm:$0xff]
        %v608 = vld [vmem:[#allocation3 + $0xf0] sm:$0xff]
        %v609 = vld [vmem:[#allocation3 + $0xf8] sm:$0xff]
        %v610 = vld [vmem:[#allocation3 + $0x100] sm:$0xff]
        %v611 = vld [vmem:[#allocation3 + $0x108] sm:$0xff]
        %v612 = vld [vmem:[#allocation3 + $0x110] sm:$0xff]
        %v613 = vld [vmem:[#allocation3 + $0x118] sm:$0xff]
        %v614 = vld [vmem:[#allocation3 + $0x120] sm:$0xff]
        %v615 = vld [vmem:[#allocation3 + $0x128] sm:$0xff]
        %v616 = vld [vmem:[#allocation3 + $0x130] sm:$0xff]
        %v617 = vld [vmem:[#allocation3 + $0x138] sm:$0xff]
        %v618 = vld [vmem:[#allocation3 + $0x140] sm:$0xff]
        %v619 = vld [vmem:[#allocation3 + $0x148] sm:$0xff]
        %v620 = vld [vmem:[#allocation3 + $0x150] sm:$0xff]
        %v621 = vld [vmem:[#allocation3 + $0x158] sm:$0xff]
        %v622 = vld [vmem:[#allocation3 + $0x160] sm:$0xff]
        %v623 = vld [vmem:[#allocation3 + $0x168] sm:$0xff]
        %v624 = vld [vmem:[#allocation3 + $0x170] sm:$0xff]
        %v625 = vld [vmem:[#allocation3 + $0x178] sm:$0xff]
        %v626 = vld [vmem:[#allocation3 + $0x180] sm:$0xff]
        %v627 = vld [vmem:[#allocation3 + $0x188] sm:$0xff]
        %v628 = vld [vmem:[#allocation3 + $0x190] sm:$0xff]
        %v629 = vld [vmem:[#allocation3 + $0x198] sm:$0xff]
        %v630 = vld [vmem:[#allocation3 + $0x1a0] sm:$0xff]
        %v631 = vld [vmem:[#allocation3 + $0x1a8] sm:$0xff]
        %v632 = vld [vmem:[#allocation3 + $0x1b0] sm:$0xff]
        %v633 = vld [vmem:[#allocation3 + $0x1b8] sm:$0xff]
        %v634 = vld [vmem:[#allocation3 + $0x1c0] sm:$0xff]
        %v635 = vld [vmem:[#allocation3 + $0x1c8] sm:$0xff]
        %v636 = vld [vmem:[#allocation3 + $0x1d0] sm:$0xff]
        %v637 = vld [vmem:[#allocation3 + $0x1d8] sm:$0xff]
        %v638 = vld [vmem:[#allocation3 + $0x1e0] sm:$0xff]
        %v639 = vld [vmem:[#allocation3 + $0x1e8] sm:$0xff]
        %v640 = vld [vmem:[#allocation3 + $0x1f0] sm:$0xff]
        %v641 = vld [vmem:[#allocation3 + $0x1f8] sm:$0xff]
        %v642 = vld [vmem:[#allocation3 + $0x200] sm:$0xff]
        %v643 = vld [vmem:[#allocation3 + $0x208] sm:$0xff]
        %v644 = vld [vmem:[#allocation3 + $0x210] sm:$0xff]
        %v645 = vld [vmem:[#allocation3 + $0x218] sm:$0xff]
        %v646 = vld [vmem:[#allocation3 + $0x220] sm:$0xff]
        %v647 = vld [vmem:[#allocation3 + $0x228] sm:$0xff]
        %v648 = vld [vmem:[#allocation3 + $0x230] sm:$0xff]
        %v649 = vld [vmem:[#allocation3 + $0x238] sm:$0xff]
        %v650 = vld [vmem:[#allocation3 + $0x240] sm:$0xff]
        %v651 = vld [vmem:[#allocation3 + $0x248] sm:$0xff]
        %v652 = vld [vmem:[#allocation3 + $0x250] sm:$0xff]
        %v653 = vld [vmem:[#allocation3 + $0x258] sm:$0xff]
        %v654 = vld [vmem:[#allocation3 + $0x260] sm:$0xff]
        %v655 = vld [vmem:[#allocation3 + $0x268] sm:$0xff]
        %v656 = vld [vmem:[#allocation3 + $0x270] sm:$0xff]
        %v657 = vld [vmem:[#allocation3 + $0x278] sm:$0xff]
        %v658 = vld [vmem:[#allocation3 + $0x280] sm:$0xff]
        %v659 = vld [vmem:[#allocation3 + $0x288] sm:$0xff]
        %v660 = vld [vmem:[#allocation3 + $0x290] sm:$0xff]
        %v661 = vld [vmem:[#allocation3 + $0x298] sm:$0xff]
        %v662 = vld [vmem:[#allocation3 + $0x2a0] sm:$0xff]
        %v663 = vld [vmem:[#allocation3 + $0x2a8] sm:$0xff]
        %v664 = vld [vmem:[#allocation3 + $0x2b0] sm:$0xff]
        %v665 = vld [vmem:[#allocation3 + $0x2b8] sm:$0xff]
        %v666 = vld [vmem:[#allocation3 + $0x2c0] sm:$0xff]
        %v667 = vld [vmem:[#allocation3 + $0x2c8] sm:$0xff]
        %v668 = vld [vmem:[#allocation3 + $0x2d0] sm:$0xff]
        %v669 = vld [vmem:[#allocation3 + $0x2d8] sm:$0xff]
        %v670 = vld [vmem:[#allocation3 + $0x2e0] sm:$0xff]
        %v671 = vld [vmem:[#allocation3 + $0x2e8] sm:$0xff]
        %v672 = vld [vmem:[#allocation3 + $0x2f0] sm:$0xff]
        %v673 = vld [vmem:[#allocation3 + $0x2f8] sm:$0xff]
        %v674 = vld [vmem:[%s4] sm:$0x3f]
        %v676 = vperm.slane %v674, 0
        %v677 = vperm.slane %v674, 1
        %v678 = vperm.slane %v674, 2
        %v679 = vperm.slane %v674, 3
        %v680 = vperm.slane %v674, 4
        %v681 = vperm.slane %v674, 5
        %v689 = vunpack.c.l.b16 %v577
        %v690 = vunpack.c.h.b16 %v577
        %v691 = vpack.c.b16 %v689, %v689
        %v692 = vpack.c.b16 %v690, %v690
        %v791 = vunpack.c.l.b16 %v578
        %v792 = vunpack.c.h.b16 %v578
        %v793 = vunpack.c.l.b16 %v579
        %v794 = vunpack.c.h.b16 %v579
        %v795 = vunpack.c.l.b16 %v580
        %v796 = vunpack.c.h.b16 %v580
        %v797 = vunpack.c.l.b16 %v581
        %v798 = vunpack.c.h.b16 %v581
        %v799 = vunpack.c.l.b16 %v582
        %v800 = vunpack.c.h.b16 %v582
        %v801 = vunpack.c.l.b16 %v583
        %v802 = vunpack.c.h.b16 %v583
        %v803 = vunpack.c.l.b16 %v584
        %v804 = vunpack.c.h.b16 %v584
        %v805 = vunpack.c.l.b16 %v585
        %v806 = vunpack.c.h.b16 %v585
        %v807 = vunpack.c.l.b16 %v586
        %v808 = vunpack.c.h.b16 %v586
        %v809 = vunpack.c.l.b16 %v587
        %v810 = vunpack.c.h.b16 %v587
        %v811 = vunpack.c.l.b16 %v588
        %v812 = vunpack.c.h.b16 %v588
        %v813 = vunpack.c.l.b16 %v589
        %v814 = vunpack.c.h.b16 %v589
        %v815 = vunpack.c.l.b16 %v590
        %v816 = vunpack.c.h.b16 %v590
        %v817 = vunpack.c.l.b16 %v591
        %v818 = vunpack.c.h.b16 %v591
        %v819 = vunpack.c.l.b16 %v592
        %v820 = vunpack.c.h.b16 %v592
        %v821 = vunpack.c.l.b16 %v593
        %v822 = vunpack.c.h.b16 %v593
        %v823 = vunpack.c.l.b16 %v594
        %v824 = vunpack.c.h.b16 %v594
        %v825 = vunpack.c.l.b16 %v595
        %v826 = vunpack.c.h.b16 %v595
        %v827 = vunpack.c.l.b16 %v596
        %v828 = vunpack.c.h.b16 %v596
        %v829 = vunpack.c.l.b16 %v597
        %v830 = vunpack.c.h.b16 %v597
        %v831 = vunpack.c.l.b16 %v598
        %v832 = vunpack.c.h.b16 %v598
        %v833 = vunpack.c.l.b16 %v599
        %v834 = vunpack.c.h.b16 %v599
        %v835 = vunpack.c.l.b16 %v600
        %v836 = vunpack.c.h.b16 %v600
        %v837 = vunpack.c.l.b16 %v601
        %v838 = vunpack.c.h.b16 %v601
        %v839 = vunpack.c.l.b16 %v602
        %v840 = vunpack.c.h.b16 %v602
        %v841 = vunpack.c.l.b16 %v603
        %v842 = vunpack.c.h.b16 %v603
        %v843 = vunpack.c.l.b16 %v604
        %v844 = vunpack.c.h.b16 %v604
        %v845 = vunpack.c.l.b16 %v605
        %v846 = vunpack.c.h.b16 %v605
        %v847 = vunpack.c.l.b16 %v606
        %v848 = vunpack.c.h.b16 %v606
        %v849 = vunpack.c.l.b16 %v607
        %v850 = vunpack.c.h.b16 %v607
        %v851 = vunpack.c.l.b16 %v608
        %v852 = vunpack.c.h.b16 %v608
        %v853 = vunpack.c.l.b16 %v609
        %v854 = vunpack.c.h.b16 %v609
        %v855 = vunpack.c.l.b16 %v610
        %v856 = vunpack.c.h.b16 %v610
        %v857 = vunpack.c.l.b16 %v611
        %v858 = vunpack.c.h.b16 %v611
        %v859 = vunpack.c.l.b16 %v612
        %v860 = vunpack.c.h.b16 %v612
        %v861 = vunpack.c.l.b16 %v613
        %v862 = vunpack.c.h.b16 %v613
        %v863 = vunpack.c.l.b16 %v614
        %v864 = vunpack.c.h.b16 %v614
        %v865 = vunpack.c.l.b16 %v615
        %v866 = vunpack.c.h.b16 %v615
        %v867 = vunpack.c.l.b16 %v616
        %v868 = vunpack.c.h.b16 %v616
        %v869 = vunpack.c.l.b16 %v617
        %v870 = vunpack.c.h.b16 %v617
        %v871 = vunpack.c.l.b16 %v618
        %v872 = vunpack.c.h.b16 %v618
        %v873 = vunpack.c.l.b16 %v619
        %v874 = vunpack.c.h.b16 %v619
        %v875 = vunpack.c.l.b16 %v620
        %v876 = vunpack.c.h.b16 %v620
        %v877 = vunpack.c.l.b16 %v621
        %v878 = vunpack.c.h.b16 %v621
        %v879 = vunpack.c.l.b16 %v622
        %v880 = vunpack.c.h.b16 %v622
        %v881 = vunpack.c.l.b16 %v623
        %v882 = vunpack.c.h.b16 %v623
        %v883 = vunpack.c.l.b16 %v624
        %v884 = vunpack.c.h.b16 %v624
        %v885 = vunpack.c.l.b16 %v625
        %v886 = vunpack.c.h.b16 %v625
        %v887 = vunpack.c.l.b16 %v626
        %v888 = vunpack.c.h.b16 %v626
        %v889 = vunpack.c.l.b16 %v627
        %v890 = vunpack.c.h.b16 %v627
        %v891 = vunpack.c.l.b16 %v628
        %v892 = vunpack.c.h.b16 %v628
        %v893 = vunpack.c.l.b16 %v629
        %v894 = vunpack.c.h.b16 %v629
        %v895 = vunpack.c.l.b16 %v630
        %v896 = vunpack.c.h.b16 %v630
        %v897 = vunpack.c.l.b16 %v631
        %v898 = vunpack.c.h.b16 %v631
        %v899 = vunpack.c.l.b16 %v632
        %v900 = vunpack.c.h.b16 %v632
        %v901 = vunpack.c.l.b16 %v633
        %v902 = vunpack.c.h.b16 %v633
        %v903 = vunpack.c.l.b16 %v634
        %v904 = vunpack.c.h.b16 %v634
        %v905 = vunpack.c.l.b16 %v635
        %v906 = vunpack.c.h.b16 %v635
        %v907 = vunpack.c.l.b16 %v636
        %v908 = vunpack.c.h.b16 %v636
        %v909 = vunpack.c.l.b16 %v637
        %v910 = vunpack.c.h.b16 %v637
        %v911 = vunpack.c.l.b16 %v638
        %v912 = vunpack.c.h.b16 %v638
        %v913 = vunpack.c.l.b16 %v639
        %v914 = vunpack.c.h.b16 %v639
        %v915 = vunpack.c.l.b16 %v640
        %v916 = vunpack.c.h.b16 %v640
        %v917 = vunpack.c.l.b16 %v641
        %v918 = vunpack.c.h.b16 %v641
        %v919 = vunpack.c.l.b16 %v642
        %v920 = vunpack.c.h.b16 %v642
        %v921 = vunpack.c.l.b16 %v643
        %v922 = vunpack.c.h.b16 %v643
        %v923 = vunpack.c.l.b16 %v644
        %v924 = vunpack.c.h.b16 %v644
        %v925 = vunpack.c.l.b16 %v645
        %v926 = vunpack.c.h.b16 %v645
        %v927 = vunpack.c.l.b16 %v646
        %v928 = vunpack.c.h.b16 %v646
        %v929 = vunpack.c.l.b16 %v647
        %v930 = vunpack.c.h.b16 %v647
        %v931 = vunpack.c.l.b16 %v648
        %v932 = vunpack.c.h.b16 %v648
        %v933 = vunpack.c.l.b16 %v649
        %v934 = vunpack.c.h.b16 %v649
        %v935 = vunpack.c.l.b16 %v650
        %v936 = vunpack.c.h.b16 %v650
        %v937 = vunpack.c.l.b16 %v651
        %v938 = vunpack.c.h.b16 %v651
        %v939 = vunpack.c.l.b16 %v652
        %v940 = vunpack.c.h.b16 %v652
        %v941 = vunpack.c.l.b16 %v653
        %v942 = vunpack.c.h.b16 %v653
        %v943 = vunpack.c.l.b16 %v654
        %v944 = vunpack.c.h.b16 %v654
        %v945 = vunpack.c.l.b16 %v655
        %v946 = vunpack.c.h.b16 %v655
        %v947 = vunpack.c.l.b16 %v656
        %v948 = vunpack.c.h.b16 %v656
        %v949 = vunpack.c.l.b16 %v657
        %v950 = vunpack.c.h.b16 %v657
        %v951 = vunpack.c.l.b16 %v658
        %v952 = vunpack.c.h.b16 %v658
        %v953 = vunpack.c.l.b16 %v659
        %v954 = vunpack.c.h.b16 %v659
        %v955 = vunpack.c.l.b16 %v660
        %v956 = vunpack.c.h.b16 %v660
        %v957 = vunpack.c.l.b16 %v661
        %v958 = vunpack.c.h.b16 %v661
        %v959 = vunpack.c.l.b16 %v662
        %v960 = vunpack.c.h.b16 %v662
        %v961 = vunpack.c.l.b16 %v663
        %v962 = vunpack.c.h.b16 %v663
        %v963 = vunpack.c.l.b16 %v664
        %v964 = vunpack.c.h.b16 %v664
        %v965 = vunpack.c.l.b16 %v665
        %v966 = vunpack.c.h.b16 %v665
        %v967 = vunpack.c.l.b16 %v666
        %v968 = vunpack.c.h.b16 %v666
        %v969 = vunpack.c.l.b16 %v667
        %v970 = vunpack.c.h.b16 %v667
        %v971 = vunpack.c.l.b16 %v668
        %v972 = vunpack.c.h.b16 %v668
        %v973 = vunpack.c.l.b16 %v669
        %v974 = vunpack.c.h.b16 %v669
        %v975 = vunpack.c.l.b16 %v670
        %v976 = vunpack.c.h.b16 %v670
        %v977 = vunpack.c.l.b16 %v671
        %v978 = vunpack.c.h.b16 %v671
        %v979 = vunpack.c.l.b16 %v672
        %v980 = vunpack.c.h.b16 %v672
        %v981 = vunpack.c.l.b16 %v673
        %v982 = vunpack.c.h.b16 %v673
        %v983 = vpack.c.b16 %v797, %v791
        %v984 = vpack.c.b16 %v798, %v792
        %v985 = vpack.c.b16 %v799, %v793
        %v986 = vpack.c.b16 %v800, %v794
        %v987 = vpack.c.b16 %v801, %v795
        %v988 = vpack.c.b16 %v802, %v796
        %v989 = vpack.c.b16 %v809, %v803
        %v990 = vpack.c.b16 %v810, %v804
        %v991 = vpack.c.b16 %v811, %v805
        %v992 = vpack.c.b16 %v812, %v806
        %v993 = vpack.c.b16 %v813, %v807
        %v994 = vpack.c.b16 %v814, %v808
        %v995 = vpack.c.b16 %v821, %v815
        %v996 = vpack.c.b16 %v822, %v816
        %v997 = vpack.c.b16 %v823, %v817
        %v998 = vpack.c.b16 %v824, %v818
        %v999 = vpack.c.b16 %v825, %v819
        %v1000 = vpack.c.b16 %v826, %v820
        %v1001 = vpack.c.b16 %v833, %v827
        %v1002 = vpack.c.b16 %v834, %v828
        %v1003 = vpack.c.b16 %v835, %v829
        %v1004 = vpack.c.b16 %v836, %v830
        %v1005 = vpack.c.b16 %v837, %v831
        %v1006 = vpack.c.b16 %v838, %v832
        %v1007 = vpack.c.b16 %v845, %v839
        %v1008 = vpack.c.b16 %v846, %v840
        %v1009 = vpack.c.b16 %v847, %v841
        %v1010 = vpack.c.b16 %v848, %v842
        %v1011 = vpack.c.b16 %v849, %v843
        %v1012 = vpack.c.b16 %v850, %v844
        %v1013 = vpack.c.b16 %v857, %v851
        %v1014 = vpack.c.b16 %v858, %v852
        %v1015 = vpack.c.b16 %v859, %v853
        %v1016 = vpack.c.b16 %v860, %v854
        %v1017 = vpack.c.b16 %v861, %v855
        %v1018 = vpack.c.b16 %v862, %v856
        %v1019 = vpack.c.b16 %v869, %v863
        %v1020 = vpack.c.b16 %v870, %v864
        %v1021 = vpack.c.b16 %v871, %v865
        %v1022 = vpack.c.b16 %v872, %v866
        %v1023 = vpack.c.b16 %v873, %v867
        %v1024 = vpack.c.b16 %v874, %v868
        %v1025 = vpack.c.b16 %v881, %v875
        %v1026 = vpack.c.b16 %v882, %v876
        %v1027 = vpack.c.b16 %v883, %v877
        %v1028 = vpack.c.b16 %v884, %v878
        %v1029 = vpack.c.b16 %v885, %v879
        %v1030 = vpack.c.b16 %v886, %v880
        %v1031 = vpack.c.b16 %v893, %v887
        %v1032 = vpack.c.b16 %v894, %v888
        %v1033 = vpack.c.b16 %v895, %v889
        %v1034 = vpack.c.b16 %v896, %v890
        %v1035 = vpack.c.b16 %v897, %v891
        %v1036 = vpack.c.b16 %v898, %v892
        %v1037 = vpack.c.b16 %v905, %v899
        %v1038 = vpack.c.b16 %v906, %v900
        %v1039 = vpack.c.b16 %v907, %v901
        %v1040 = vpack.c.b16 %v908, %v902
        %v1041 = vpack.c.b16 %v909, %v903
        %v1042 = vpack.c.b16 %v910, %v904
        %v1043 = vpack.c.b16 %v917, %v911
        %v1044 = vpack.c.b16 %v918, %v912
        %v1045 = vpack.c.b16 %v919, %v913
        %v1046 = vpack.c.b16 %v920, %v914
        %v1047 = vpack.c.b16 %v921, %v915
        %v1048 = vpack.c.b16 %v922, %v916
        %v1049 = vpack.c.b16 %v929, %v923
        %v1050 = vpack.c.b16 %v930, %v924
        %v1051 = vpack.c.b16 %v931, %v925
        %v1052 = vpack.c.b16 %v932, %v926
        %v1053 = vpack.c.b16 %v933, %v927
        %v1054 = vpack.c.b16 %v934, %v928
        %v1055 = vpack.c.b16 %v941, %v935
        %v1056 = vpack.c.b16 %v942, %v936
        %v1057 = vpack.c.b16 %v943, %v937
        %v1058 = vpack.c.b16 %v944, %v938
        %v1059 = vpack.c.b16 %v945, %v939
        %v1060 = vpack.c.b16 %v946, %v940
        %v1061 = vpack.c.b16 %v953, %v947
        %v1062 = vpack.c.b16 %v954, %v948
        %v1063 = vpack.c.b16 %v955, %v949
        %v1064 = vpack.c.b16 %v956, %v950
        %v1065 = vpack.c.b16 %v957, %v951
        %v1066 = vpack.c.b16 %v958, %v952
        %v1067 = vpack.c.b16 %v965, %v959
        %v1068 = vpack.c.b16 %v966, %v960
        %v1069 = vpack.c.b16 %v967, %v961
        %v1070 = vpack.c.b16 %v968, %v962
        %v1071 = vpack.c.b16 %v969, %v963
        %v1072 = vpack.c.b16 %v970, %v964
        %v1073 = vpack.c.b16 %v977, %v971
        %v1074 = vpack.c.b16 %v978, %v972
        %v1075 = vpack.c.b16 %v979, %v973
        %v1076 = vpack.c.b16 %v980, %v974
        %v1077 = vpack.c.b16 %v981, %v975
        %v1078 = vpack.c.b16 %v982, %v976
        %1175 = vmatpush.bf16.msra.mxu0 %v1025
        %1176 = vmatpush.bf16.msra.mxu0 %v1019
        %1177 = vmatpush.bf16.msra.mxu0 %v1013
        %1178 = vmatpush.bf16.msra.mxu0 %v1007
        %1179 = vmatpush.bf16.msra.mxu0 %v1001
        %1180 = vmatpush.bf16.msra.mxu0 %v995
        %1181 = vmatpush.bf16.msra.mxu0 %v989
        %1182 = vmatpush.bf16.msra.mxu0 %v983
        %1183 = vmatmul.bf16.gmra.mxu0 %v691
        %v1184 = vpop.f32.mrf.mxu0
        %v1185 = vadd.f32 %v676, %v1184
        %v1186 = vpop.f32.mrf.mxu0
        %1187 = vdwg.mxu0
        %1188 = vmatpush.bf16.msra.mxu0 %v1073
        %1189 = vmatpush.bf16.msra.mxu0 %v1067
        %1190 = vmatpush.bf16.msra.mxu0 %v1061
        %1191 = vmatpush.bf16.msra.mxu0 %v1055
        %1192 = vmatpush.bf16.msra.mxu0 %v1049
        %1193 = vmatpush.bf16.msra.mxu0 %v1043
        %1194 = vmatpush.bf16.msra.mxu0 %v1037
        %1195 = vmatpush.bf16.msra.mxu0 %v1031
        %1196 = vmatmul.bf16.gmra.mxu0 %v692
        %v1197 = vpop.f32.mrf.mxu0
        %v1198 = vadd.f32 %v1185, %v1197
        %v1199 = vpop.f32.mrf.mxu0
        %1200 = vdwg.mxu0
        %1201 = vmatpush.bf16.msra.mxu0 %v1026
        %1202 = vmatpush.bf16.msra.mxu0 %v1020
        %1203 = vmatpush.bf16.msra.mxu0 %v1014
        %1204 = vmatpush.bf16.msra.mxu0 %v1008
        %1205 = vmatpush.bf16.msra.mxu0 %v1002
        %1206 = vmatpush.bf16.msra.mxu0 %v996
        %1207 = vmatpush.bf16.msra.mxu0 %v990
        %1208 = vmatpush.bf16.msra.mxu0 %v984
        %1209 = vmatmul.bf16.gmra.mxu0 %v691
        %v1210 = vpop.f32.mrf.mxu0
        %v1211 = vadd.f32 %v677, %v1210
        %v1212 = vpop.f32.mrf.mxu0
        %1213 = vdwg.mxu0
        %1214 = vmatpush.bf16.msra.mxu0 %v1074
        %1215 = vmatpush.bf16.msra.mxu0 %v1068
        %1216 = vmatpush.bf16.msra.mxu0 %v1062
        %1217 = vmatpush.bf16.msra.mxu0 %v1056
        %1218 = vmatpush.bf16.msra.mxu0 %v1050
        %1219 = vmatpush.bf16.msra.mxu0 %v1044
        %1220 = vmatpush.bf16.msra.mxu0 %v1038
        %1221 = vmatpush.bf16.msra.mxu0 %v1032
        %1222 = vmatmul.bf16.gmra.mxu0 %v692
        %v1223 = vpop.f32.mrf.mxu0
        %v1224 = vadd.f32 %v1211, %v1223
        %v1225 = vpop.f32.mrf.mxu0
        %1226 = vdwg.mxu0
        %1227 = vmatpush.bf16.msra.mxu0 %v1027
        %1228 = vmatpush.bf16.msra.mxu0 %v1021
        %1229 = vmatpush.bf16.msra.mxu0 %v1015
        %1230 = vmatpush.bf16.msra.mxu0 %v1009
        %1231 = vmatpush.bf16.msra.mxu0 %v1003
        %1232 = vmatpush.bf16.msra.mxu0 %v997
        %1233 = vmatpush.bf16.msra.mxu0 %v991
        %1234 = vmatpush.bf16.msra.mxu0 %v985
        %1235 = vmatmul.bf16.gmra.mxu0 %v691
        %v1236 = vpop.f32.mrf.mxu0
        %v1237 = vadd.f32 %v678, %v1236
        %v1238 = vpop.f32.mrf.mxu0
        %1239 = vdwg.mxu0
        %1240 = vmatpush.bf16.msra.mxu0 %v1075
        %1241 = vmatpush.bf16.msra.mxu0 %v1069
        %1242 = vmatpush.bf16.msra.mxu0 %v1063
        %1243 = vmatpush.bf16.msra.mxu0 %v1057
        %1244 = vmatpush.bf16.msra.mxu0 %v1051
        %1245 = vmatpush.bf16.msra.mxu0 %v1045
        %1246 = vmatpush.bf16.msra.mxu0 %v1039
        %1247 = vmatpush.bf16.msra.mxu0 %v1033
        %1248 = vmatmul.bf16.gmra.mxu0 %v692
        %v1249 = vpop.f32.mrf.mxu0
        %v1250 = vadd.f32 %v1237, %v1249
        %v1251 = vpop.f32.mrf.mxu0
        %1252 = vdwg.mxu0
        %1253 = vmatpush.bf16.msra.mxu0 %v1028
        %1254 = vmatpush.bf16.msra.mxu0 %v1022
        %1255 = vmatpush.bf16.msra.mxu0 %v1016
        %1256 = vmatpush.bf16.msra.mxu0 %v1010
        %1257 = vmatpush.bf16.msra.mxu0 %v1004
        %1258 = vmatpush.bf16.msra.mxu0 %v998
        %1259 = vmatpush.bf16.msra.mxu0 %v992
        %1260 = vmatpush.bf16.msra.mxu0 %v986
        %1261 = vmatmul.bf16.gmra.mxu0 %v691
        %v1262 = vpop.f32.mrf.mxu0
        %v1263 = vadd.f32 %v679, %v1262
        %v1264 = vpop.f32.mrf.mxu0
        %1265 = vdwg.mxu0
        %1266 = vmatpush.bf16.msra.mxu0 %v1076
        %1267 = vmatpush.bf16.msra.mxu0 %v1070
        %1268 = vmatpush.bf16.msra.mxu0 %v1064
        %1269 = vmatpush.bf16.msra.mxu0 %v1058
        %1270 = vmatpush.bf16.msra.mxu0 %v1052
        %1271 = vmatpush.bf16.msra.mxu0 %v1046
        %1272 = vmatpush.bf16.msra.mxu0 %v1040
        %1273 = vmatpush.bf16.msra.mxu0 %v1034
        %1274 = vmatmul.bf16.gmra.mxu0 %v692
        %v1275 = vpop.f32.mrf.mxu0
        %v1276 = vadd.f32 %v1263, %v1275
        %v1277 = vpop.f32.mrf.mxu0
        %1278 = vdwg.mxu0
        %1279 = vmatpush.bf16.msra.mxu0 %v1029
        %1280 = vmatpush.bf16.msra.mxu0 %v1023
        %1281 = vmatpush.bf16.msra.mxu0 %v1017
        %1282 = vmatpush.bf16.msra.mxu0 %v1011
        %1283 = vmatpush.bf16.msra.mxu0 %v1005
        %1284 = vmatpush.bf16.msra.mxu0 %v999
        %1285 = vmatpush.bf16.msra.mxu0 %v993
        %1286 = vmatpush.bf16.msra.mxu0 %v987
        %1287 = vmatmul.bf16.gmra.mxu0 %v691
        %v1288 = vpop.f32.mrf.mxu0
        %v1289 = vadd.f32 %v680, %v1288
        %v1290 = vpop.f32.mrf.mxu0
        %1291 = vdwg.mxu0
        %1292 = vmatpush.bf16.msra.mxu0 %v1077
        %1293 = vmatpush.bf16.msra.mxu0 %v1071
        %1294 = vmatpush.bf16.msra.mxu0 %v1065
        %1295 = vmatpush.bf16.msra.mxu0 %v1059
        %1296 = vmatpush.bf16.msra.mxu0 %v1053
        %1297 = vmatpush.bf16.msra.mxu0 %v1047
        %1298 = vmatpush.bf16.msra.mxu0 %v1041
        %1299 = vmatpush.bf16.msra.mxu0 %v1035
        %1300 = vmatmul.bf16.gmra.mxu0 %v692
        %v1301 = vpop.f32.mrf.mxu0
        %v1302 = vadd.f32 %v1289, %v1301
        %v1303 = vpop.f32.mrf.mxu0
        %1304 = vdwg.mxu0
        %1305 = vmatpush.bf16.msra.mxu0 %v1030
        %1306 = vmatpush.bf16.msra.mxu0 %v1024
        %1307 = vmatpush.bf16.msra.mxu0 %v1018
        %1308 = vmatpush.bf16.msra.mxu0 %v1012
        %1309 = vmatpush.bf16.msra.mxu0 %v1006
        %1310 = vmatpush.bf16.msra.mxu0 %v1000
        %1311 = vmatpush.bf16.msra.mxu0 %v994
        %1312 = vmatpush.bf16.msra.mxu0 %v988
        %1313 = vmatmul.bf16.gmra.mxu0 %v691
        %v1314 = vpop.f32.mrf.mxu0
        %v1315 = vadd.f32 %v681, %v1314
        %v1316 = vpop.f32.mrf.mxu0
        %1317 = vdwg.mxu0
        %1318 = vmatpush.bf16.msra.mxu0 %v1078
        %1319 = vmatpush.bf16.msra.mxu0 %v1072
        %1320 = vmatpush.bf16.msra.mxu0 %v1066
        %1321 = vmatpush.bf16.msra.mxu0 %v1060
        %1322 = vmatpush.bf16.msra.mxu0 %v1054
        %1323 = vmatpush.bf16.msra.mxu0 %v1048
        %1324 = vmatpush.bf16.msra.mxu0 %v1042
        %1325 = vmatpush.bf16.msra.mxu0 %v1036
        %1326 = vmatmul.bf16.gmra.mxu0 %v692
        %v1327 = vpop.f32.mrf.mxu0
        %v1328 = vadd.f32 %v1315, %v1327
        %v1329 = vpop.f32.mrf.mxu0
        %1330 = vdwg.mxu0
        %v1331 = vpack.c.bf16 %v1224, %v1198
        %v1332 = vpack.c.bf16 %v1276, %v1250
        %v1333 = vpack.c.bf16 %v1328, %v1302
        %v1334 = vld [vmem:[%s1] sm:$0xff]
        %v1335 = vld [vmem:[%s570] sm:$0x1]
        %v1337 = vperm.slane %v1335, 0
        %v1339 = vadd.f32 %v1334, %v1337
        %1340 = vmatpush.bf16.xpose.msra.mxu0 0
        %1341 = vmatpush.bf16.xpose.msra.mxu0 0
        %1342 = vmatpush.bf16.xpose.msra.mxu0 0
        %1343 = vmatpush.bf16.xpose.msra.mxu0 0
        %1344 = vmatpush.bf16.xpose.msra.mxu0 0
        %1345 = vmatpush.bf16.xpose.msra.mxu0 0
        %1346 = vmatpush.bf16.xpose.msra.mxu0 0
        %1347 = vmatpush.bf16.xpose.msra.mxu0 %v1332
        %1348 = vmatmul.bf16.gmra.mxu0 %v1331
        %v1349 = vpop.f32.mrf.mxu0
        %v1350 = vadd.f32 %v1339, %v1349
        %v1351 = vpop.f32.mrf.mxu0
        %1352 = vdwg.mxu0
        %vm1353 = vcmask 64512
        %v1354 = vsel %vm1353, %v1350, -inf
        %1355 = vmax.xlane.f32.xlu0 %v1354
        %v1356 = vpop.xlane.xlu0 %1355
        %v1357 = vsub.f32 %v1350, %v1356
        %v1358 = vmul.f32 %v1357, 1.442695
        %v1359 = vpow.pop %v1358
        %v1360 = vsel %vm1353, %v1359, 0.0
        %1361 = vadd.xlane.f32.xlu0 %v1360
        %v1362 = vpop.xlane.xlu0 %1361
        %v1363 = vrcp.pop %v1362
        %v1364 = vmul.f32 %v1362, %v1363
        %v1365 = vsub.f32 1.0, %v1364
        %v1366 = vmul.f32 %v1363, %v1365
        %v1367 = vadd.f32 %v1363, %v1366
        %vm1368 = vweird.f32 %v1362
        %vm1369 = vweird.f32 %v1363
        %vm1370 = vmor %vm1368, %vm1369
        %v1371 = vsel %vm1370, %v1363, %v1367
        %v1372 = vand.u32 2147483647, %v1362
        %vm1373 = vcmp.eq.f32.partialorder %v1372, 8.507059e+37
        %v1374 = vand.u32 %v1362, 2147483648
        %v1375 = vor.u32 1.1754944e-38, %v1374
        %v1376 = vsel %vm1373, %v1375, %v1371
        %v1377 = vmul.f32 %v1359, %v1376
        %v1378 = vpack.c.bf16 %v1377, %v1377
        %v1380 = vsel %vm1353, %v1378, 0
        %vm1382 = vcmask 1043456
        %v1384 = vsel %vm1382, %v1333, 0
        %1386 = vmatpush.bf16.msra.mxu0 0
        %1387 = vmatpush.bf16.msra.mxu0 0
        %1388 = vmatpush.bf16.msra.mxu0 0
        %1389 = vmatpush.bf16.msra.mxu0 0
        %1390 = vmatpush.bf16.msra.mxu0 0
        %1391 = vmatpush.bf16.msra.mxu0 0
        %1392 = vmatpush.bf16.msra.mxu0 0
        %1393 = vmatpush.bf16.msra.mxu0 %v1384
        %1394 = vmatmul.bf16.gmra.mxu0 %v1380
        %v1395 = vpop.f32.mrf.mxu0
        %v1396 = vadd.f32 0.0, %v1395
        %v1397 = vpop.f32.mrf.mxu0
        %1398 = vdwg.mxu0
        %v1399 = vpack.c.bf16 %v1396, %v1396
        %1400 = vst [vmem:[#allocation2] sm:$0xf] %v1399
        %v1402 = vunpack.c.h.b16 %v1331
        %v1403 = vpack.c.b16 %v1402, %v1402
        %v1406 = vunpack.c.h.b16 %v1332
        %v1407 = vpack.c.b16 %v1406, %v1406
        %1409 = vmatpush.bf16.xpose.msra.mxu0 0
        %1410 = vmatpush.bf16.xpose.msra.mxu0 0
        %1411 = vmatpush.bf16.xpose.msra.mxu0 0
        %1412 = vmatpush.bf16.xpose.msra.mxu0 0
        %1413 = vmatpush.bf16.xpose.msra.mxu0 0
        %1414 = vmatpush.bf16.xpose.msra.mxu0 0
        %1415 = vmatpush.bf16.xpose.msra.mxu0 0
        %1416 = vmatpush.bf16.xpose.msra.mxu0 %v1407
        %1417 = vmatmul.bf16.gmra.mxu0 %v1403
        %v1418 = vpop.f32.mrf.mxu0
        %v1419 = vadd.f32 %v1339, %v1418
        %v1420 = vpop.f32.mrf.mxu0
        %1421 = vdwg.mxu0
        %v1422 = vsel %vm1353, %v1419, -inf
        %1423 = vmax.xlane.f32.xlu0 %v1422
        %v1424 = vpop.xlane.xlu0 %1423
        %v1425 = vsub.f32 %v1419, %v1424
        %v1426 = vmul.f32 %v1425, 1.442695
        %v1427 = vpow.pop %v1426
        %v1428 = vsel %vm1353, %v1427, 0.0
        %1429 = vadd.xlane.f32.xlu0 %v1428
        %v1430 = vpop.xlane.xlu0 %1429
        %v1431 = vrcp.pop %v1430
        %v1432 = vmul.f32 %v1430, %v1431
        %v1433 = vsub.f32 1.0, %v1432
        %v1434 = vmul.f32 %v1431, %v1433
        %v1435 = vadd.f32 %v1431, %v1434
        %vm1436 = vweird.f32 %v1430
        %vm1437 = vweird.f32 %v1431
        %vm1438 = vmor %vm1436, %vm1437
        %v1439 = vsel %vm1438, %v1431, %v1435
        %v1440 = vand.u32 2147483647, %v1430
        %vm1441 = vcmp.eq.f32.partialorder %v1440, 8.507059e+37
        %v1442 = vand.u32 %v1430, 2147483648
        %v1443 = vor.u32 1.1754944e-38, %v1442
        %v1444 = vsel %vm1441, %v1443, %v1439
        %v1445 = vmul.f32 %v1427, %v1444
        %v1446 = vpack.c.bf16 %v1445, %v1445
        %v1448 = vunpack.c.h.b16 %v1333
        %v1449 = vpack.c.b16 %v1448, %v1448
        %v1451 = vsel %vm1353, %v1446, 0
        %v1454 = vsel %vm1382, %v1449, 0
        %1456 = vmatpush.bf16.msra.mxu0 0
        %1457 = vmatpush.bf16.msra.mxu0 0
        %1458 = vmatpush.bf16.msra.mxu0 0
        %1459 = vmatpush.bf16.msra.mxu0 0
        %1460 = vmatpush.bf16.msra.mxu0 0
        %1461 = vmatpush.bf16.msra.mxu0 0
        %1462 = vmatpush.bf16.msra.mxu0 0
        %1463 = vmatpush.bf16.msra.mxu0 %v1454
        %1464 = vmatmul.bf16.gmra.mxu0 %v1451
        %v1465 = vpop.f32.mrf.mxu0
        %v1466 = vadd.f32 0.0, %v1465
        %v1467 = vpop.f32.mrf.mxu0
        %1468 = vdwg.mxu0
        %v1469 = vpack.c.bf16 %v1466, %v1466
        %1470 = vst [vmem:[#allocation2 + $0x4] sm:$0xf] %v1469
        %v1471 = vld [vmem:[#allocation2] sm:$0xff]
        %v1472 = vld [vmem:[#allocation5] sm:$0xff]
        %v1473 = vld [vmem:[#allocation5 + $0x8] sm:$0xff]
        %v1474 = vld [vmem:[#allocation5 + $0x10] sm:$0xff]
        %v1475 = vld [vmem:[#allocation5 + $0x18] sm:$0xff]
        %v1476 = vld [vmem:[#allocation5 + $0x20] sm:$0xff]
        %v1477 = vld [vmem:[#allocation5 + $0x28] sm:$0xff]
        %v1478 = vld [vmem:[#allocation5 + $0x30] sm:$0xff]
        %v1479 = vld [vmem:[#allocation5 + $0x38] sm:$0xff]
        %v1480 = vld [vmem:[#allocation5 + $0x40] sm:$0xff]
        %v1481 = vld [vmem:[#allocation5 + $0x48] sm:$0xff]
        %v1482 = vld [vmem:[#allocation5 + $0x50] sm:$0xff]
        %v1483 = vld [vmem:[#allocation5 + $0x58] sm:$0xff]
        %v1484 = vld [vmem:[#allocation5 + $0x60] sm:$0xff]
        %v1485 = vld [vmem:[#allocation5 + $0x68] sm:$0xff]
        %v1486 = vld [vmem:[#allocation5 + $0x70] sm:$0xff]
        %v1487 = vld [vmem:[#allocation5 + $0x78] sm:$0xff]
        %v1488 = vld [vmem:[#allocation5 + $0x80] sm:$0xff]
        %v1489 = vld [vmem:[#allocation5 + $0x88] sm:$0xff]
        %v1490 = vld [vmem:[#allocation5 + $0x90] sm:$0xff]
        %v1491 = vld [vmem:[#allocation5 + $0x98] sm:$0xff]
        %v1492 = vld [vmem:[#allocation5 + $0xa0] sm:$0xff]
        %v1493 = vld [vmem:[#allocation5 + $0xa8] sm:$0xff]
        %v1494 = vld [vmem:[#allocation5 + $0xb0] sm:$0xff]
        %v1495 = vld [vmem:[#allocation5 + $0xb8] sm:$0xff]
        %v1496 = vld [vmem:[#allocation5 + $0xc0] sm:$0xff]
        %v1497 = vld [vmem:[#allocation5 + $0xc8] sm:$0xff]
        %v1498 = vld [vmem:[#allocation5 + $0xd0] sm:$0xff]
        %v1499 = vld [vmem:[#allocation5 + $0xd8] sm:$0xff]
        %v1500 = vld [vmem:[#allocation5 + $0xe0] sm:$0xff]
        %v1501 = vld [vmem:[#allocation5 + $0xe8] sm:$0xff]
        %v1502 = vld [vmem:[#allocation5 + $0xf0] sm:$0xff]
        %v1503 = vld [vmem:[#allocation5 + $0xf8] sm:$0xff]
        %v1504 = vld [vmem:[%s6] sm:$0x3]
        %v1506 = vperm.slane %v1504, 0
        %v1507 = vperm.slane %v1504, 1
        %v1511 = vunpack.c.l.b16 %v1471
        %v1512 = vunpack.c.h.b16 %v1471
        %v1513 = vpack.c.b16 %v1511, %v1511
        %v1514 = vpack.c.b16 %v1512, %v1512
        %v1549 = vunpack.c.l.b16 %v1472
        %v1550 = vunpack.c.h.b16 %v1472
        %v1551 = vunpack.c.l.b16 %v1473
        %v1552 = vunpack.c.h.b16 %v1473
        %v1553 = vunpack.c.l.b16 %v1474
        %v1554 = vunpack.c.h.b16 %v1474
        %v1555 = vunpack.c.l.b16 %v1475
        %v1556 = vunpack.c.h.b16 %v1475
        %v1557 = vunpack.c.l.b16 %v1476
        %v1558 = vunpack.c.h.b16 %v1476
        %v1559 = vunpack.c.l.b16 %v1477
        %v1560 = vunpack.c.h.b16 %v1477
        %v1561 = vunpack.c.l.b16 %v1478
        %v1562 = vunpack.c.h.b16 %v1478
        %v1563 = vunpack.c.l.b16 %v1479
        %v1564 = vunpack.c.h.b16 %v1479
        %v1565 = vunpack.c.l.b16 %v1480
        %v1566 = vunpack.c.h.b16 %v1480
        %v1567 = vunpack.c.l.b16 %v1481
        %v1568 = vunpack.c.h.b16 %v1481
        %v1569 = vunpack.c.l.b16 %v1482
        %v1570 = vunpack.c.h.b16 %v1482
        %v1571 = vunpack.c.l.b16 %v1483
        %v1572 = vunpack.c.h.b16 %v1483
        %v1573 = vunpack.c.l.b16 %v1484
        %v1574 = vunpack.c.h.b16 %v1484
        %v1575 = vunpack.c.l.b16 %v1485
        %v1576 = vunpack.c.h.b16 %v1485
        %v1577 = vunpack.c.l.b16 %v1486
        %v1578 = vunpack.c.h.b16 %v1486
        %v1579 = vunpack.c.l.b16 %v1487
        %v1580 = vunpack.c.h.b16 %v1487
        %v1581 = vunpack.c.l.b16 %v1488
        %v1582 = vunpack.c.h.b16 %v1488
        %v1583 = vunpack.c.l.b16 %v1489
        %v1584 = vunpack.c.h.b16 %v1489
        %v1585 = vunpack.c.l.b16 %v1490
        %v1586 = vunpack.c.h.b16 %v1490
        %v1587 = vunpack.c.l.b16 %v1491
        %v1588 = vunpack.c.h.b16 %v1491
        %v1589 = vunpack.c.l.b16 %v1492
        %v1590 = vunpack.c.h.b16 %v1492
        %v1591 = vunpack.c.l.b16 %v1493
        %v1592 = vunpack.c.h.b16 %v1493
        %v1593 = vunpack.c.l.b16 %v1494
        %v1594 = vunpack.c.h.b16 %v1494
        %v1595 = vunpack.c.l.b16 %v1495
        %v1596 = vunpack.c.h.b16 %v1495
        %v1597 = vunpack.c.l.b16 %v1496
        %v1598 = vunpack.c.h.b16 %v1496
        %v1599 = vunpack.c.l.b16 %v1497
        %v1600 = vunpack.c.h.b16 %v1497
        %v1601 = vunpack.c.l.b16 %v1498
        %v1602 = vunpack.c.h.b16 %v1498
        %v1603 = vunpack.c.l.b16 %v1499
        %v1604 = vunpack.c.h.b16 %v1499
        %v1605 = vunpack.c.l.b16 %v1500
        %v1606 = vunpack.c.h.b16 %v1500
        %v1607 = vunpack.c.l.b16 %v1501
        %v1608 = vunpack.c.h.b16 %v1501
        %v1609 = vunpack.c.l.b16 %v1502
        %v1610 = vunpack.c.h.b16 %v1502
        %v1611 = vunpack.c.l.b16 %v1503
        %v1612 = vunpack.c.h.b16 %v1503
        %v1613 = vpack.c.b16 %v1551, %v1549
        %v1614 = vpack.c.b16 %v1552, %v1550
        %v1615 = vpack.c.b16 %v1555, %v1553
        %v1616 = vpack.c.b16 %v1556, %v1554
        %v1617 = vpack.c.b16 %v1559, %v1557
        %v1618 = vpack.c.b16 %v1560, %v1558
        %v1619 = vpack.c.b16 %v1563, %v1561
        %v1620 = vpack.c.b16 %v1564, %v1562
        %v1621 = vpack.c.b16 %v1567, %v1565
        %v1622 = vpack.c.b16 %v1568, %v1566
        %v1623 = vpack.c.b16 %v1571, %v1569
        %v1624 = vpack.c.b16 %v1572, %v1570
        %v1625 = vpack.c.b16 %v1575, %v1573
        %v1626 = vpack.c.b16 %v1576, %v1574
        %v1627 = vpack.c.b16 %v1579, %v1577
        %v1628 = vpack.c.b16 %v1580, %v1578
        %v1629 = vpack.c.b16 %v1583, %v1581
        %v1630 = vpack.c.b16 %v1584, %v1582
        %v1631 = vpack.c.b16 %v1587, %v1585
        %v1632 = vpack.c.b16 %v1588, %v1586
        %v1633 = vpack.c.b16 %v1591, %v1589
        %v1634 = vpack.c.b16 %v1592, %v1590
        %v1635 = vpack.c.b16 %v1595, %v1593
        %v1636 = vpack.c.b16 %v1596, %v1594
        %v1637 = vpack.c.b16 %v1599, %v1597
        %v1638 = vpack.c.b16 %v1600, %v1598
        %v1639 = vpack.c.b16 %v1603, %v1601
        %v1640 = vpack.c.b16 %v1604, %v1602
        %v1641 = vpack.c.b16 %v1607, %v1605
        %v1642 = vpack.c.b16 %v1608, %v1606
        %v1643 = vpack.c.b16 %v1611, %v1609
        %v1644 = vpack.c.b16 %v1612, %v1610
        %1677 = vmatpush.bf16.msra.mxu0 %v1627
        %1678 = vmatpush.bf16.msra.mxu0 %v1625
        %1679 = vmatpush.bf16.msra.mxu0 %v1623
        %1680 = vmatpush.bf16.msra.mxu0 %v1621
        %1681 = vmatpush.bf16.msra.mxu0 %v1619
        %1682 = vmatpush.bf16.msra.mxu0 %v1617
        %1683 = vmatpush.bf16.msra.mxu0 %v1615
        %1684 = vmatpush.bf16.msra.mxu0 %v1613
        %1685 = vmatmul.bf16.gmra.mxu0 %v1513
        %v1686 = vpop.f32.mrf.mxu0
        %v1687 = vadd.f32 %v1506, %v1686
        %v1688 = vpop.f32.mrf.mxu0
        %1689 = vdwg.mxu0
        %1690 = vmatpush.bf16.msra.mxu0 %v1643
        %1691 = vmatpush.bf16.msra.mxu0 %v1641
        %1692 = vmatpush.bf16.msra.mxu0 %v1639
        %1693 = vmatpush.bf16.msra.mxu0 %v1637
        %1694 = vmatpush.bf16.msra.mxu0 %v1635
        %1695 = vmatpush.bf16.msra.mxu0 %v1633
        %1696 = vmatpush.bf16.msra.mxu0 %v1631
        %1697 = vmatpush.bf16.msra.mxu0 %v1629
        %1698 = vmatmul.bf16.gmra.mxu0 %v1514
        %v1699 = vpop.f32.mrf.mxu0
        %v1700 = vadd.f32 %v1687, %v1699
        %v1701 = vpop.f32.mrf.mxu0
        %1702 = vdwg.mxu0
        %1703 = vmatpush.bf16.msra.mxu0 %v1628
        %1704 = vmatpush.bf16.msra.mxu0 %v1626
        %1705 = vmatpush.bf16.msra.mxu0 %v1624
        %1706 = vmatpush.bf16.msra.mxu0 %v1622
        %1707 = vmatpush.bf16.msra.mxu0 %v1620
        %1708 = vmatpush.bf16.msra.mxu0 %v1618
        %1709 = vmatpush.bf16.msra.mxu0 %v1616
        %1710 = vmatpush.bf16.msra.mxu0 %v1614
        %1711 = vmatmul.bf16.gmra.mxu0 %v1513
        %v1712 = vpop.f32.mrf.mxu0
        %v1713 = vadd.f32 %v1507, %v1712
        %v1714 = vpop.f32.mrf.mxu0
        %1715 = vdwg.mxu0
        %1716 = vmatpush.bf16.msra.mxu0 %v1644
        %1717 = vmatpush.bf16.msra.mxu0 %v1642
        %1718 = vmatpush.bf16.msra.mxu0 %v1640
        %1719 = vmatpush.bf16.msra.mxu0 %v1638
        %1720 = vmatpush.bf16.msra.mxu0 %v1636
        %1721 = vmatpush.bf16.msra.mxu0 %v1634
        %1722 = vmatpush.bf16.msra.mxu0 %v1632
        %1723 = vmatpush.bf16.msra.mxu0 %v1630
        %1724 = vmatmul.bf16.gmra.mxu0 %v1514
        %v1725 = vpop.f32.mrf.mxu0
        %v1726 = vadd.f32 %v1713, %v1725
        %v1727 = vpop.f32.mrf.mxu0
        %1728 = vdwg.mxu0
        %v1729 = vunpack.c.l.bf16 %v577
        %v1730 = vunpack.c.h.bf16 %v577
        %v1731 = vadd.f32 %v1700, %v1729
        %v1732 = vadd.f32 %v1726, %v1730
        %v1733 = vld [vmem:[%s7] sm:$0x3]
        %v1734 = vld [vmem:[%s8] sm:$0x3]
        %v1735 = vadd.f32 %v1731, %v1732
        %1736 = vadd.xlane.f32.xlu0 %v1735
        %v1737 = vpop.xlane.xlu0 %1736
        %v1738 = vmul.f32 %v1737, 0.00390625
        %v1739 = vsub.f32 %v1731, %v1738
        %v1740 = vsub.f32 %v1732, %v1738
        %v1741 = vmul.f32 %v1739, %v1739
        %v1742 = vmul.f32 %v1740, %v1740
        %v1743 = vadd.f32 %v1741, %v1742
        %1744 = vadd.xlane.f32.xlu0 %v1743
        %v1745 = vpop.xlane.xlu0 %1744
        %v1746 = vmul.f32 %v1745, 0.00390625
        %v1747 = vadd.f32 %v1746, 1e-05
        %v1748 = vrsqrt.pop %v1747
        %v1749 = vmul.f32 %v1748, %v1747
        %v1750 = vmul.f32 %v1749, %v1748
        %v1751 = vmul.f32 0.5, %v1750
        %v1752 = vsub.f32 1.5, %v1751
        %v1753 = vmul.f32 %v1748, %v1752
        %vm1754 = vweird.f32 %v1747
        %vm1755 = vweird.f32 %v1748
        %vm1756 = vmor %vm1754, %vm1755
        %v1757 = vsel %vm1756, %v1748, %v1753
        %v1758 = vmul.f32 %v1739, %v1757
        %v1759 = vmul.f32 %v1740, %v1757
        %v1761 = vperm.slane %v1733, 0
        %v1762 = vperm.slane %v1733, 1
        %v1765 = vmul.f32 %v1758, %v1761
        %v1766 = vmul.f32 %v1759, %v1762
        %v1768 = vperm.slane %v1734, 0
        %v1769 = vperm.slane %v1734, 1
        %v1772 = vadd.f32 %v1765, %v1768
        %v1773 = vadd.f32 %v1766, %v1769
        %v1774 = vpack.c.bf16 %v1772, %v1772
        %v1775 = vpack.c.bf16 %v1773, %v1773
        %v1776 = vld [vmem:[#allocation7] sm:$0xff]
        %v1777 = vld [vmem:[#allocation7 + $0x8] sm:$0xff]
        %v1778 = vld [vmem:[#allocation7 + $0x10] sm:$0xff]
        %v1779 = vld [vmem:[#allocation7 + $0x18] sm:$0xff]
        %v1780 = vld [vmem:[#allocation7 + $0x20] sm:$0xff]
        %v1781 = vld [vmem:[#allocation7 + $0x28] sm:$0xff]
        %v1782 = vld [vmem:[#allocation7 + $0x30] sm:$0xff]
        %v1783 = vld [vmem:[#allocation7 + $0x38] sm:$0xff]
        %v1784 = vld [vmem:[#allocation7 + $0x40] sm:$0xff]
        %v1785 = vld [vmem:[#allocation7 + $0x48] sm:$0xff]
        %v1786 = vld [vmem:[#allocation7 + $0x50] sm:$0xff]
        %v1787 = vld [vmem:[#allocation7 + $0x58] sm:$0xff]
        %v1788 = vld [vmem:[#allocation7 + $0x60] sm:$0xff]
        %v1789 = vld [vmem:[#allocation7 + $0x68] sm:$0xff]
        %v1790 = vld [vmem:[#allocation7 + $0x70] sm:$0xff]
        %v1791 = vld [vmem:[#allocation7 + $0x78] sm:$0xff]
        %v1792 = vld [vmem:[#allocation7 + $0x80] sm:$0xff]
        %v1793 = vld [vmem:[#allocation7 + $0x88] sm:$0xff]
        %v1794 = vld [vmem:[#allocation7 + $0x90] sm:$0xff]
        %v1795 = vld [vmem:[#allocation7 + $0x98] sm:$0xff]
        %v1796 = vld [vmem:[#allocation7 + $0xa0] sm:$0xff]
        %v1797 = vld [vmem:[#allocation7 + $0xa8] sm:$0xff]
        %v1798 = vld [vmem:[#allocation7 + $0xb0] sm:$0xff]
        %v1799 = vld [vmem:[#allocation7 + $0xb8] sm:$0xff]
        %v1800 = vld [vmem:[#allocation7 + $0xc0] sm:$0xff]
        %v1801 = vld [vmem:[#allocation7 + $0xc8] sm:$0xff]
        %v1802 = vld [vmem:[#allocation7 + $0xd0] sm:$0xff]
        %v1803 = vld [vmem:[#allocation7 + $0xd8] sm:$0xff]
        %v1804 = vld [vmem:[#allocation7 + $0xe0] sm:$0xff]
        %v1805 = vld [vmem:[#allocation7 + $0xe8] sm:$0xff]
        %v1806 = vld [vmem:[#allocation7 + $0xf0] sm:$0xff]
        %v1807 = vld [vmem:[#allocation7 + $0xf8] sm:$0xff]
        %v1808 = vld [vmem:[#allocation7 + $0x100] sm:$0xff]
        %v1809 = vld [vmem:[#allocation7 + $0x108] sm:$0xff]
        %v1810 = vld [vmem:[#allocation7 + $0x110] sm:$0xff]
        %v1811 = vld [vmem:[#allocation7 + $0x118] sm:$0xff]
        %v1812 = vld [vmem:[#allocation7 + $0x120] sm:$0xff]
        %v1813 = vld [vmem:[#allocation7 + $0x128] sm:$0xff]
        %v1814 = vld [vmem:[#allocation7 + $0x130] sm:$0xff]
        %v1815 = vld [vmem:[#allocation7 + $0x138] sm:$0xff]
        %v1816 = vld [vmem:[#allocation7 + $0x140] sm:$0xff]
        %v1817 = vld [vmem:[#allocation7 + $0x148] sm:$0xff]
        %v1818 = vld [vmem:[#allocation7 + $0x150] sm:$0xff]
        %v1819 = vld [vmem:[#allocation7 + $0x158] sm:$0xff]
        %v1820 = vld [vmem:[#allocation7 + $0x160] sm:$0xff]
        %v1821 = vld [vmem:[#allocation7 + $0x168] sm:$0xff]
        %v1822 = vld [vmem:[#allocation7 + $0x170] sm:$0xff]
        %v1823 = vld [vmem:[#allocation7 + $0x178] sm:$0xff]
        %v1824 = vld [vmem:[#allocation7 + $0x180] sm:$0xff]
        %v1825 = vld [vmem:[#allocation7 + $0x188] sm:$0xff]
        %v1826 = vld [vmem:[#allocation7 + $0x190] sm:$0xff]
        %v1827 = vld [vmem:[#allocation7 + $0x198] sm:$0xff]
        %v1828 = vld [vmem:[#allocation7 + $0x1a0] sm:$0xff]
        %v1829 = vld [vmem:[#allocation7 + $0x1a8] sm:$0xff]
        %v1830 = vld [vmem:[#allocation7 + $0x1b0] sm:$0xff]
        %v1831 = vld [vmem:[#allocation7 + $0x1b8] sm:$0xff]
        %v1832 = vld [vmem:[#allocation7 + $0x1c0] sm:$0xff]
        %v1833 = vld [vmem:[#allocation7 + $0x1c8] sm:$0xff]
        %v1834 = vld [vmem:[#allocation7 + $0x1d0] sm:$0xff]
        %v1835 = vld [vmem:[#allocation7 + $0x1d8] sm:$0xff]
        %v1836 = vld [vmem:[#allocation7 + $0x1e0] sm:$0xff]
        %v1837 = vld [vmem:[#allocation7 + $0x1e8] sm:$0xff]
        %v1838 = vld [vmem:[#allocation7 + $0x1f0] sm:$0xff]
        %v1839 = vld [vmem:[#allocation7 + $0x1f8] sm:$0xff]
        %v1840 = vld [vmem:[%s10] sm:$0xf]
        %v1842 = vperm.slane %v1840, 0
        %v1843 = vperm.slane %v1840, 1
        %v1844 = vperm.slane %v1840, 2
        %v1845 = vperm.slane %v1840, 3
        %v1914 = vunpack.c.l.b16 %v1776
        %v1915 = vunpack.c.h.b16 %v1776
        %v1916 = vunpack.c.l.b16 %v1777
        %v1917 = vunpack.c.h.b16 %v1777
        %v1918 = vunpack.c.l.b16 %v1778
        %v1919 = vunpack.c.h.b16 %v1778
        %v1920 = vunpack.c.l.b16 %v1779
        %v1921 = vunpack.c.h.b16 %v1779
        %v1922 = vunpack.c.l.b16 %v1780
        %v1923 = vunpack.c.h.b16 %v1780
        %v1924 = vunpack.c.l.b16 %v1781
        %v1925 = vunpack.c.h.b16 %v1781
        %v1926 = vunpack.c.l.b16 %v1782
        %v1927 = vunpack.c.h.b16 %v1782
        %v1928 = vunpack.c.l.b16 %v1783
        %v1929 = vunpack.c.h.b16 %v1783
        %v1930 = vunpack.c.l.b16 %v1784
        %v1931 = vunpack.c.h.b16 %v1784
        %v1932 = vunpack.c.l.b16 %v1785
        %v1933 = vunpack.c.h.b16 %v1785
        %v1934 = vunpack.c.l.b16 %v1786
        %v1935 = vunpack.c.h.b16 %v1786
        %v1936 = vunpack.c.l.b16 %v1787
        %v1937 = vunpack.c.h.b16 %v1787
        %v1938 = vunpack.c.l.b16 %v1788
        %v1939 = vunpack.c.h.b16 %v1788
        %v1940 = vunpack.c.l.b16 %v1789
        %v1941 = vunpack.c.h.b16 %v1789
        %v1942 = vunpack.c.l.b16 %v1790
        %v1943 = vunpack.c.h.b16 %v1790
        %v1944 = vunpack.c.l.b16 %v1791
        %v1945 = vunpack.c.h.b16 %v1791
        %v1946 = vunpack.c.l.b16 %v1792
        %v1947 = vunpack.c.h.b16 %v1792
        %v1948 = vunpack.c.l.b16 %v1793
        %v1949 = vunpack.c.h.b16 %v1793
        %v1950 = vunpack.c.l.b16 %v1794
        %v1951 = vunpack.c.h.b16 %v1794
        %v1952 = vunpack.c.l.b16 %v1795
        %v1953 = vunpack.c.h.b16 %v1795
        %v1954 = vunpack.c.l.b16 %v1796
        %v1955 = vunpack.c.h.b16 %v1796
        %v1956 = vunpack.c.l.b16 %v1797
        %v1957 = vunpack.c.h.b16 %v1797
        %v1958 = vunpack.c.l.b16 %v1798
        %v1959 = vunpack.c.h.b16 %v1798
        %v1960 = vunpack.c.l.b16 %v1799
        %v1961 = vunpack.c.h.b16 %v1799
        %v1962 = vunpack.c.l.b16 %v1800
        %v1963 = vunpack.c.h.b16 %v1800
        %v1964 = vunpack.c.l.b16 %v1801
        %v1965 = vunpack.c.h.b16 %v1801
        %v1966 = vunpack.c.l.b16 %v1802
        %v1967 = vunpack.c.h.b16 %v1802
        %v1968 = vunpack.c.l.b16 %v1803
        %v1969 = vunpack.c.h.b16 %v1803
        %v1970 = vunpack.c.l.b16 %v1804
        %v1971 = vunpack.c.h.b16 %v1804
        %v1972 = vunpack.c.l.b16 %v1805
        %v1973 = vunpack.c.h.b16 %v1805
        %v1974 = vunpack.c.l.b16 %v1806
        %v1975 = vunpack.c.h.b16 %v1806
        %v1976 = vunpack.c.l.b16 %v1807
        %v1977 = vunpack.c.h.b16 %v1807
        %v1978 = vunpack.c.l.b16 %v1808
        %v1979 = vunpack.c.h.b16 %v1808
        %v1980 = vunpack.c.l.b16 %v1809
        %v1981 = vunpack.c.h.b16 %v1809
        %v1982 = vunpack.c.l.b16 %v1810
        %v1983 = vunpack.c.h.b16 %v1810
        %v1984 = vunpack.c.l.b16 %v1811
        %v1985 = vunpack.c.h.b16 %v1811
        %v1986 = vunpack.c.l.b16 %v1812
        %v1987 = vunpack.c.h.b16 %v1812
        %v1988 = vunpack.c.l.b16 %v1813
        %v1989 = vunpack.c.h.b16 %v1813
        %v1990 = vunpack.c.l.b16 %v1814
        %v1991 = vunpack.c.h.b16 %v1814
        %v1992 = vunpack.c.l.b16 %v1815
        %v1993 = vunpack.c.h.b16 %v1815
        %v1994 = vunpack.c.l.b16 %v1816
        %v1995 = vunpack.c.h.b16 %v1816
        %v1996 = vunpack.c.l.b16 %v1817
        %v1997 = vunpack.c.h.b16 %v1817
        %v1998 = vunpack.c.l.b16 %v1818
        %v1999 = vunpack.c.h.b16 %v1818
        %v2000 = vunpack.c.l.b16 %v1819
        %v2001 = vunpack.c.h.b16 %v1819
        %v2002 = vunpack.c.l.b16 %v1820
        %v2003 = vunpack.c.h.b16 %v1820
        %v2004 = vunpack.c.l.b16 %v1821
        %v2005 = vunpack.c.h.b16 %v1821
        %v2006 = vunpack.c.l.b16 %v1822
        %v2007 = vunpack.c.h.b16 %v1822
        %v2008 = vunpack.c.l.b16 %v1823
        %v2009 = vunpack.c.h.b16 %v1823
        %v2010 = vunpack.c.l.b16 %v1824
        %v2011 = vunpack.c.h.b16 %v1824
        %v2012 = vunpack.c.l.b16 %v1825
        %v2013 = vunpack.c.h.b16 %v1825
        %v2014 = vunpack.c.l.b16 %v1826
        %v2015 = vunpack.c.h.b16 %v1826
        %v2016 = vunpack.c.l.b16 %v1827
        %v2017 = vunpack.c.h.b16 %v1827
        %v2018 = vunpack.c.l.b16 %v1828
        %v2019 = vunpack.c.h.b16 %v1828
        %v2020 = vunpack.c.l.b16 %v1829
        %v2021 = vunpack.c.h.b16 %v1829
        %v2022 = vunpack.c.l.b16 %v1830
        %v2023 = vunpack.c.h.b16 %v1830
        %v2024 = vunpack.c.l.b16 %v1831
        %v2025 = vunpack.c.h.b16 %v1831
        %v2026 = vunpack.c.l.b16 %v1832
        %v2027 = vunpack.c.h.b16 %v1832
        %v2028 = vunpack.c.l.b16 %v1833
        %v2029 = vunpack.c.h.b16 %v1833
        %v2030 = vunpack.c.l.b16 %v1834
        %v2031 = vunpack.c.h.b16 %v1834
        %v2032 = vunpack.c.l.b16 %v1835
        %v2033 = vunpack.c.h.b16 %v1835
        %v2034 = vunpack.c.l.b16 %v1836
        %v2035 = vunpack.c.h.b16 %v1836
        %v2036 = vunpack.c.l.b16 %v1837
        %v2037 = vunpack.c.h.b16 %v1837
        %v2038 = vunpack.c.l.b16 %v1838
        %v2039 = vunpack.c.h.b16 %v1838
        %v2040 = vunpack.c.l.b16 %v1839
        %v2041 = vunpack.c.h.b16 %v1839
        %v2042 = vpack.c.b16 %v1918, %v1914
        %v2043 = vpack.c.b16 %v1919, %v1915
        %v2044 = vpack.c.b16 %v1920, %v1916
        %v2045 = vpack.c.b16 %v1921, %v1917
        %v2046 = vpack.c.b16 %v1926, %v1922
        %v2047 = vpack.c.b16 %v1927, %v1923
        %v2048 = vpack.c.b16 %v1928, %v1924
        %v2049 = vpack.c.b16 %v1929, %v1925
        %v2050 = vpack.c.b16 %v1934, %v1930
        %v2051 = vpack.c.b16 %v1935, %v1931
        %v2052 = vpack.c.b16 %v1936, %v1932
        %v2053 = vpack.c.b16 %v1937, %v1933
        %v2054 = vpack.c.b16 %v1942, %v1938
        %v2055 = vpack.c.b16 %v1943, %v1939
        %v2056 = vpack.c.b16 %v1944, %v1940
        %v2057 = vpack.c.b16 %v1945, %v1941
        %v2058 = vpack.c.b16 %v1950, %v1946
        %v2059 = vpack.c.b16 %v1951, %v1947
        %v2060 = vpack.c.b16 %v1952, %v1948
        %v2061 = vpack.c.b16 %v1953, %v1949
        %v2062 = vpack.c.b16 %v1958, %v1954
        %v2063 = vpack.c.b16 %v1959, %v1955
        %v2064 = vpack.c.b16 %v1960, %v1956
        %v2065 = vpack.c.b16 %v1961, %v1957
        %v2066 = vpack.c.b16 %v1966, %v1962
        %v2067 = vpack.c.b16 %v1967, %v1963
        %v2068 = vpack.c.b16 %v1968, %v1964
        %v2069 = vpack.c.b16 %v1969, %v1965
        %v2070 = vpack.c.b16 %v1974, %v1970
        %v2071 = vpack.c.b16 %v1975, %v1971
        %v2072 = vpack.c.b16 %v1976, %v1972
        %v2073 = vpack.c.b16 %v1977, %v1973
        %v2074 = vpack.c.b16 %v1982, %v1978
        %v2075 = vpack.c.b16 %v1983, %v1979
        %v2076 = vpack.c.b16 %v1984, %v1980
        %v2077 = vpack.c.b16 %v1985, %v1981
        %v2078 = vpack.c.b16 %v1990, %v1986
        %v2079 = vpack.c.b16 %v1991, %v1987
        %v2080 = vpack.c.b16 %v1992, %v1988
        %v2081 = vpack.c.b16 %v1993, %v1989
        %v2082 = vpack.c.b16 %v1998, %v1994
        %v2083 = vpack.c.b16 %v1999, %v1995
        %v2084 = vpack.c.b16 %v2000, %v1996
        %v2085 = vpack.c.b16 %v2001, %v1997
        %v2086 = vpack.c.b16 %v2006, %v2002
        %v2087 = vpack.c.b16 %v2007, %v2003
        %v2088 = vpack.c.b16 %v2008, %v2004
        %v2089 = vpack.c.b16 %v2009, %v2005
        %v2090 = vpack.c.b16 %v2014, %v2010
        %v2091 = vpack.c.b16 %v2015, %v2011
        %v2092 = vpack.c.b16 %v2016, %v2012
        %v2093 = vpack.c.b16 %v2017, %v2013
        %v2094 = vpack.c.b16 %v2022, %v2018
        %v2095 = vpack.c.b16 %v2023, %v2019
        %v2096 = vpack.c.b16 %v2024, %v2020
        %v2097 = vpack.c.b16 %v2025, %v2021
        %v2098 = vpack.c.b16 %v2030, %v2026
        %v2099 = vpack.c.b16 %v2031, %v2027
        %v2100 = vpack.c.b16 %v2032, %v2028
        %v2101 = vpack.c.b16 %v2033, %v2029
        %v2102 = vpack.c.b16 %v2038, %v2034
        %v2103 = vpack.c.b16 %v2039, %v2035
        %v2104 = vpack.c.b16 %v2040, %v2036
        %v2105 = vpack.c.b16 %v2041, %v2037
        %2170 = vmatpush.bf16.msra.mxu0 %v2070
        %2171 = vmatpush.bf16.msra.mxu0 %v2066
        %2172 = vmatpush.bf16.msra.mxu0 %v2062
        %2173 = vmatpush.bf16.msra.mxu0 %v2058
        %2174 = vmatpush.bf16.msra.mxu0 %v2054
        %2175 = vmatpush.bf16.msra.mxu0 %v2050
        %2176 = vmatpush.bf16.msra.mxu0 %v2046
        %2177 = vmatpush.bf16.msra.mxu0 %v2042
        %2178 = vmatmul.bf16.gmra.mxu0 %v1774
        %v2179 = vpop.f32.mrf.mxu0
        %v2180 = vadd.f32 %v1842, %v2179
        %v2181 = vpop.f32.mrf.mxu0
        %2182 = vdwg.mxu0
        %2183 = vmatpush.bf16.msra.mxu0 %v2102
        %2184 = vmatpush.bf16.msra.mxu0 %v2098
        %2185 = vmatpush.bf16.msra.mxu0 %v2094
        %2186 = vmatpush.bf16.msra.mxu0 %v2090
        %2187 = vmatpush.bf16.msra.mxu0 %v2086
        %2188 = vmatpush.bf16.msra.mxu0 %v2082
        %2189 = vmatpush.bf16.msra.mxu0 %v2078
        %2190 = vmatpush.bf16.msra.mxu0 %v2074
        %2191 = vmatmul.bf16.gmra.mxu0 %v1775
        %v2192 = vpop.f32.mrf.mxu0
        %v2193 = vadd.f32 %v2180, %v2192
        %v2194 = vpop.f32.mrf.mxu0
        %2195 = vdwg.mxu0
        %2196 = vmatpush.bf16.msra.mxu0 %v2071
        %2197 = vmatpush.bf16.msra.mxu0 %v2067
        %2198 = vmatpush.bf16.msra.mxu0 %v2063
        %2199 = vmatpush.bf16.msra.mxu0 %v2059
        %2200 = vmatpush.bf16.msra.mxu0 %v2055
        %2201 = vmatpush.bf16.msra.mxu0 %v2051
        %2202 = vmatpush.bf16.msra.mxu0 %v2047
        %2203 = vmatpush.bf16.msra.mxu0 %v2043
        %2204 = vmatmul.bf16.gmra.mxu0 %v1774
        %v2205 = vpop.f32.mrf.mxu0
        %v2206 = vadd.f32 %v1843, %v2205
        %v2207 = vpop.f32.mrf.mxu0
        %2208 = vdwg.mxu0
        %2209 = vmatpush.bf16.msra.mxu0 %v2103
        %2210 = vmatpush.bf16.msra.mxu0 %v2099
        %2211 = vmatpush.bf16.msra.mxu0 %v2095
        %2212 = vmatpush.bf16.msra.mxu0 %v2091
        %2213 = vmatpush.bf16.msra.mxu0 %v2087
        %2214 = vmatpush.bf16.msra.mxu0 %v2083
        %2215 = vmatpush.bf16.msra.mxu0 %v2079
        %2216 = vmatpush.bf16.msra.mxu0 %v2075
        %2217 = vmatmul.bf16.gmra.mxu0 %v1775
        %v2218 = vpop.f32.mrf.mxu0
        %v2219 = vadd.f32 %v2206, %v2218
        %v2220 = vpop.f32.mrf.mxu0
        %2221 = vdwg.mxu0
        %2222 = vmatpush.bf16.msra.mxu0 %v2072
        %2223 = vmatpush.bf16.msra.mxu0 %v2068
        %2224 = vmatpush.bf16.msra.mxu0 %v2064
        %2225 = vmatpush.bf16.msra.mxu0 %v2060
        %2226 = vmatpush.bf16.msra.mxu0 %v2056
        %2227 = vmatpush.bf16.msra.mxu0 %v2052
        %2228 = vmatpush.bf16.msra.mxu0 %v2048
        %2229 = vmatpush.bf16.msra.mxu0 %v2044
        %2230 = vmatmul.bf16.gmra.mxu0 %v1774
        %v2231 = vpop.f32.mrf.mxu0
        %v2232 = vadd.f32 %v1844, %v2231
        %v2233 = vpop.f32.mrf.mxu0
        %2234 = vdwg.mxu0
        %2235 = vmatpush.bf16.msra.mxu0 %v2104
        %2236 = vmatpush.bf16.msra.mxu0 %v2100
        %2237 = vmatpush.bf16.msra.mxu0 %v2096
        %2238 = vmatpush.bf16.msra.mxu0 %v2092
        %2239 = vmatpush.bf16.msra.mxu0 %v2088
        %2240 = vmatpush.bf16.msra.mxu0 %v2084
        %2241 = vmatpush.bf16.msra.mxu0 %v2080
        %2242 = vmatpush.bf16.msra.mxu0 %v2076
        %2243 = vmatmul.bf16.gmra.mxu0 %v1775
        %v2244 = vpop.f32.mrf.mxu0
        %v2245 = vadd.f32 %v2232, %v2244
        %v2246 = vpop.f32.mrf.mxu0
        %2247 = vdwg.mxu0
        %2248 = vmatpush.bf16.msra.mxu0 %v2073
        %2249 = vmatpush.bf16.msra.mxu0 %v2069
        %2250 = vmatpush.bf16.msra.mxu0 %v2065
        %2251 = vmatpush.bf16.msra.mxu0 %v2061
        %2252 = vmatpush.bf16.msra.mxu0 %v2057
        %2253 = vmatpush.bf16.msra.mxu0 %v2053
        %2254 = vmatpush.bf16.msra.mxu0 %v2049
        %2255 = vmatpush.bf16.msra.mxu0 %v2045
        %2256 = vmatmul.bf16.gmra.mxu0 %v1774
        %v2257 = vpop.f32.mrf.mxu0
        %v2258 = vadd.f32 %v1845, %v2257
        %v2259 = vpop.f32.mrf.mxu0
        %2260 = vdwg.mxu0
        %2261 = vmatpush.bf16.msra.mxu0 %v2105
        %2262 = vmatpush.bf16.msra.mxu0 %v2101
        %2263 = vmatpush.bf16.msra.mxu0 %v2097
        %2264 = vmatpush.bf16.msra.mxu0 %v2093
        %2265 = vmatpush.bf16.msra.mxu0 %v2089
        %2266 = vmatpush.bf16.msra.mxu0 %v2085
        %2267 = vmatpush.bf16.msra.mxu0 %v2081
        %2268 = vmatpush.bf16.msra.mxu0 %v2077
        %2269 = vmatmul.bf16.gmra.mxu0 %v1775
        %v2270 = vpop.f32.mrf.mxu0
        %v2271 = vadd.f32 %v2258, %v2270
        %v2272 = vpop.f32.mrf.mxu0
        %2273 = vdwg.mxu0
        %v2274 = vmax.f32 %v2193, 0.0
        %v2275 = vmax.f32 %v2219, 0.0
        %v2276 = vmax.f32 %v2245, 0.0
        %v2277 = vmax.f32 %v2271, 0.0
        %v2278 = vpack.c.bf16 %v2274, %v2274
        %v2279 = vpack.c.bf16 %v2275, %v2275
        %v2280 = vpack.c.bf16 %v2276, %v2276
        %v2281 = vpack.c.bf16 %v2277, %v2277
        %v2282 = vld [vmem:[#allocation8] sm:$0xff]
        %v2283 = vld [vmem:[#allocation8 + $0x8] sm:$0xff]
        %v2284 = vld [vmem:[#allocation8 + $0x10] sm:$0xff]
        %v2285 = vld [vmem:[#allocation8 + $0x18] sm:$0xff]
        %v2286 = vld [vmem:[#allocation8 + $0x20] sm:$0xff]
        %v2287 = vld [vmem:[#allocation8 + $0x28] sm:$0xff]
        %v2288 = vld [vmem:[#allocation8 + $0x30] sm:$0xff]
        %v2289 = vld [vmem:[#allocation8 + $0x38] sm:$0xff]
        %v2290 = vld [vmem:[#allocation8 + $0x40] sm:$0xff]
        %v2291 = vld [vmem:[#allocation8 + $0x48] sm:$0xff]
        %v2292 = vld [vmem:[#allocation8 + $0x50] sm:$0xff]
        %v2293 = vld [vmem:[#allocation8 + $0x58] sm:$0xff]
        %v2294 = vld [vmem:[#allocation8 + $0x60] sm:$0xff]
        %v2295 = vld [vmem:[#allocation8 + $0x68] sm:$0xff]
        %v2296 = vld [vmem:[#allocation8 + $0x70] sm:$0xff]
        %v2297 = vld [vmem:[#allocation8 + $0x78] sm:$0xff]
        %v2298 = vld [vmem:[#allocation8 + $0x80] sm:$0xff]
        %v2299 = vld [vmem:[#allocation8 + $0x88] sm:$0xff]
        %v2300 = vld [vmem:[#allocation8 + $0x90] sm:$0xff]
        %v2301 = vld [vmem:[#allocation8 + $0x98] sm:$0xff]
        %v2302 = vld [vmem:[#allocation8 + $0xa0] sm:$0xff]
        %v2303 = vld [vmem:[#allocation8 + $0xa8] sm:$0xff]
        %v2304 = vld [vmem:[#allocation8 + $0xb0] sm:$0xff]
        %v2305 = vld [vmem:[#allocation8 + $0xb8] sm:$0xff]
        %v2306 = vld [vmem:[#allocation8 + $0xc0] sm:$0xff]
        %v2307 = vld [vmem:[#allocation8 + $0xc8] sm:$0xff]
        %v2308 = vld [vmem:[#allocation8 + $0xd0] sm:$0xff]
        %v2309 = vld [vmem:[#allocation8 + $0xd8] sm:$0xff]
        %v2310 = vld [vmem:[#allocation8 + $0xe0] sm:$0xff]
        %v2311 = vld [vmem:[#allocation8 + $0xe8] sm:$0xff]
        %v2312 = vld [vmem:[#allocation8 + $0xf0] sm:$0xff]
        %v2313 = vld [vmem:[#allocation8 + $0xf8] sm:$0xff]
        %v2314 = vld [vmem:[#allocation8 + $0x100] sm:$0xff]
        %v2315 = vld [vmem:[#allocation8 + $0x108] sm:$0xff]
        %v2316 = vld [vmem:[#allocation8 + $0x110] sm:$0xff]
        %v2317 = vld [vmem:[#allocation8 + $0x118] sm:$0xff]
        %v2318 = vld [vmem:[#allocation8 + $0x120] sm:$0xff]
        %v2319 = vld [vmem:[#allocation8 + $0x128] sm:$0xff]
        %v2320 = vld [vmem:[#allocation8 + $0x130] sm:$0xff]
        %v2321 = vld [vmem:[#allocation8 + $0x138] sm:$0xff]
        %v2322 = vld [vmem:[#allocation8 + $0x140] sm:$0xff]
        %v2323 = vld [vmem:[#allocation8 + $0x148] sm:$0xff]
        %v2324 = vld [vmem:[#allocation8 + $0x150] sm:$0xff]
        %v2325 = vld [vmem:[#allocation8 + $0x158] sm:$0xff]
        %v2326 = vld [vmem:[#allocation8 + $0x160] sm:$0xff]
        %v2327 = vld [vmem:[#allocation8 + $0x168] sm:$0xff]
        %v2328 = vld [vmem:[#allocation8 + $0x170] sm:$0xff]
        %v2329 = vld [vmem:[#allocation8 + $0x178] sm:$0xff]
        %v2330 = vld [vmem:[#allocation8 + $0x180] sm:$0xff]
        %v2331 = vld [vmem:[#allocation8 + $0x188] sm:$0xff]
        %v2332 = vld [vmem:[#allocation8 + $0x190] sm:$0xff]
        %v2333 = vld [vmem:[#allocation8 + $0x198] sm:$0xff]
        %v2334 = vld [vmem:[#allocation8 + $0x1a0] sm:$0xff]
        %v2335 = vld [vmem:[#allocation8 + $0x1a8] sm:$0xff]
        %v2336 = vld [vmem:[#allocation8 + $0x1b0] sm:$0xff]
        %v2337 = vld [vmem:[#allocation8 + $0x1b8] sm:$0xff]
        %v2338 = vld [vmem:[#allocation8 + $0x1c0] sm:$0xff]
        %v2339 = vld [vmem:[#allocation8 + $0x1c8] sm:$0xff]
        %v2340 = vld [vmem:[#allocation8 + $0x1d0] sm:$0xff]
        %v2341 = vld [vmem:[#allocation8 + $0x1d8] sm:$0xff]
        %v2342 = vld [vmem:[#allocation8 + $0x1e0] sm:$0xff]
        %v2343 = vld [vmem:[#allocation8 + $0x1e8] sm:$0xff]
        %v2344 = vld [vmem:[#allocation8 + $0x1f0] sm:$0xff]
        %v2345 = vld [vmem:[#allocation8 + $0x1f8] sm:$0xff]
        %v2346 = vld [vmem:[%s12] sm:$0x3]
        %v2348 = vperm.slane %v2346, 0
        %v2349 = vperm.slane %v2346, 1
        %v2416 = vunpack.c.l.b16 %v2282
        %v2417 = vunpack.c.h.b16 %v2282
        %v2418 = vunpack.c.l.b16 %v2283
        %v2419 = vunpack.c.h.b16 %v2283
        %v2420 = vunpack.c.l.b16 %v2284
        %v2421 = vunpack.c.h.b16 %v2284
        %v2422 = vunpack.c.l.b16 %v2285
        %v2423 = vunpack.c.h.b16 %v2285
        %v2424 = vunpack.c.l.b16 %v2286
        %v2425 = vunpack.c.h.b16 %v2286
        %v2426 = vunpack.c.l.b16 %v2287
        %v2427 = vunpack.c.h.b16 %v2287
        %v2428 = vunpack.c.l.b16 %v2288
        %v2429 = vunpack.c.h.b16 %v2288
        %v2430 = vunpack.c.l.b16 %v2289
        %v2431 = vunpack.c.h.b16 %v2289
        %v2432 = vunpack.c.l.b16 %v2290
        %v2433 = vunpack.c.h.b16 %v2290
        %v2434 = vunpack.c.l.b16 %v2291
        %v2435 = vunpack.c.h.b16 %v2291
        %v2436 = vunpack.c.l.b16 %v2292
        %v2437 = vunpack.c.h.b16 %v2292
        %v2438 = vunpack.c.l.b16 %v2293
        %v2439 = vunpack.c.h.b16 %v2293
        %v2440 = vunpack.c.l.b16 %v2294
        %v2441 = vunpack.c.h.b16 %v2294
        %v2442 = vunpack.c.l.b16 %v2295
        %v2443 = vunpack.c.h.b16 %v2295
        %v2444 = vunpack.c.l.b16 %v2296
        %v2445 = vunpack.c.h.b16 %v2296
        %v2446 = vunpack.c.l.b16 %v2297
        %v2447 = vunpack.c.h.b16 %v2297
        %v2448 = vunpack.c.l.b16 %v2298
        %v2449 = vunpack.c.h.b16 %v2298
        %v2450 = vunpack.c.l.b16 %v2299
        %v2451 = vunpack.c.h.b16 %v2299
        %v2452 = vunpack.c.l.b16 %v2300
        %v2453 = vunpack.c.h.b16 %v2300
        %v2454 = vunpack.c.l.b16 %v2301
        %v2455 = vunpack.c.h.b16 %v2301
        %v2456 = vunpack.c.l.b16 %v2302
        %v2457 = vunpack.c.h.b16 %v2302
        %v2458 = vunpack.c.l.b16 %v2303
        %v2459 = vunpack.c.h.b16 %v2303
        %v2460 = vunpack.c.l.b16 %v2304
        %v2461 = vunpack.c.h.b16 %v2304
        %v2462 = vunpack.c.l.b16 %v2305
        %v2463 = vunpack.c.h.b16 %v2305
        %v2464 = vunpack.c.l.b16 %v2306
        %v2465 = vunpack.c.h.b16 %v2306
        %v2466 = vunpack.c.l.b16 %v2307
        %v2467 = vunpack.c.h.b16 %v2307
        %v2468 = vunpack.c.l.b16 %v2308
        %v2469 = vunpack.c.h.b16 %v2308
        %v2470 = vunpack.c.l.b16 %v2309
        %v2471 = vunpack.c.h.b16 %v2309
        %v2472 = vunpack.c.l.b16 %v2310
        %v2473 = vunpack.c.h.b16 %v2310
        %v2474 = vunpack.c.l.b16 %v2311
        %v2475 = vunpack.c.h.b16 %v2311
        %v2476 = vunpack.c.l.b16 %v2312
        %v2477 = vunpack.c.h.b16 %v2312
        %v2478 = vunpack.c.l.b16 %v2313
        %v2479 = vunpack.c.h.b16 %v2313
        %v2480 = vunpack.c.l.b16 %v2314
        %v2481 = vunpack.c.h.b16 %v2314
        %v2482 = vunpack.c.l.b16 %v2315
        %v2483 = vunpack.c.h.b16 %v2315
        %v2484 = vunpack.c.l.b16 %v2316
        %v2485 = vunpack.c.h.b16 %v2316
        %v2486 = vunpack.c.l.b16 %v2317
        %v2487 = vunpack.c.h.b16 %v2317
        %v2488 = vunpack.c.l.b16 %v2318
        %v2489 = vunpack.c.h.b16 %v2318
        %v2490 = vunpack.c.l.b16 %v2319
        %v2491 = vunpack.c.h.b16 %v2319
        %v2492 = vunpack.c.l.b16 %v2320
        %v2493 = vunpack.c.h.b16 %v2320
        %v2494 = vunpack.c.l.b16 %v2321
        %v2495 = vunpack.c.h.b16 %v2321
        %v2496 = vunpack.c.l.b16 %v2322
        %v2497 = vunpack.c.h.b16 %v2322
        %v2498 = vunpack.c.l.b16 %v2323
        %v2499 = vunpack.c.h.b16 %v2323
        %v2500 = vunpack.c.l.b16 %v2324
        %v2501 = vunpack.c.h.b16 %v2324
        %v2502 = vunpack.c.l.b16 %v2325
        %v2503 = vunpack.c.h.b16 %v2325
        %v2504 = vunpack.c.l.b16 %v2326
        %v2505 = vunpack.c.h.b16 %v2326
        %v2506 = vunpack.c.l.b16 %v2327
        %v2507 = vunpack.c.h.b16 %v2327
        %v2508 = vunpack.c.l.b16 %v2328
        %v2509 = vunpack.c.h.b16 %v2328
        %v2510 = vunpack.c.l.b16 %v2329
        %v2511 = vunpack.c.h.b16 %v2329
        %v2512 = vunpack.c.l.b16 %v2330
        %v2513 = vunpack.c.h.b16 %v2330
        %v2514 = vunpack.c.l.b16 %v2331
        %v2515 = vunpack.c.h.b16 %v2331
        %v2516 = vunpack.c.l.b16 %v2332
        %v2517 = vunpack.c.h.b16 %v2332
        %v2518 = vunpack.c.l.b16 %v2333
        %v2519 = vunpack.c.h.b16 %v2333
        %v2520 = vunpack.c.l.b16 %v2334
        %v2521 = vunpack.c.h.b16 %v2334
        %v2522 = vunpack.c.l.b16 %v2335
        %v2523 = vunpack.c.h.b16 %v2335
        %v2524 = vunpack.c.l.b16 %v2336
        %v2525 = vunpack.c.h.b16 %v2336
        %v2526 = vunpack.c.l.b16 %v2337
        %v2527 = vunpack.c.h.b16 %v2337
        %v2528 = vunpack.c.l.b16 %v2338
        %v2529 = vunpack.c.h.b16 %v2338
        %v2530 = vunpack.c.l.b16 %v2339
        %v2531 = vunpack.c.h.b16 %v2339
        %v2532 = vunpack.c.l.b16 %v2340
        %v2533 = vunpack.c.h.b16 %v2340
        %v2534 = vunpack.c.l.b16 %v2341
        %v2535 = vunpack.c.h.b16 %v2341
        %v2536 = vunpack.c.l.b16 %v2342
        %v2537 = vunpack.c.h.b16 %v2342
        %v2538 = vunpack.c.l.b16 %v2343
        %v2539 = vunpack.c.h.b16 %v2343
        %v2540 = vunpack.c.l.b16 %v2344
        %v2541 = vunpack.c.h.b16 %v2344
        %v2542 = vunpack.c.l.b16 %v2345
        %v2543 = vunpack.c.h.b16 %v2345
        %v2544 = vpack.c.b16 %v2418, %v2416
        %v2545 = vpack.c.b16 %v2419, %v2417
        %v2546 = vpack.c.b16 %v2422, %v2420
        %v2547 = vpack.c.b16 %v2423, %v2421
        %v2548 = vpack.c.b16 %v2426, %v2424
        %v2549 = vpack.c.b16 %v2427, %v2425
        %v2550 = vpack.c.b16 %v2430, %v2428
        %v2551 = vpack.c.b16 %v2431, %v2429
        %v2552 = vpack.c.b16 %v2434, %v2432
        %v2553 = vpack.c.b16 %v2435, %v2433
        %v2554 = vpack.c.b16 %v2438, %v2436
        %v2555 = vpack.c.b16 %v2439, %v2437
        %v2556 = vpack.c.b16 %v2442, %v2440
        %v2557 = vpack.c.b16 %v2443, %v2441
        %v2558 = vpack.c.b16 %v2446, %v2444
        %v2559 = vpack.c.b16 %v2447, %v2445
        %v2560 = vpack.c.b16 %v2450, %v2448
        %v2561 = vpack.c.b16 %v2451, %v2449
        %v2562 = vpack.c.b16 %v2454, %v2452
        %v2563 = vpack.c.b16 %v2455, %v2453
        %v2564 = vpack.c.b16 %v2458, %v2456
        %v2565 = vpack.c.b16 %v2459, %v2457
        %v2566 = vpack.c.b16 %v2462, %v2460
        %v2567 = vpack.c.b16 %v2463, %v2461
        %v2568 = vpack.c.b16 %v2466, %v2464
        %v2569 = vpack.c.b16 %v2467, %v2465
        %v2570 = vpack.c.b16 %v2470, %v2468
        %v2571 = vpack.c.b16 %v2471, %v2469
        %v2572 = vpack.c.b16 %v2474, %v2472
        %v2573 = vpack.c.b16 %v2475, %v2473
        %v2574 = vpack.c.b16 %v2478, %v2476
        %v2575 = vpack.c.b16 %v2479, %v2477
        %v2576 = vpack.c.b16 %v2482, %v2480
        %v2577 = vpack.c.b16 %v2483, %v2481
        %v2578 = vpack.c.b16 %v2486, %v2484
        %v2579 = vpack.c.b16 %v2487, %v2485
        %v2580 = vpack.c.b16 %v2490, %v2488
        %v2581 = vpack.c.b16 %v2491, %v2489
        %v2582 = vpack.c.b16 %v2494, %v2492
        %v2583 = vpack.c.b16 %v2495, %v2493
        %v2584 = vpack.c.b16 %v2498, %v2496
        %v2585 = vpack.c.b16 %v2499, %v2497
        %v2586 = vpack.c.b16 %v2502, %v2500
        %v2587 = vpack.c.b16 %v2503, %v2501
        %v2588 = vpack.c.b16 %v2506, %v2504
        %v2589 = vpack.c.b16 %v2507, %v2505
        %v2590 = vpack.c.b16 %v2510, %v2508
        %v2591 = vpack.c.b16 %v2511, %v2509
        %v2592 = vpack.c.b16 %v2514, %v2512
        %v2593 = vpack.c.b16 %v2515, %v2513
        %v2594 = vpack.c.b16 %v2518, %v2516
        %v2595 = vpack.c.b16 %v2519, %v2517
        %v2596 = vpack.c.b16 %v2522, %v2520
        %v2597 = vpack.c.b16 %v2523, %v2521
        %v2598 = vpack.c.b16 %v2526, %v2524
        %v2599 = vpack.c.b16 %v2527, %v2525
        %v2600 = vpack.c.b16 %v2530, %v2528
        %v2601 = vpack.c.b16 %v2531, %v2529
        %v2602 = vpack.c.b16 %v2534, %v2532
        %v2603 = vpack.c.b16 %v2535, %v2533
        %v2604 = vpack.c.b16 %v2538, %v2536
        %v2605 = vpack.c.b16 %v2539, %v2537
        %v2606 = vpack.c.b16 %v2542, %v2540
        %v2607 = vpack.c.b16 %v2543, %v2541
        %2672 = vmatpush.bf16.msra.mxu0 %v2558
        %2673 = vmatpush.bf16.msra.mxu0 %v2556
        %2674 = vmatpush.bf16.msra.mxu0 %v2554
        %2675 = vmatpush.bf16.msra.mxu0 %v2552
        %2676 = vmatpush.bf16.msra.mxu0 %v2550
        %2677 = vmatpush.bf16.msra.mxu0 %v2548
        %2678 = vmatpush.bf16.msra.mxu0 %v2546
        %2679 = vmatpush.bf16.msra.mxu0 %v2544
        %2680 = vmatmul.bf16.gmra.mxu0 %v2278
        %v2681 = vpop.f32.mrf.mxu0
        %v2682 = vadd.f32 %v2348, %v2681
        %v2683 = vpop.f32.mrf.mxu0
        %2684 = vdwg.mxu0
        %2685 = vmatpush.bf16.msra.mxu0 %v2574
        %2686 = vmatpush.bf16.msra.mxu0 %v2572
        %2687 = vmatpush.bf16.msra.mxu0 %v2570
        %2688 = vmatpush.bf16.msra.mxu0 %v2568
        %2689 = vmatpush.bf16.msra.mxu0 %v2566
        %2690 = vmatpush.bf16.msra.mxu0 %v2564
        %2691 = vmatpush.bf16.msra.mxu0 %v2562
        %2692 = vmatpush.bf16.msra.mxu0 %v2560
        %2693 = vmatmul.bf16.gmra.mxu0 %v2279
        %v2694 = vpop.f32.mrf.mxu0
        %v2695 = vadd.f32 %v2682, %v2694
        %v2696 = vpop.f32.mrf.mxu0
        %2697 = vdwg.mxu0
        %2698 = vmatpush.bf16.msra.mxu0 %v2590
        %2699 = vmatpush.bf16.msra.mxu0 %v2588
        %2700 = vmatpush.bf16.msra.mxu0 %v2586
        %2701 = vmatpush.bf16.msra.mxu0 %v2584
        %2702 = vmatpush.bf16.msra.mxu0 %v2582
        %2703 = vmatpush.bf16.msra.mxu0 %v2580
        %2704 = vmatpush.bf16.msra.mxu0 %v2578
        %2705 = vmatpush.bf16.msra.mxu0 %v2576
        %2706 = vmatmul.bf16.gmra.mxu0 %v2280
        %v2707 = vpop.f32.mrf.mxu0
        %v2708 = vadd.f32 %v2695, %v2707
        %v2709 = vpop.f32.mrf.mxu0
        %2710 = vdwg.mxu0
        %2711 = vmatpush.bf16.msra.mxu0 %v2606
        %2712 = vmatpush.bf16.msra.mxu0 %v2604
        %2713 = vmatpush.bf16.msra.mxu0 %v2602
        %2714 = vmatpush.bf16.msra.mxu0 %v2600
        %2715 = vmatpush.bf16.msra.mxu0 %v2598
        %2716 = vmatpush.bf16.msra.mxu0 %v2596
        %2717 = vmatpush.bf16.msra.mxu0 %v2594
        %2718 = vmatpush.bf16.msra.mxu0 %v2592
        %2719 = vmatmul.bf16.gmra.mxu0 %v2281
        %v2720 = vpop.f32.mrf.mxu0
        %v2721 = vadd.f32 %v2708, %v2720
        %v2722 = vpop.f32.mrf.mxu0
        %2723 = vdwg.mxu0
        %2724 = vmatpush.bf16.msra.mxu0 %v2559
        %2725 = vmatpush.bf16.msra.mxu0 %v2557
        %2726 = vmatpush.bf16.msra.mxu0 %v2555
        %2727 = vmatpush.bf16.msra.mxu0 %v2553
        %2728 = vmatpush.bf16.msra.mxu0 %v2551
        %2729 = vmatpush.bf16.msra.mxu0 %v2549
        %2730 = vmatpush.bf16.msra.mxu0 %v2547
        %2731 = vmatpush.bf16.msra.mxu0 %v2545
        %2732 = vmatmul.bf16.gmra.mxu0 %v2278
        %v2733 = vpop.f32.mrf.mxu0
        %v2734 = vadd.f32 %v2349, %v2733
        %v2735 = vpop.f32.mrf.mxu0
        %2736 = vdwg.mxu0
        %2737 = vmatpush.bf16.msra.mxu0 %v2575
        %2738 = vmatpush.bf16.msra.mxu0 %v2573
        %2739 = vmatpush.bf16.msra.mxu0 %v2571
        %2740 = vmatpush.bf16.msra.mxu0 %v2569
        %2741 = vmatpush.bf16.msra.mxu0 %v2567
        %2742 = vmatpush.bf16.msra.mxu0 %v2565
        %2743 = vmatpush.bf16.msra.mxu0 %v2563
        %2744 = vmatpush.bf16.msra.mxu0 %v2561
        %2745 = vmatmul.bf16.gmra.mxu0 %v2279
        %v2746 = vpop.f32.mrf.mxu0
        %v2747 = vadd.f32 %v2734, %v2746
        %v2748 = vpop.f32.mrf.mxu0
        %2749 = vdwg.mxu0
        %2750 = vmatpush.bf16.msra.mxu0 %v2591
        %2751 = vmatpush.bf16.msra.mxu0 %v2589
        %2752 = vmatpush.bf16.msra.mxu0 %v2587
        %2753 = vmatpush.bf16.msra.mxu0 %v2585
        %2754 = vmatpush.bf16.msra.mxu0 %v2583
        %2755 = vmatpush.bf16.msra.mxu0 %v2581
        %2756 = vmatpush.bf16.msra.mxu0 %v2579
        %2757 = vmatpush.bf16.msra.mxu0 %v2577
        %2758 = vmatmul.bf16.gmra.mxu0 %v2280
        %v2759 = vpop.f32.mrf.mxu0
        %v2760 = vadd.f32 %v2747, %v2759
        %v2761 = vpop.f32.mrf.mxu0
        %2762 = vdwg.mxu0
        %2763 = vmatpush.bf16.msra.mxu0 %v2607
        %2764 = vmatpush.bf16.msra.mxu0 %v2605
        %2765 = vmatpush.bf16.msra.mxu0 %v2603
        %2766 = vmatpush.bf16.msra.mxu0 %v2601
        %2767 = vmatpush.bf16.msra.mxu0 %v2599
        %2768 = vmatpush.bf16.msra.mxu0 %v2597
        %2769 = vmatpush.bf16.msra.mxu0 %v2595
        %2770 = vmatpush.bf16.msra.mxu0 %v2593
        %2771 = vmatmul.bf16.gmra.mxu0 %v2281
        %v2772 = vpop.f32.mrf.mxu0
        %v2773 = vadd.f32 %v2760, %v2772
        %v2774 = vpop.f32.mrf.mxu0
        %2775 = vdwg.mxu0
        %v2776 = vadd.f32 %v2721, %v1772
        %v2777 = vadd.f32 %v2773, %v1773
        %v2778 = vld [vmem:[%s13] sm:$0x3]
        %v2779 = vld [vmem:[%s14] sm:$0x3]
        %v2780 = vadd.f32 %v2776, %v2777
        %2781 = vadd.xlane.f32.xlu0 %v2780
        %v2782 = vpop.xlane.xlu0 %2781
        %v2783 = vmul.f32 %v2782, 0.00390625
        %v2784 = vsub.f32 %v2776, %v2783
        %v2785 = vsub.f32 %v2777, %v2783
        %v2786 = vmul.f32 %v2784, %v2784
        %v2787 = vmul.f32 %v2785, %v2785
        %v2788 = vadd.f32 %v2786, %v2787
        %2789 = vadd.xlane.f32.xlu0 %v2788
        %v2790 = vpop.xlane.xlu0 %2789
        %v2791 = vmul.f32 %v2790, 0.00390625
        %v2792 = vadd.f32 %v2791, 1e-05
        %v2793 = vrsqrt.pop %v2792
        %v2794 = vmul.f32 %v2793, %v2792
        %v2795 = vmul.f32 %v2794, %v2793
        %v2796 = vmul.f32 0.5, %v2795
        %v2797 = vsub.f32 1.5, %v2796
        %v2798 = vmul.f32 %v2793, %v2797
        %vm2799 = vweird.f32 %v2792
        %vm2800 = vweird.f32 %v2793
        %vm2801 = vmor %vm2799, %vm2800
        %v2802 = vsel %vm2801, %v2793, %v2798
        %v2803 = vmul.f32 %v2784, %v2802
        %v2804 = vmul.f32 %v2785, %v2802
        %v2806 = vperm.slane %v2778, 0
        %v2807 = vperm.slane %v2778, 1
        %v2810 = vmul.f32 %v2803, %v2806
        %v2811 = vmul.f32 %v2804, %v2807
        %v2813 = vperm.slane %v2779, 0
        %v2814 = vperm.slane %v2779, 1
        %v2817 = vadd.f32 %v2810, %v2813
        %v2818 = vadd.f32 %v2811, %v2814
        %v2819 = vpack.c.bf16 %v2818, %v2817
        %2820 = vst [vmem:[%s575] sm:$0xff] %v2819
        %p2821 = scmp.lt.s32.totalorder %s29, 1
        %s2822 = scalar_select %p2821, %s29, 1
        %s2823 = smul.addr %s2822, 2
        %s2824 = smul.addr %s2823, 4
        %s2825 = scalar_lea.vmem %s15, %s2824
        // Predicated region
        $region97: #{transformer_encoder_model.3} parent=79 // pred_check
          %p2826 = pneg %p372
        $region98: #{transformer_encoder_model.3} parent=79 // pred_check_branch
          %2828 = sbr.rel (%p2826) target = $region100
        $region99: #{transformer_encoder_model.3} parent=79 // pred_region
          _
        $region100: #{transformer_encoder_model.3} parent=79 // pred_fallthru
          _
      $region80: #{transformer_encoder_model.3} parent=5 // pred_fallthru
        _
      %p2829 = scmp.le.s32.totalorder 2, %s24
      // Predicated region
      $region101: #{transformer_encoder_model.3} parent=5 // pred_check
        %p2830 = pneg %p2829
      $region102: #{transformer_encoder_model.3} parent=5 // pred_check_branch
        %2832 = sbr.rel (%p2830) target = $region104
      $region103: #{transformer_encoder_model.3} parent=5 // pred_region
        %s2833 = ssub.s32 %s24, 2
        // Predicated region
        $region105: #{transformer_encoder_model.3} parent=103 // pred_check
          %p2834 = pneg %p378
        $region106: #{transformer_encoder_model.3} parent=103 // pred_check_branch
          %2836 = sbr.rel (%p2834) target = $region108
        $region107: #{transformer_encoder_model.3} parent=103 // pred_region
          %p2837 = scmp.lt.s32.totalorder %s30, 1
          %s2838 = scalar_select %p2837, %s30, 1
          %s2839 = smul.addr %s2838, 2
          %s2840 = smul.addr %s2839, 4
          %s2841 = scalar_lea.vmem %s15, %s2840
        $region108: #{transformer_encoder_model.3} parent=103 // pred_fallthru
          _
      $region104: #{transformer_encoder_model.3} parent=5 // pred_fallthru
        _
    $region6: #{transformer_encoder_model.3} parent=1 // loop_footer
      %s28 = sadd.s32 1, %s24
    $region7: #{transformer_encoder_model.3} parent=1 // loop_footer_branch
      %23 = sbr.rel target = $region3
    $region8: #{transformer_encoder_model.3} parent=1 // loop_exit
      _
    %2842 = vsyncpa [#allocation4], 1
    %s2843 = scalar_lea.sflag [#allocation4], 1
    %2844 = vsyncpa %s2843, 1
    %2845 = vsyncpa [#allocation6], 1
    %2846 = vsyncpa [#allocation9], 1

</llo_original>
